<compile_context>
chip_gen: v6e
topology: v6e:2x2x1
jax: 0.10.0
libtpu: 0.0.40
codegen_flags: <defaults>
</compile_context>

<pallas_src>
import functools

import jax
import jax.numpy as jnp
from jax.experimental import pallas as pl
from jax.experimental.pallas import tpu as pltpu


# ----------------------------- fused conv kernels ----------------------------

def _conv_body(k, x_ref, w_ref, b_ref, o_ref):
    # x_ref: (1, H+2p, W+2p, Cin) bf16 padded image
    # w_ref: (k*k, Cin, Cout) bf16 (tap-major dh,dw) ; b_ref: (1, Cout) f32
    _, th, w_out, cout = o_ref.shape
    cin = x_ref.shape[-1]
    n_pix = th * w_out
    acc = jnp.zeros((n_pix, cout), jnp.float32)
    for dh in range(k):
        for dw in range(k):
            lhs = x_ref[0, pl.ds(dh, th), pl.ds(dw, w_out), :]
            acc = acc + jnp.dot(lhs.reshape(n_pix, cin),
                                w_ref[dh * k + dw],
                                preferred_element_type=jnp.float32)
    return acc + b_ref[...]


def _conv_kernel(k, x_ref, w_ref, b_ref, o_ref):
    _, th, w_out, cout = o_ref.shape
    acc = _conv_body(k, x_ref, w_ref, b_ref, o_ref)
    o_ref[0] = acc.reshape(th, w_out, cout).astype(o_ref.dtype)


def _conv_skip_kernel(k, x_ref, w_ref, b_ref, s_ref, o_ref):
    # Same as _conv_kernel with a fused residual add: out = conv(x) + skip.
    _, th, w_out, cout = o_ref.shape
    acc = _conv_body(k, x_ref, w_ref, b_ref, o_ref)
    acc = acc + s_ref[0].reshape(th * w_out, cout).astype(jnp.float32)
    o_ref[0] = acc.reshape(th, w_out, cout).astype(o_ref.dtype)


def conv2d_pallas(x, w, b, k, skip=None, out_dtype=jnp.bfloat16):
    """'same' KxK conv (stride 1), NHWC, one fused kernel per batch element.

    x: (N, H, W, Cin).  w: (k*k, Cin, Cout), tap-major (dh, dw) -- when porting
    real PyTorch weights (Cout, Cin, kh, kw) use
    w.transpose(2, 3, 1, 0).reshape(k*k, Cin, Cout).  b: (Cout,).
    skip: optional (N, H, W, Cout) tensor fused into the epilogue.

    TODO(synk): one whole (padded) image per grid step; for very large inputs
    this should row-tile with manual halo DMA (memory_space=pl.ANY +
    pltpu.make_async_copy) rather than re-introducing HBM halo copies.
    """
    N, H, W, Cin = x.shape
    Cout = w.shape[-1]
    p = k // 2
    Hp, Wp = H + 2 * p, W + 2 * p

    xp = jnp.pad(x.astype(jnp.bfloat16), ((0, 0), (p, p), (p, p), (0, 0)))
    wq = w.astype(jnp.bfloat16)
    bq = b.reshape(1, Cout).astype(jnp.float32)

    in_specs = [
        pl.BlockSpec((1, Hp, Wp, Cin), lambda i: (i, 0, 0, 0)),
        pl.BlockSpec((k * k, Cin, Cout), lambda i: (0, 0, 0)),
        pl.BlockSpec((1, Cout), lambda i: (0, 0)),
    ]
    args = [xp, wq, bq]
    if skip is None:
        kern = functools.partial(_conv_kernel, k)
    else:
        in_specs.append(pl.BlockSpec((1, H, W, Cout), lambda i: (i, 0, 0, 0)))
        args.append(skip)
        kern = functools.partial(_conv_skip_kernel, k)

    return pl.pallas_call(
        kern,
        out_shape=jax.ShapeDtypeStruct((N, H, W, Cout), out_dtype),
        grid=(N,),
        in_specs=in_specs,
        out_specs=pl.BlockSpec((1, H, W, Cout), lambda i: (i, 0, 0, 0)),
        compiler_params=pltpu.CompilerParams(
            dimension_semantics=("parallel",),
            vmem_limit_bytes=48 * 1024 * 1024),
    )(*args)


# ---------------------- fused OSAG (1x1 conv + residual) chain ----------------

def _osag_chain_kernel(res_num, x_ref, w_ref, b_ref, o_ref):
    # x_ref: (1, H, W, C) bf16 ; w_ref: (L, C, C) bf16 ; b_ref: (L, 1, C) f32
    # Activation stays in VMEM/registers across all L layers (one HBM read,
    # one HBM write for the whole chain).
    _, th, w_out, c = o_ref.shape
    n_pix = th * w_out
    act = x_ref[0].reshape(n_pix, c).astype(jnp.float32)
    for l in range(res_num):
        y = jnp.dot(act.astype(jnp.bfloat16), w_ref[l],
                    preferred_element_type=jnp.float32)
        act = act + y + b_ref[l]          # out = conv1x1(out) + bias + out
    o_ref[0] = act.reshape(th, w_out, c).astype(o_ref.dtype)


def osag_chain_pallas(x, w_all, b_all, out_dtype=jnp.bfloat16):
    """Fused chain of res_num (1x1 conv + residual) blocks.  w_all: (L, C, C)."""
    N, H, W, C = x.shape
    L = w_all.shape[0]
    wq = w_all.astype(jnp.bfloat16)
    bq = b_all.reshape(L, 1, C).astype(jnp.float32)
    return pl.pallas_call(
        functools.partial(_osag_chain_kernel, L),
        out_shape=jax.ShapeDtypeStruct((N, H, W, C), out_dtype),
        grid=(N,),
        in_specs=[pl.BlockSpec((1, H, W, C), lambda i: (i, 0, 0, 0)),
                  pl.BlockSpec((L, C, C), lambda i: (0, 0, 0)),
                  pl.BlockSpec((L, 1, C), lambda i: (0, 0, 0))],
        out_specs=pl.BlockSpec((1, H, W, C), lambda i: (i, 0, 0, 0)),
        compiler_params=pltpu.CompilerParams(
            dimension_semantics=("parallel",),
            vmem_limit_bytes=48 * 1024 * 1024),
    )(x.astype(jnp.bfloat16), wq, bq)


# --------------------------- tiled elementwise quantizer ----------------------

_EW_LANE = 512      # lane-dense last dim (multiple of 128)
_EW_ROWS = 256      # row tile when the array is large


def _quant_kernel(x_ref, o_ref):
    # TODO(synk): Quantization_RS source not provided; approximated as a
    # clamped 8-bit round trip on [-1, 1]: q = round(clip((x+1)/2,0,1)*255)/255,
    # mapped back to [-1, 1].
    x01 = jnp.clip(x_ref[...] * 0.5 + 0.5, 0.0, 1.0)
    o_ref[...] = jnp.round(x01 * 255.0) * (2.0 / 255.0) - 1.0


def quantize_pallas(x):
    total = x.size
    rows = -(-total // _EW_LANE)
    tr = _EW_ROWS if rows >= _EW_ROWS else rows
    rows_p = -(-rows // tr) * tr
    pad = rows_p * _EW_LANE - total
    flat = jnp.pad(x.reshape(-1), (0, pad)).reshape(rows_p, _EW_LANE)
    spec = pl.BlockSpec((tr, _EW_LANE), lambda i: (i, 0))
    out = pl.pallas_call(
        _quant_kernel,
        out_shape=jax.ShapeDtypeStruct(flat.shape, flat.dtype),
        grid=(rows_p // tr,),
        in_specs=[spec],
        out_specs=spec,
        compiler_params=pltpu.CompilerParams(dimension_semantics=("parallel",)),
    )(flat)
    return out.reshape(-1)[:total].reshape(x.shape)


# ------------------------------ layout helpers --------------------------------

def pixel_shuffle_nhwc(x, r):
    # out[n, h*r+i, w*r+j, c] = in[n, h, w, c*r*r + i*r + j]  (nn.PixelShuffle)
    N, H, W, Crr = x.shape
    C = Crr // (r * r)
    x = x.reshape(N, H, W, C, r, r)
    x = x.transpose(0, 1, 4, 2, 5, 3)
    return x.reshape(N, H * r, W * r, C)


def edrs_downsample(x_nchw, scale):
    # TODO(synk): EDRS(1/2) source not provided; approximated with bilinear resize.
    N, C, H, W = x_nchw.shape
    new_h, new_w = int(round(H * scale)), int(round(W * scale))
    return jax.image.resize(x_nchw, (N, C, new_h, new_w), method="bilinear")


# ------------------------------- model forward --------------------------------

def omnisr_forward(p, x_nhwc):
    N, H, W, _ = x_nhwc.shape
    ws = p["window_size"]
    ph = (ws - H % ws) % ws
    pw = (ws - W % ws) % ws
    x = jnp.pad(x_nhwc, ((0, 0), (0, ph), (0, pw), (0, 0)))        # check_image_size
    residual = conv2d_pallas(x, p["w_in"], p["b_in"], 3,
                             out_dtype=jnp.bfloat16)               # self.input
    # TODO(synk): OSAG/OSA_Block/ESA sources not provided; each OSAG is reduced
    # to its trailing 1x1 conv + residual add; the whole chain runs in one
    # fused kernel (activation resident in VMEM across layers).
    out = osag_chain_pallas(residual, p["osag_w"], p["osag_b"],
                            out_dtype=jnp.bfloat16)                # self.residual_layer
    out = conv2d_pallas(out, p["w_out"], p["b_out"], 3,
                        skip=residual, out_dtype=jnp.bfloat16)     # self.output + residual
    up = conv2d_pallas(out, p["w_up"], p["b_up"], 3,
                       out_dtype=jnp.float32)                      # pixelshuffle_block conv
    # TODO(synk): pixel shuffle + NHWC<->NCHW layout left to XLA; could be
    # folded into the up-conv's store layout in a dedicated kernel.
    up = pixel_shuffle_nhwc(up, p["up_scale"])
    return up[:, :H * p["up_scale"], :W * p["up_scale"], :]


def arb_lr_sr_x2_forward(p, x_nchw):
    # layer1 = EDRS(1/2): the stand-in resampler is linear with unit DC gain,
    # so resize(x/2 + 0.5) * 2 - 1 == resize(x) exactly -- the two full-image
    # affine passes of the reference forward are folded away algebraically.
    # (Re-check if the real EDRS is non-linear.)
    lr = edrs_downsample(x_nchw, 0.5)                # LR = layer1(x/2+0.5)*2-1
    lr_q = quantize_pallas(lr)                       # layer2 = Quantization_RS
    x_nhwc = jnp.transpose(lr_q, (0, 2, 3, 1)).astype(jnp.float32)
    hr_nhwc = omnisr_forward(p, x_nhwc)              # layer3 = OmniSR
    hr = jnp.transpose(hr_nhwc, (0, 3, 1, 2)).astype(jnp.float32)
    return lr, hr


# ------------------------------ parameter init --------------------------------

def init_params(key, num_in_ch=3, num_out_ch=3, num_feat=32, res_num=2,
                window_size=8, up_scale=2):
    keys = jax.random.split(key, 4)

    def conv_w(k_, kk, cin, cout):
        # tap-major (dh, dw) layout: (kk*kk, cin, cout)
        return 0.05 * jax.random.normal(k_, (kk * kk, cin, cout), jnp.float32)

    return {
        "res_num": res_num,
        "window_size": window_size,
        "up_scale": up_scale,
        "w_in": conv_w(keys[0], 3, num_in_ch, num_feat),
        "b_in": jnp.full((num_feat,), 0.01, jnp.float32),
        "osag_w": 0.05 * jax.random.normal(keys[3], (res_num, num_feat, num_feat),
                                           jnp.float32),
        "osag_b": jnp.full((res_num, num_feat), 0.01, jnp.float32),
        "w_out": conv_w(keys[1], 3, num_feat, num_feat),
        "b_out": jnp.full((num_feat,), 0.01, jnp.float32),
        "w_up": conv_w(keys[2], 3, num_feat, num_out_ch * up_scale * up_scale),
        "b_up": jnp.full((num_out_ch * up_scale * up_scale,), 0.01, jnp.float32),
    }


if __name__ == "__main__":
    key = jax.random.PRNGKey(0)
    x = jax.random.normal(key, (2, 3, 16, 16), jnp.float32)     # NCHW, like PyTorch

    params = init_params(jax.random.PRNGKey(42),
                         num_feat=32, res_num=2, window_size=8, up_scale=2)

    fwd = jax.jit(lambda inp: arb_lr_sr_x2_forward(params, inp))
    lr, hr = fwd(x)
    jax.block_until_ready((lr, hr))

    assert lr.shape == (2, 3, 8, 8), lr.shape
    assert hr.shape == (2, 3, 16, 16), hr.shape
    assert jnp.isfinite(lr).all() and jnp.isfinite(hr).all()
    print("KERNEL_OK")
</pallas_src>

<mosaic_0001>
module attributes {stable_mosaic.version = 11 : i64} {
  func.func @_quant_kernel(%arg0: i32, %arg1: memref<1x512xf32, #tpu.memory_space<vmem>>, %arg2: memref<1x512xf32, #tpu.memory_space<vmem>>) attributes {dimension_semantics = [#tpu.dimension_semantics<parallel>], iteration_bounds = array<i64: 1>, scalar_prefetch = 0 : i64, scratch_operands = 0 : i64, tpu.core_type = #tpu.core_type<tc>, window_params = [{transform_indices = @transform_0, window_bounds = array<i64: 1, 512>}, {transform_indices = @transform_1, window_bounds = array<i64: 1, 512>}]} {
    %c0 = arith.constant 0 : index
    %c0_0 = arith.constant 0 : index
    %0 = vector.load %arg1[%c0, %c0_0] : memref<1x512xf32, #tpu.memory_space<vmem>>, vector<1x512xf32>
    %cst = arith.constant 5.000000e-01 : f32
    %1 = vector.broadcast %cst : f32 to vector<1x512xf32>
    %2 = arith.mulf %0, %1 : vector<1x512xf32>
    %cst_1 = arith.constant 5.000000e-01 : f32
    %3 = vector.broadcast %cst_1 : f32 to vector<1x512xf32>
    %4 = arith.addf %2, %3 : vector<1x512xf32>
    %cst_2 = arith.constant 0.000000e+00 : f32
    %cst_3 = arith.constant 1.000000e+00 : f32
    %5 = vector.broadcast %cst_2 : f32 to vector<1x512xf32>
    %6 = arith.maximumf %5, %4 : vector<1x512xf32>
    %7 = vector.broadcast %cst_3 : f32 to vector<1x512xf32>
    %8 = arith.minimumf %7, %6 : vector<1x512xf32>
    %cst_4 = arith.constant 2.550000e+02 : f32
    %9 = vector.broadcast %cst_4 : f32 to vector<1x512xf32>
    %10 = arith.mulf %8, %9 : vector<1x512xf32>
    %11 = math.roundeven %10 : vector<1x512xf32>
    %cst_5 = arith.constant 0.00784313772 : f32
    %12 = vector.broadcast %cst_5 : f32 to vector<1x512xf32>
    %13 = arith.mulf %11, %12 : vector<1x512xf32>
    %cst_6 = arith.constant 1.000000e+00 : f32
    %14 = vector.broadcast %cst_6 : f32 to vector<1x512xf32>
    %15 = arith.subf %13, %14 : vector<1x512xf32>
    %c0_7 = arith.constant 0 : index
    %c0_8 = arith.constant 0 : index
    %16 = vector.load %arg2[%c0_7, %c0_8] : memref<1x512xf32, #tpu.memory_space<vmem>>, vector<1x512xf32>
    tpu.vector_store %arg2[%c0_7, %c0_8], %15 {strides = array<i32>} : memref<1x512xf32, #tpu.memory_space<vmem>>, vector<1x512xf32>,
    return
  }
  func.func @transform_0(%arg0: i32) -> (i32, i32) {
    %c0_i32 = arith.constant 0 : i32
    %c0_i32_0 = arith.constant 0 : i32
    return %arg0, %c0_i32 : i32, i32
  }
  func.func @transform_1(%arg0: i32) -> (i32, i32) {
    %c0_i32 = arith.constant 0 : i32
    %c0_i32_0 = arith.constant 0 : i32
    return %arg0, %c0_i32 : i32, i32
  }
}

module attributes {stable_mosaic.version = 11 : i64} {
  func.func @_osag_chain_kernel(%arg0: i32, %arg1: memref<1x8x8x32xbf16, #tpu.memory_space<vmem>>, %arg2: memref<2x32x32xbf16, #tpu.memory_space<vmem>>, %arg3: memref<2x1x32xf32, #tpu.memory_space<vmem>>, %arg4: memref<1x8x8x32xbf16, #tpu.memory_space<vmem>>) attributes {dimension_semantics = [#tpu.dimension_semantics<parallel>], iteration_bounds = array<i64: 2>, scalar_prefetch = 0 : i64, scratch_operands = 0 : i64, tpu.core_type = #tpu.core_type<tc>, window_params = [{transform_indices = @transform_0, window_bounds = array<i64: 1, 8, 8, 32>}, {pipeline_mode = #tpu.pipeline_mode<synchronous>, transform_indices = @transform_1, window_bounds = array<i64: 2, 32, 32>}, {pipeline_mode = #tpu.pipeline_mode<synchronous>, transform_indices = @transform_2, window_bounds = array<i64: 2, 1, 32>}, {transform_indices = @transform_3, window_bounds = array<i64: 1, 8, 8, 32>}]} {
    %c0 = arith.constant 0 : index
    %c0_0 = arith.constant 0 : index
    %c0_1 = arith.constant 0 : index
    %c0_2 = arith.constant 0 : index
    %0 = vector.load %arg1[%c0, %c0_0, %c0_1, %c0_2] : memref<1x8x8x32xbf16, #tpu.memory_space<vmem>>, vector<1x8x8x32xbf16>
    %1 = vector.shape_cast %0 : vector<1x8x8x32xbf16> to vector<8x8x32xbf16>
    %2 = vector.shape_cast %1 : vector<8x8x32xbf16> to vector<64x32xbf16>
    %3 = arith.extf %2 : vector<64x32xbf16> to vector<64x32xf32>
    %4 = arith.truncf %3 : vector<64x32xf32> to vector<64x32xbf16>
    %c0_3 = arith.constant 0 : index
    %c0_4 = arith.constant 0 : index
    %c0_5 = arith.constant 0 : index
    %5 = vector.load %arg2[%c0_3, %c0_4, %c0_5] : memref<2x32x32xbf16, #tpu.memory_space<vmem>>, vector<1x32x32xbf16>
    %6 = vector.shape_cast %5 : vector<1x32x32xbf16> to vector<32x32xbf16>
    %cst = arith.constant dense<0.000000e+00> : vector<64x32xf32>
    %7 = tpu.matmul %4, %6, %cst {dimension_numbers = #tpu.dot_dimension_numbers<[1], [0], [0], [1], [0, 0, 1, 1], [], []>} : vector<64x32xbf16>, vector<32x32xbf16>, vector<64x32xf32> -> vector<64x32xf32>
    %8 = arith.addf %3, %7 : vector<64x32xf32>
    %c0_6 = arith.constant 0 : index
    %c0_7 = arith.constant 0 : index
    %c0_8 = arith.constant 0 : index
    %9 = vector.load %arg3[%c0_6, %c0_7, %c0_8] : memref<2x1x32xf32, #tpu.memory_space<vmem>>, vector<1x1x32xf32>
    %10 = vector.shape_cast %9 : vector<1x1x32xf32> to vector<1x32xf32>
    %11 = vector.broadcast %10 : vector<1x32xf32> to vector<64x32xf32>
    %12 = arith.addf %8, %11 : vector<64x32xf32>
    %13 = arith.truncf %12 : vector<64x32xf32> to vector<64x32xbf16>
    %c1 = arith.constant 1 : index
    %c0_9 = arith.constant 0 : index
    %c0_10 = arith.constant 0 : index
    %14 = vector.load %arg2[%c1, %c0_9, %c0_10] : memref<2x32x32xbf16, #tpu.memory_space<vmem>>, vector<1x32x32xbf16>
    %15 = vector.shape_cast %14 : vector<1x32x32xbf16> to vector<32x32xbf16>
    %cst_11 = arith.constant dense<0.000000e+00> : vector<64x32xf32>
    %16 = tpu.matmul %13, %15, %cst_11 {dimension_numbers = #tpu.dot_dimension_numbers<[1], [0], [0], [1], [0, 0, 1, 1], [], []>} : vector<64x32xbf16>, vector<32x32xbf16>, vector<64x32xf32> -> vector<64x32xf32>
    %17 = arith.addf %12, %16 : vector<64x32xf32>
    %c1_12 = arith.constant 1 : index
    %c0_13 = arith.constant 0 : index
    %c0_14 = arith.constant 0 : index
    %18 = vector.load %arg3[%c1_12, %c0_13, %c0_14] : memref<2x1x32xf32, #tpu.memory_space<vmem>>, vector<1x1x32xf32>
    %19 = vector.shape_cast %18 : vector<1x1x32xf32> to vector<1x32xf32>
    %20 = vector.broadcast %19 : vector<1x32xf32> to vector<64x32xf32>
    %21 = arith.addf %17, %20 : vector<64x32xf32>
    %22 = vector.shape_cast %21 : vector<64x32xf32> to vector<8x8x32xf32>
    %23 = arith.truncf %22 : vector<8x8x32xf32> to vector<8x8x32xbf16>
    %c0_15 = arith.constant 0 : index
    %c0_16 = arith.constant 0 : index
    %c0_17 = arith.constant 0 : index
    %c0_18 = arith.constant 0 : index
    %24 = vector.load %arg4[%c0_15, %c0_16, %c0_17, %c0_18] : memref<1x8x8x32xbf16, #tpu.memory_space<vmem>>, vector<1x8x8x32xbf16>
    %25 = vector.shape_cast %24 : vector<1x8x8x32xbf16> to vector<8x8x32xbf16>
    %26 = vector.shape_cast %23 : vector<8x8x32xbf16> to vector<1x8x8x32xbf16>
    tpu.vector_store %arg4[%c0_15, %c0_16, %c0_17, %c0_18], %26 {strides = array<i32>} : memref<1x8x8x32xbf16, #tpu.memory_space<vmem>>, vector<1x8x8x32xbf16>,
    return
  }
  func.func @transform_0(%arg0: i32) -> (i32, i32, i32, i32) {
    %c0_i32 = arith.constant 0 : i32
    %c0_i32_0 = arith.constant 0 : i32
    %c0_i32_1 = arith.constant 0 : i32
    %c0_i32_2 = arith.constant 0 : i32
    return %arg0, %c0_i32, %c0_i32_0, %c0_i32_1 : i32, i32, i32, i32
  }
  func.func @transform_1(%arg0: i32) -> (i32, i32, i32) {
    %c0_i32 = arith.constant 0 : i32
    %c0_i32_0 = arith.constant 0 : i32
    %c0_i32_1 = arith.constant 0 : i32
    %c0_i32_2 = arith.constant 0 : i32
    return %c0_i32, %c0_i32_0, %c0_i32_1 : i32, i32, i32
  }
  func.func @transform_2(%arg0: i32) -> (i32, i32, i32) {
    %c0_i32 = arith.constant 0 : i32
    %c0_i32_0 = arith.constant 0 : i32
    %c0_i32_1 = arith.constant 0 : i32
    %c0_i32_2 = arith.constant 0 : i32
    return %c0_i32, %c0_i32_0, %c0_i32_1 : i32, i32, i32
  }
  func.func @transform_3(%arg0: i32) -> (i32, i32, i32, i32) {
    %c0_i32 = arith.constant 0 : i32
    %c0_i32_0 = arith.constant 0 : i32
    %c0_i32_1 = arith.constant 0 : i32
    %c0_i32_2 = arith.constant 0 : i32
    return %arg0, %c0_i32, %c0_i32_0, %c0_i32_1 : i32, i32, i32, i32
  }
}

module attributes {stable_mosaic.version = 11 : i64} {
  func.func @_conv_kernel(%arg0: i32, %arg1: memref<1x10x10x3xbf16, #tpu.memory_space<vmem>>, %arg2: memref<9x3x32xbf16, #tpu.memory_space<vmem>>, %arg3: memref<1x32xf32, #tpu.memory_space<vmem>>, %arg4: memref<1x8x8x32xbf16, #tpu.memory_space<vmem>>) attributes {dimension_semantics = [#tpu.dimension_semantics<parallel>], iteration_bounds = array<i64: 2>, scalar_prefetch = 0 : i64, scratch_operands = 0 : i64, tpu.core_type = #tpu.core_type<tc>, window_params = [{transform_indices = @transform_0, window_bounds = array<i64: 1, 10, 10, 3>}, {pipeline_mode = #tpu.pipeline_mode<synchronous>, transform_indices = @transform_1, window_bounds = array<i64: 9, 3, 32>}, {pipeline_mode = #tpu.pipeline_mode<synchronous>, transform_indices = @transform_2, window_bounds = array<i64: 1, 32>}, {transform_indices = @transform_3, window_bounds = array<i64: 1, 8, 8, 32>}]} {
    %cst = arith.constant 0.000000e+00 : f32
    %0 = vector.broadcast %cst : f32 to vector<64x32xf32>
    %c0 = arith.constant 0 : index
    %c0_0 = arith.constant 0 : index
    %c0_1 = arith.constant 0 : index
    %c0_2 = arith.constant 0 : index
    %1 = vector.load %arg1[%c0, %c0_0, %c0_1, %c0_2] : memref<1x10x10x3xbf16, #tpu.memory_space<vmem>>, vector<1x8x8x3xbf16>
    %2 = vector.shape_cast %1 : vector<1x8x8x3xbf16> to vector<8x8x3xbf16>
    %3 = vector.shape_cast %2 : vector<8x8x3xbf16> to vector<64x3xbf16>
    %c0_3 = arith.constant 0 : index
    %c0_4 = arith.constant 0 : index
    %c0_5 = arith.constant 0 : index
    %4 = vector.load %arg2[%c0_3, %c0_4, %c0_5] : memref<9x3x32xbf16, #tpu.memory_space<vmem>>, vector<1x3x32xbf16>
    %5 = vector.shape_cast %4 : vector<1x3x32xbf16> to vector<3x32xbf16>
    %cst_6 = arith.constant dense<0.000000e+00> : vector<64x32xf32>
    %6 = tpu.matmul %3, %5, %cst_6 {dimension_numbers = #tpu.dot_dimension_numbers<[1], [0], [0], [1], [0, 0, 1, 1], [], []>} : vector<64x3xbf16>, vector<3x32xbf16>, vector<64x32xf32> -> vector<64x32xf32>
    %7 = arith.addf %0, %6 : vector<64x32xf32>
    %c0_7 = arith.constant 0 : index
    %c0_8 = arith.constant 0 : index
    %c1 = arith.constant 1 : index
    %c0_9 = arith.constant 0 : index
    %8 = vector.load %arg1[%c0_7, %c0_8, %c1, %c0_9] : memref<1x10x10x3xbf16, #tpu.memory_space<vmem>>, vector<1x8x8x3xbf16>
    %9 = vector.shape_cast %8 : vector<1x8x8x3xbf16> to vector<8x8x3xbf16>
    %10 = vector.shape_cast %9 : vector<8x8x3xbf16> to vector<64x3xbf16>
    %c1_10 = arith.constant 1 : index
    %c0_11 = arith.constant 0 : index
    %c0_12 = arith.constant 0 : index
    %11 = vector.load %arg2[%c1_10, %c0_11, %c0_12] : memref<9x3x32xbf16, #tpu.memory_space<vmem>>, vector<1x3x32xbf16>
    %12 = vector.shape_cast %11 : vector<1x3x32xbf16> to vector<3x32xbf16>
    %cst_13 = arith.constant dense<0.000000e+00> : vector<64x32xf32>
    %13 = tpu.matmul %10, %12, %cst_13 {dimension_numbers = #tpu.dot_dimension_numbers<[1], [0], [0], [1], [0, 0, 1, 1], [], []>} : vector<64x3xbf16>, vector<3x32xbf16>, vector<64x32xf32> -> vector<64x32xf32>
    %14 = arith.addf %7, %13 : vector<64x32xf32>
    %c0_14 = arith.constant 0 : index
    %c0_15 = arith.constant 0 : index
    %c2 = arith.constant 2 : index
    %c0_16 = arith.constant 0 : index
    %15 = vector.load %arg1[%c0_14, %c0_15, %c2, %c0_16] : memref<1x10x10x3xbf16, #tpu.memory_space<vmem>>, vector<1x8x8x3xbf16>
    %16 = vector.shape_cast %15 : vector<1x8x8x3xbf16> to vector<8x8x3xbf16>
    %17 = vector.shape_cast %16 : vector<8x8x3xbf16> to vector<64x3xbf16>
    %c2_17 = arith.constant 2 : index
    %c0_18 = arith.constant 0 : index
    %c0_19 = arith.constant 0 : index
    %18 = vector.load %arg2[%c2_17, %c0_18, %c0_19] : memref<9x3x32xbf16, #tpu.memory_space<vmem>>, vector<1x3x32xbf16>
    %19 = vector.shape_cast %18 : vector<1x3x32xbf16> to vector<3x32xbf16>
    %cst_20 = arith.constant dense<0.000000e+00> : vector<64x32xf32>
    %20 = tpu.matmul %17, %19, %cst_20 {dimension_numbers = #tpu.dot_dimension_numbers<[1], [0], [0], [1], [0, 0, 1, 1], [], []>} : vector<64x3xbf16>, vector<3x32xbf16>, vector<64x32xf32> -> vector<64x32xf32>
    %21 = arith.addf %14, %20 : vector<64x32xf32>
    %c0_21 = arith.constant 0 : index
    %c1_22 = arith.constant 1 : index
    %c0_23 = arith.constant 0 : index
    %c0_24 = arith.constant 0 : index
    %22 = vector.load %arg1[%c0_21, %c1_22, %c0_23, %c0_24] : memref<1x10x10x3xbf16, #tpu.memory_space<vmem>>, vector<1x8x8x3xbf16>
    %23 = vector.shape_cast %22 : vector<1x8x8x3xbf16> to vector<8x8x3xbf16>
    %24 = vector.shape_cast %23 : vector<8x8x3xbf16> to vector<64x3xbf16>
    %c3 = arith.constant 3 : index
    %c0_25 = arith.constant 0 : index
    %c0_26 = arith.constant 0 : index
    %25 = vector.load %arg2[%c3, %c0_25, %c0_26] : memref<9x3x32xbf16, #tpu.memory_space<vmem>>, vector<1x3x32xbf16>
    %26 = vector.shape_cast %25 : vector<1x3x32xbf16> to vector<3x32xbf16>
    %cst_27 = arith.constant dense<0.000000e+00> : vector<64x32xf32>
    %27 = tpu.matmul %24, %26, %cst_27 {dimension_numbers = #tpu.dot_dimension_numbers<[1], [0], [0], [1], [0, 0, 1, 1], [], []>} : vector<64x3xbf16>, vector<3x32xbf16>, vector<64x32xf32> -> vector<64x32xf32>
    %28 = arith.addf %21, %27 : vector<64x32xf32>
    %c0_28 = arith.constant 0 : index
    %c1_29 = arith.constant 1 : index
    %c1_30 = arith.constant 1 : index
    %c0_31 = arith.constant 0 : index
    %29 = vector.load %arg1[%c0_28, %c1_29, %c1_30, %c0_31] : memref<1x10x10x3xbf16, #tpu.memory_space<vmem>>, vector<1x8x8x3xbf16>
    %30 = vector.shape_cast %29 : vector<1x8x8x3xbf16> to vector<8x8x3xbf16>
    %31 = vector.shape_cast %30 : vector<8x8x3xbf16> to vector<64x3xbf16>
    %c4 = arith.constant 4 : index
    %c0_32 = arith.constant 0 : index
    %c0_33 = arith.constant 0 : index
    %32 = vector.load %arg2[%c4, %c0_32, %c0_33] : memref<9x3x32xbf16, #tpu.memory_space<vmem>>, vector<1x3x32xbf16>
    %33 = vector.shape_cast %32 : vector<1x3x32xbf16> to vector<3x32xbf16>
    %cst_34 = arith.constant dense<0.000000e+00> : vector<64x32xf32>
    %34 = tpu.matmul %31, %33, %cst_34 {dimension_numbers = #tpu.dot_dimension_numbers<[1], [0], [0], [1], [0, 0, 1, 1], [], []>} : vector<64x3xbf16>, vector<3x32xbf16>, vector<64x32xf32> -> vector<64x32xf32>
    %35 = arith.addf %28, %34 : vector<64x32xf32>
    %c0_35 = arith.constant 0 : index
    %c1_36 = arith.constant 1 : index
    %c2_37 = arith.constant 2 : index
    %c0_38 = arith.constant 0 : index
    %36 = vector.load %arg1[%c0_35, %c1_36, %c2_37, %c0_38] : memref<1x10x10x3xbf16, #tpu.memory_space<vmem>>, vector<1x8x8x3xbf16>
    %37 = vector.shape_cast %36 : vector<1x8x8x3xbf16> to vector<8x8x3xbf16>
    %38 = vector.shape_cast %37 : vector<8x8x3xbf16> to vector<64x3xbf16>
    %c5 = arith.constant 5 : index
    %c0_39 = arith.constant 0 : index
    %c0_40 = arith.constant 0 : index
    %39 = vector.load %arg2[%c5, %c0_39, %c0_40] : memref<9x3x32xbf16, #tpu.memory_space<vmem>>, vector<1x3x32xbf16>
    %40 = vector.shape_cast %39 : vector<1x3x32xbf16> to vector<3x32xbf16>
    %cst_41 = arith.constant dense<0.000000e+00> : vector<64x32xf32>
    %41 = tpu.matmul %38, %40, %cst_41 {dimension_numbers = #tpu.dot_dimension_numbers<[1], [0], [0], [1], [0, 0, 1, 1], [], []>} : vector<64x3xbf16>, vector<3x32xbf16>, vector<64x32xf32> -> vector<64x32xf32>
    %42 = arith.addf %35, %41 : vector<64x32xf32>
    %c0_42 = arith.constant 0 : index
    %c2_43 = arith.constant 2 : index
    %c0_44 = arith.constant 0 : index
    %c0_45 = arith.constant 0 : index
    %43 = vector.load %arg1[%c0_42, %c2_43, %c0_44, %c0_45] : memref<1x10x10x3xbf16, #tpu.memory_space<vmem>>, vector<1x8x8x3xbf16>
    %44 = vector.shape_cast %43 : vector<1x8x8x3xbf16> to vector<8x8x3xbf16>
    %45 = vector.shape_cast %44 : vector<8x8x3xbf16> to vector<64x3xbf16>
    %c6 = arith.constant 6 : index
    %c0_46 = arith.constant 0 : index
    %c0_47 = arith.constant 0 : index
    %46 = vector.load %arg2[%c6, %c0_46, %c0_47] : memref<9x3x32xbf16, #tpu.memory_space<vmem>>, vector<1x3x32xbf16>
    %47 = vector.shape_cast %46 : vector<1x3x32xbf16> to vector<3x32xbf16>
    %cst_48 = arith.constant dense<0.000000e+00> : vector<64x32xf32>
    %48 = tpu.matmul %45, %47, %cst_48 {dimension_numbers = #tpu.dot_dimension_numbers<[1], [0], [0], [1], [0, 0, 1, 1], [], []>} : vector<64x3xbf16>, vector<3x32xbf16>, vector<64x32xf32> -> vector<64x32xf32>
    %49 = arith.addf %42, %48 : vector<64x32xf32>
    %c0_49 = arith.constant 0 : index
    %c2_50 = arith.constant 2 : index
    %c1_51 = arith.constant 1 : index
    %c0_52 = arith.constant 0 : index
    %50 = vector.load %arg1[%c0_49, %c2_50, %c1_51, %c0_52] : memref<1x10x10x3xbf16, #tpu.memory_space<vmem>>, vector<1x8x8x3xbf16>
    %51 = vector.shape_cast %50 : vector<1x8x8x3xbf16> to vector<8x8x3xbf16>
    %52 = vector.shape_cast %51 : vector<8x8x3xbf16> to vector<64x3xbf16>
    %c7 = arith.constant 7 : index
    %c0_53 = arith.constant 0 : index
    %c0_54 = arith.constant 0 : index
    %53 = vector.load %arg2[%c7, %c0_53, %c0_54] : memref<9x3x32xbf16, #tpu.memory_space<vmem>>, vector<1x3x32xbf16>
    %54 = vector.shape_cast %53 : vector<1x3x32xbf16> to vector<3x32xbf16>
    %cst_55 = arith.constant dense<0.000000e+00> : vector<64x32xf32>
    %55 = tpu.matmul %52, %54, %cst_55 {dimension_numbers = #tpu.dot_dimension_numbers<[1], [0], [0], [1], [0, 0, 1, 1], [], []>} : vector<64x3xbf16>, vector<3x32xbf16>, vector<64x32xf32> -> vector<64x32xf32>
    %56 = arith.addf %49, %55 : vector<64x32xf32>
    %c0_56 = arith.constant 0 : index
    %c2_57 = arith.constant 2 : index
    %c2_58 = arith.constant 2 : index
    %c0_59 = arith.constant 0 : index
    %57 = vector.load %arg1[%c0_56, %c2_57, %c2_58, %c0_59] : memref<1x10x10x3xbf16, #tpu.memory_space<vmem>>, vector<1x8x8x3xbf16>
    %58 = vector.shape_cast %57 : vector<1x8x8x3xbf16> to vector<8x8x3xbf16>
    %59 = vector.shape_cast %58 : vector<8x8x3xbf16> to vector<64x3xbf16>
    %c8 = arith.constant 8 : index
    %c0_60 = arith.constant 0 : index
    %c0_61 = arith.constant 0 : index
    %60 = vector.load %arg2[%c8, %c0_60, %c0_61] : memref<9x3x32xbf16, #tpu.memory_space<vmem>>, vector<1x3x32xbf16>
    %61 = vector.shape_cast %60 : vector<1x3x32xbf16> to vector<3x32xbf16>
    %cst_62 = arith.constant dense<0.000000e+00> : vector<64x32xf32>
    %62 = tpu.matmul %59, %61, %cst_62 {dimension_numbers = #tpu.dot_dimension_numbers<[1], [0], [0], [1], [0, 0, 1, 1], [], []>} : vector<64x3xbf16>, vector<3x32xbf16>, vector<64x32xf32> -> vector<64x32xf32>
    %63 = arith.addf %56, %62 : vector<64x32xf32>
    %c0_63 = arith.constant 0 : index
    %c0_64 = arith.constant 0 : index
    %64 = vector.load %arg3[%c0_63, %c0_64] : memref<1x32xf32, #tpu.memory_space<vmem>>, vector<1x32xf32>
    %65 = vector.broadcast %64 : vector<1x32xf32> to vector<64x32xf32>
    %66 = arith.addf %63, %65 : vector<64x32xf32>
    %67 = vector.shape_cast %66 : vector<64x32xf32> to vector<8x8x32xf32>
    %68 = arith.truncf %67 : vector<8x8x32xf32> to vector<8x8x32xbf16>
    %c0_65 = arith.constant 0 : index
    %c0_66 = arith.constant 0 : index
    %c0_67 = arith.constant 0 : index
    %c0_68 = arith.constant 0 : index
    %69 = vector.load %arg4[%c0_65, %c0_66, %c0_67, %c0_68] : memref<1x8x8x32xbf16, #tpu.memory_space<vmem>>, vector<1x8x8x32xbf16>
    %70 = vector.shape_cast %69 : vector<1x8x8x32xbf16> to vector<8x8x32xbf16>
    %71 = vector.shape_cast %68 : vector<8x8x32xbf16> to vector<1x8x8x32xbf16>
    tpu.vector_store %arg4[%c0_65, %c0_66, %c0_67, %c0_68], %71 {strides = array<i32>} : memref<1x8x8x32xbf16, #tpu.memory_space<vmem>>, vector<1x8x8x32xbf16>,
    return
  }
  func.func @transform_0(%arg0: i32) -> (i32, i32, i32, i32) {
    %c0_i32 = arith.constant 0 : i32
    %c0_i32_0 = arith.constant 0 : i32
    %c0_i32_1 = arith.constant 0 : i32
    %c0_i32_2 = arith.constant 0 : i32
    return %arg0, %c0_i32, %c0_i32_0, %c0_i32_1 : i32, i32, i32, i32
  }
  func.func @transform_1(%arg0: i32) -> (i32, i32, i32) {
    %c0_i32 = arith.constant 0 : i32
    %c0_i32_0 = arith.constant 0 : i32
    %c0_i32_1 = arith.constant 0 : i32
    %c0_i32_2 = arith.constant 0 : i32
    return %c0_i32, %c0_i32_0, %c0_i32_1 : i32, i32, i32
  }
  func.func @transform_2(%arg0: i32) -> (i32, i32) {
    %c0_i32 = arith.constant 0 : i32
    %c0_i32_0 = arith.constant 0 : i32
    %c0_i32_1 = arith.constant 0 : i32
    return %c0_i32, %c0_i32_0 : i32, i32
  }
  func.func @transform_3(%arg0: i32) -> (i32, i32, i32, i32) {
    %c0_i32 = arith.constant 0 : i32
    %c0_i32_0 = arith.constant 0 : i32
    %c0_i32_1 = arith.constant 0 : i32
    %c0_i32_2 = arith.constant 0 : i32
    return %arg0, %c0_i32, %c0_i32_0, %c0_i32_1 : i32, i32, i32, i32
  }
}

module attributes {stable_mosaic.version = 11 : i64} {
  func.func @_conv_skip_kernel(%arg0: i32, %arg1: memref<1x10x10x32xbf16, #tpu.memory_space<vmem>>, %arg2: memref<9x32x32xbf16, #tpu.memory_space<vmem>>, %arg3: memref<1x32xf32, #tpu.memory_space<vmem>>, %arg4: memref<1x8x8x32xbf16, #tpu.memory_space<vmem>>, %arg5: memref<1x8x8x32xbf16, #tpu.memory_space<vmem>>) attributes {dimension_semantics = [#tpu.dimension_semantics<parallel>], iteration_bounds = array<i64: 2>, scalar_prefetch = 0 : i64, scratch_operands = 0 : i64, tpu.core_type = #tpu.core_type<tc>, window_params = [{transform_indices = @transform_0, window_bounds = array<i64: 1, 10, 10, 32>}, {pipeline_mode = #tpu.pipeline_mode<synchronous>, transform_indices = @transform_1, window_bounds = array<i64: 9, 32, 32>}, {pipeline_mode = #tpu.pipeline_mode<synchronous>, transform_indices = @transform_2, window_bounds = array<i64: 1, 32>}, {transform_indices = @transform_3, window_bounds = array<i64: 1, 8, 8, 32>}, {transform_indices = @transform_4, window_bounds = array<i64: 1, 8, 8, 32>}]} {
    %cst = arith.constant 0.000000e+00 : f32
    %0 = vector.broadcast %cst : f32 to vector<64x32xf32>
    %c0 = arith.constant 0 : index
    %c0_0 = arith.constant 0 : index
    %c0_1 = arith.constant 0 : index
    %c0_2 = arith.constant 0 : index
    %1 = vector.load %arg1[%c0, %c0_0, %c0_1, %c0_2] : memref<1x10x10x32xbf16, #tpu.memory_space<vmem>>, vector<1x8x8x32xbf16>
    %2 = vector.shape_cast %1 : vector<1x8x8x32xbf16> to vector<8x8x32xbf16>
    %3 = vector.shape_cast %2 : vector<8x8x32xbf16> to vector<64x32xbf16>
    %c0_3 = arith.constant 0 : index
    %c0_4 = arith.constant 0 : index
    %c0_5 = arith.constant 0 : index
    %4 = vector.load %arg2[%c0_3, %c0_4, %c0_5] : memref<9x32x32xbf16, #tpu.memory_space<vmem>>, vector<1x32x32xbf16>
    %5 = vector.shape_cast %4 : vector<1x32x32xbf16> to vector<32x32xbf16>
    %cst_6 = arith.constant dense<0.000000e+00> : vector<64x32xf32>
    %6 = tpu.matmul %3, %5, %cst_6 {dimension_numbers = #tpu.dot_dimension_numbers<[1], [0], [0], [1], [0, 0, 1, 1], [], []>} : vector<64x32xbf16>, vector<32x32xbf16>, vector<64x32xf32> -> vector<64x32xf32>
    %7 = arith.addf %0, %6 : vector<64x32xf32>
    %c0_7 = arith.constant 0 : index
    %c0_8 = arith.constant 0 : index
    %c1 = arith.constant 1 : index
    %c0_9 = arith.constant 0 : index
    %8 = vector.load %arg1[%c0_7, %c0_8, %c1, %c0_9] : memref<1x10x10x32xbf16, #tpu.memory_space<vmem>>, vector<1x8x8x32xbf16>
    %9 = vector.shape_cast %8 : vector<1x8x8x32xbf16> to vector<8x8x32xbf16>
    %10 = vector.shape_cast %9 : vector<8x8x32xbf16> to vector<64x32xbf16>
    %c1_10 = arith.constant 1 : index
    %c0_11 = arith.constant 0 : index
    %c0_12 = arith.constant 0 : index
    %11 = vector.load %arg2[%c1_10, %c0_11, %c0_12] : memref<9x32x32xbf16, #tpu.memory_space<vmem>>, vector<1x32x32xbf16>
    %12 = vector.shape_cast %11 : vector<1x32x32xbf16> to vector<32x32xbf16>
    %cst_13 = arith.constant dense<0.000000e+00> : vector<64x32xf32>
    %13 = tpu.matmul %10, %12, %cst_13 {dimension_numbers = #tpu.dot_dimension_numbers<[1], [0], [0], [1], [0, 0, 1, 1], [], []>} : vector<64x32xbf16>, vector<32x32xbf16>, vector<64x32xf32> -> vector<64x32xf32>
    %14 = arith.addf %7, %13 : vector<64x32xf32>
    %c0_14 = arith.constant 0 : index
    %c0_15 = arith.constant 0 : index
    %c2 = arith.constant 2 : index
    %c0_16 = arith.constant 0 : index
    %15 = vector.load %arg1[%c0_14, %c0_15, %c2, %c0_16] : memref<1x10x10x32xbf16, #tpu.memory_space<vmem>>, vector<1x8x8x32xbf16>
    %16 = vector.shape_cast %15 : vector<1x8x8x32xbf16> to vector<8x8x32xbf16>
    %17 = vector.shape_cast %16 : vector<8x8x32xbf16> to vector<64x32xbf16>
    %c2_17 = arith.constant 2 : index
    %c0_18 = arith.constant 0 : index
    %c0_19 = arith.constant 0 : index
    %18 = vector.load %arg2[%c2_17, %c0_18, %c0_19] : memref<9x32x32xbf16, #tpu.memory_space<vmem>>, vector<1x32x32xbf16>
    %19 = vector.shape_cast %18 : vector<1x32x32xbf16> to vector<32x32xbf16>
    %cst_20 = arith.constant dense<0.000000e+00> : vector<64x32xf32>
    %20 = tpu.matmul %17, %19, %cst_20 {dimension_numbers = #tpu.dot_dimension_numbers<[1], [0], [0], [1], [0, 0, 1, 1], [], []>} : vector<64x32xbf16>, vector<32x32xbf16>, vector<64x32xf32> -> vector<64x32xf32>
    %21 = arith.addf %14, %20 : vector<64x32xf32>
    %c0_21 = arith.constant 0 : index
    %c1_22 = arith.constant 1 : index
    %c0_23 = arith.constant 0 : index
    %c0_24 = arith.constant 0 : index
    %22 = vector.load %arg1[%c0_21, %c1_22, %c0_23, %c0_24] : memref<1x10x10x32xbf16, #tpu.memory_space<vmem>>, vector<1x8x8x32xbf16>
    %23 = vector.shape_cast %22 : vector<1x8x8x32xbf16> to vector<8x8x32xbf16>
    %24 = vector.shape_cast %23 : vector<8x8x32xbf16> to vector<64x32xbf16>
    %c3 = arith.constant 3 : index
    %c0_25 = arith.constant 0 : index
    %c0_26 = arith.constant 0 : index
    %25 = vector.load %arg2[%c3, %c0_25, %c0_26] : memref<9x32x32xbf16, #tpu.memory_space<vmem>>, vector<1x32x32xbf16>
    %26 = vector.shape_cast %25 : vector<1x32x32xbf16> to vector<32x32xbf16>
    %cst_27 = arith.constant dense<0.000000e+00> : vector<64x32xf32>
    %27 = tpu.matmul %24, %26, %cst_27 {dimension_numbers = #tpu.dot_dimension_numbers<[1], [0], [0], [1], [0, 0, 1, 1], [], []>} : vector<64x32xbf16>, vector<32x32xbf16>, vector<64x32xf32> -> vector<64x32xf32>
    %28 = arith.addf %21, %27 : vector<64x32xf32>
    %c0_28 = arith.constant 0 : index
    %c1_29 = arith.constant 1 : index
    %c1_30 = arith.constant 1 : index
    %c0_31 = arith.constant 0 : index
    %29 = vector.load %arg1[%c0_28, %c1_29, %c1_30, %c0_31] : memref<1x10x10x32xbf16, #tpu.memory_space<vmem>>, vector<1x8x8x32xbf16>
    %30 = vector.shape_cast %29 : vector<1x8x8x32xbf16> to vector<8x8x32xbf16>
    %31 = vector.shape_cast %30 : vector<8x8x32xbf16> to vector<64x32xbf16>
    %c4 = arith.constant 4 : index
    %c0_32 = arith.constant 0 : index
    %c0_33 = arith.constant 0 : index
    %32 = vector.load %arg2[%c4, %c0_32, %c0_33] : memref<9x32x32xbf16, #tpu.memory_space<vmem>>, vector<1x32x32xbf16>
    %33 = vector.shape_cast %32 : vector<1x32x32xbf16> to vector<32x32xbf16>
    %cst_34 = arith.constant dense<0.000000e+00> : vector<64x32xf32>
    %34 = tpu.matmul %31, %33, %cst_34 {dimension_numbers = #tpu.dot_dimension_numbers<[1], [0], [0], [1], [0, 0, 1, 1], [], []>} : vector<64x32xbf16>, vector<32x32xbf16>, vector<64x32xf32> -> vector<64x32xf32>
    %35 = arith.addf %28, %34 : vector<64x32xf32>
    %c0_35 = arith.constant 0 : index
    %c1_36 = arith.constant 1 : index
    %c2_37 = arith.constant 2 : index
    %c0_38 = arith.constant 0 : index
    %36 = vector.load %arg1[%c0_35, %c1_36, %c2_37, %c0_38] : memref<1x10x10x32xbf16, #tpu.memory_space<vmem>>, vector<1x8x8x32xbf16>
    %37 = vector.shape_cast %36 : vector<1x8x8x32xbf16> to vector<8x8x32xbf16>
    %38 = vector.shape_cast %37 : vector<8x8x32xbf16> to vector<64x32xbf16>
    %c5 = arith.constant 5 : index
    %c0_39 = arith.constant 0 : index
    %c0_40 = arith.constant 0 : index
    %39 = vector.load %arg2[%c5, %c0_39, %c0_40] : memref<9x32x32xbf16, #tpu.memory_space<vmem>>, vector<1x32x32xbf16>
    %40 = vector.shape_cast %39 : vector<1x32x32xbf16> to vector<32x32xbf16>
    %cst_41 = arith.constant dense<0.000000e+00> : vector<64x32xf32>
    %41 = tpu.matmul %38, %40, %cst_41 {dimension_numbers = #tpu.dot_dimension_numbers<[1], [0], [0], [1], [0, 0, 1, 1], [], []>} : vector<64x32xbf16>, vector<32x32xbf16>, vector<64x32xf32> -> vector<64x32xf32>
    %42 = arith.addf %35, %41 : vector<64x32xf32>
    %c0_42 = arith.constant 0 : index
    %c2_43 = arith.constant 2 : index
    %c0_44 = arith.constant 0 : index
    %c0_45 = arith.constant 0 : index
    %43 = vector.load %arg1[%c0_42, %c2_43, %c0_44, %c0_45] : memref<1x10x10x32xbf16, #tpu.memory_space<vmem>>, vector<1x8x8x32xbf16>
    %44 = vector.shape_cast %43 : vector<1x8x8x32xbf16> to vector<8x8x32xbf16>
    %45 = vector.shape_cast %44 : vector<8x8x32xbf16> to vector<64x32xbf16>
    %c6 = arith.constant 6 : index
    %c0_46 = arith.constant 0 : index
    %c0_47 = arith.constant 0 : index
    %46 = vector.load %arg2[%c6, %c0_46, %c0_47] : memref<9x32x32xbf16, #tpu.memory_space<vmem>>, vector<1x32x32xbf16>
    %47 = vector.shape_cast %46 : vector<1x32x32xbf16> to vector<32x32xbf16>
    %cst_48 = arith.constant dense<0.000000e+00> : vector<64x32xf32>
    %48 = tpu.matmul %45, %47, %cst_48 {dimension_numbers = #tpu.dot_dimension_numbers<[1], [0], [0], [1], [0, 0, 1, 1], [], []>} : vector<64x32xbf16>, vector<32x32xbf16>, vector<64x32xf32> -> vector<64x32xf32>
    %49 = arith.addf %42, %48 : vector<64x32xf32>
    %c0_49 = arith.constant 0 : index
    %c2_50 = arith.constant 2 : index
    %c1_51 = arith.constant 1 : index
    %c0_52 = arith.constant 0 : index
    %50 = vector.load %arg1[%c0_49, %c2_50, %c1_51, %c0_52] : memref<1x10x10x32xbf16, #tpu.memory_space<vmem>>, vector<1x8x8x32xbf16>
    %51 = vector.shape_cast %50 : vector<1x8x8x32xbf16> to vector<8x8x32xbf16>
    %52 = vector.shape_cast %51 : vector<8x8x32xbf16> to vector<64x32xbf16>
    %c7 = arith.constant 7 : index
    %c0_53 = arith.constant 0 : index
    %c0_54 = arith.constant 0 : index
    %53 = vector.load %arg2[%c7, %c0_53, %c0_54] : memref<9x32x32xbf16, #tpu.memory_space<vmem>>, vector<1x32x32xbf16>
    %54 = vector.shape_cast %53 : vector<1x32x32xbf16> to vector<32x32xbf16>
    %cst_55 = arith.constant dense<0.000000e+00> : vector<64x32xf32>
    %55 = tpu.matmul %52, %54, %cst_55 {dimension_numbers = #tpu.dot_dimension_numbers<[1], [0], [0], [1], [0, 0, 1, 1], [], []>} : vector<64x32xbf16>, vector<32x32xbf16>, vector<64x32xf32> -> vector<64x32xf32>
    %56 = arith.addf %49, %55 : vector<64x32xf32>
    %c0_56 = arith.constant 0 : index
    %c2_57 = arith.constant 2 : index
    %c2_58 = arith.constant 2 : index
    %c0_59 = arith.constant 0 : index
    %57 = vector.load %arg1[%c0_56, %c2_57, %c2_58, %c0_59] : memref<1x10x10x32xbf16, #tpu.memory_space<vmem>>, vector<1x8x8x32xbf16>
    %58 = vector.shape_cast %57 : vector<1x8x8x32xbf16> to vector<8x8x32xbf16>
    %59 = vector.shape_cast %58 : vector<8x8x32xbf16> to vector<64x32xbf16>
    %c8 = arith.constant 8 : index
    %c0_60 = arith.constant 0 : index
    %c0_61 = arith.constant 0 : index
    %60 = vector.load %arg2[%c8, %c0_60, %c0_61] : memref<9x32x32xbf16, #tpu.memory_space<vmem>>, vector<1x32x32xbf16>
    %61 = vector.shape_cast %60 : vector<1x32x32xbf16> to vector<32x32xbf16>
    %cst_62 = arith.constant dense<0.000000e+00> : vector<64x32xf32>
    %62 = tpu.matmul %59, %61, %cst_62 {dimension_numbers = #tpu.dot_dimension_numbers<[1], [0], [0], [1], [0, 0, 1, 1], [], []>} : vector<64x32xbf16>, vector<32x32xbf16>, vector<64x32xf32> -> vector<64x32xf32>
    %63 = arith.addf %56, %62 : vector<64x32xf32>
    %c0_63 = arith.constant 0 : index
    %c0_64 = arith.constant 0 : index
    %64 = vector.load %arg3[%c0_63, %c0_64] : memref<1x32xf32, #tpu.memory_space<vmem>>, vector<1x32xf32>
    %65 = vector.broadcast %64 : vector<1x32xf32> to vector<64x32xf32>
    %66 = arith.addf %63, %65 : vector<64x32xf32>
    %c0_65 = arith.constant 0 : index
    %c0_66 = arith.constant 0 : index
    %c0_67 = arith.constant 0 : index
    %c0_68 = arith.constant 0 : index
    %67 = vector.load %arg4[%c0_65, %c0_66, %c0_67, %c0_68] : memref<1x8x8x32xbf16, #tpu.memory_space<vmem>>, vector<1x8x8x32xbf16>
    %68 = vector.shape_cast %67 : vector<1x8x8x32xbf16> to vector<8x8x32xbf16>
    %69 = vector.shape_cast %68 : vector<8x8x32xbf16> to vector<64x32xbf16>
    %70 = arith.extf %69 : vector<64x32xbf16> to vector<64x32xf32>
    %71 = arith.addf %66, %70 : vector<64x32xf32>
    %72 = vector.shape_cast %71 : vector<64x32xf32> to vector<8x8x32xf32>
    %73 = arith.truncf %72 : vector<8x8x32xf32> to vector<8x8x32xbf16>
    %c0_69 = arith.constant 0 : index
    %c0_70 = arith.constant 0 : index
    %c0_71 = arith.constant 0 : index
    %c0_72 = arith.constant 0 : index
    %74 = vector.load %arg5[%c0_69, %c0_70, %c0_71, %c0_72] : memref<1x8x8x32xbf16, #tpu.memory_space<vmem>>, vector<1x8x8x32xbf16>
    %75 = vector.shape_cast %74 : vector<1x8x8x32xbf16> to vector<8x8x32xbf16>
    %76 = vector.shape_cast %73 : vector<8x8x32xbf16> to vector<1x8x8x32xbf16>
    tpu.vector_store %arg5[%c0_69, %c0_70, %c0_71, %c0_72], %76 {strides = array<i32>} : memref<1x8x8x32xbf16, #tpu.memory_space<vmem>>, vector<1x8x8x32xbf16>,
    return
  }
  func.func @transform_0(%arg0: i32) -> (i32, i32, i32, i32) {
    %c0_i32 = arith.constant 0 : i32
    %c0_i32_0 = arith.constant 0 : i32
    %c0_i32_1 = arith.constant 0 : i32
    %c0_i32_2 = arith.constant 0 : i32
    return %arg0, %c0_i32, %c0_i32_0, %c0_i32_1 : i32, i32, i32, i32
  }
  func.func @transform_1(%arg0: i32) -> (i32, i32, i32) {
    %c0_i32 = arith.constant 0 : i32
    %c0_i32_0 = arith.constant 0 : i32
    %c0_i32_1 = arith.constant 0 : i32
    %c0_i32_2 = arith.constant 0 : i32
    return %c0_i32, %c0_i32_0, %c0_i32_1 : i32, i32, i32
  }
  func.func @transform_2(%arg0: i32) -> (i32, i32) {
    %c0_i32 = arith.constant 0 : i32
    %c0_i32_0 = arith.constant 0 : i32
    %c0_i32_1 = arith.constant 0 : i32
    return %c0_i32, %c0_i32_0 : i32, i32
  }
  func.func @transform_3(%arg0: i32) -> (i32, i32, i32, i32) {
    %c0_i32 = arith.constant 0 : i32
    %c0_i32_0 = arith.constant 0 : i32
    %c0_i32_1 = arith.constant 0 : i32
    %c0_i32_2 = arith.constant 0 : i32
    return %arg0, %c0_i32, %c0_i32_0, %c0_i32_1 : i32, i32, i32, i32
  }
  func.func @transform_4(%arg0: i32) -> (i32, i32, i32, i32) {
    %c0_i32 = arith.constant 0 : i32
    %c0_i32_0 = arith.constant 0 : i32
    %c0_i32_1 = arith.constant 0 : i32
    %c0_i32_2 = arith.constant 0 : i32
    return %arg0, %c0_i32, %c0_i32_0, %c0_i32_1 : i32, i32, i32, i32
  }
}

module attributes {stable_mosaic.version = 11 : i64} {
  func.func @_conv_kernel(%arg0: i32, %arg1: memref<1x10x10x32xbf16, #tpu.memory_space<vmem>>, %arg2: memref<9x32x12xbf16, #tpu.memory_space<vmem>>, %arg3: memref<1x12xf32, #tpu.memory_space<vmem>>, %arg4: memref<1x8x8x12xf32, #tpu.memory_space<vmem>>) attributes {dimension_semantics = [#tpu.dimension_semantics<parallel>], iteration_bounds = array<i64: 2>, scalar_prefetch = 0 : i64, scratch_operands = 0 : i64, tpu.core_type = #tpu.core_type<tc>, window_params = [{transform_indices = @transform_0, window_bounds = array<i64: 1, 10, 10, 32>}, {pipeline_mode = #tpu.pipeline_mode<synchronous>, transform_indices = @transform_1, window_bounds = array<i64: 9, 32, 12>}, {pipeline_mode = #tpu.pipeline_mode<synchronous>, transform_indices = @transform_2, window_bounds = array<i64: 1, 12>}, {transform_indices = @transform_3, window_bounds = array<i64: 1, 8, 8, 12>}]} {
    %cst = arith.constant 0.000000e+00 : f32
    %0 = vector.broadcast %cst : f32 to vector<64x12xf32>
    %c0 = arith.constant 0 : index
    %c0_0 = arith.constant 0 : index
    %c0_1 = arith.constant 0 : index
    %c0_2 = arith.constant 0 : index
    %1 = vector.load %arg1[%c0, %c0_0, %c0_1, %c0_2] : memref<1x10x10x32xbf16, #tpu.memory_space<vmem>>, vector<1x8x8x32xbf16>
    %2 = vector.shape_cast %1 : vector<1x8x8x32xbf16> to vector<8x8x32xbf16>
    %3 = vector.shape_cast %2 : vector<8x8x32xbf16> to vector<64x32xbf16>
    %c0_3 = arith.constant 0 : index
    %c0_4 = arith.constant 0 : index
    %c0_5 = arith.constant 0 : index
    %4 = vector.load %arg2[%c0_3, %c0_4, %c0_5] : memref<9x32x12xbf16, #tpu.memory_space<vmem>>, vector<1x32x12xbf16>
    %5 = vector.shape_cast %4 : vector<1x32x12xbf16> to vector<32x12xbf16>
    %cst_6 = arith.constant dense<0.000000e+00> : vector<64x12xf32>
    %6 = tpu.matmul %3, %5, %cst_6 {dimension_numbers = #tpu.dot_dimension_numbers<[1], [0], [0], [1], [0, 0, 1, 1], [], []>} : vector<64x32xbf16>, vector<32x12xbf16>, vector<64x12xf32> -> vector<64x12xf32>
    %7 = arith.addf %0, %6 : vector<64x12xf32>
    %c0_7 = arith.constant 0 : index
    %c0_8 = arith.constant 0 : index
    %c1 = arith.constant 1 : index
    %c0_9 = arith.constant 0 : index
    %8 = vector.load %arg1[%c0_7, %c0_8, %c1, %c0_9] : memref<1x10x10x32xbf16, #tpu.memory_space<vmem>>, vector<1x8x8x32xbf16>
    %9 = vector.shape_cast %8 : vector<1x8x8x32xbf16> to vector<8x8x32xbf16>
    %10 = vector.shape_cast %9 : vector<8x8x32xbf16> to vector<64x32xbf16>
    %c1_10 = arith.constant 1 : index
    %c0_11 = arith.constant 0 : index
    %c0_12 = arith.constant 0 : index
    %11 = vector.load %arg2[%c1_10, %c0_11, %c0_12] : memref<9x32x12xbf16, #tpu.memory_space<vmem>>, vector<1x32x12xbf16>
    %12 = vector.shape_cast %11 : vector<1x32x12xbf16> to vector<32x12xbf16>
    %cst_13 = arith.constant dense<0.000000e+00> : vector<64x12xf32>
    %13 = tpu.matmul %10, %12, %cst_13 {dimension_numbers = #tpu.dot_dimension_numbers<[1], [0], [0], [1], [0, 0, 1, 1], [], []>} : vector<64x32xbf16>, vector<32x12xbf16>, vector<64x12xf32> -> vector<64x12xf32>
    %14 = arith.addf %7, %13 : vector<64x12xf32>
    %c0_14 = arith.constant 0 : index
    %c0_15 = arith.constant 0 : index
    %c2 = arith.constant 2 : index
    %c0_16 = arith.constant 0 : index
    %15 = vector.load %arg1[%c0_14, %c0_15, %c2, %c0_16] : memref<1x10x10x32xbf16, #tpu.memory_space<vmem>>, vector<1x8x8x32xbf16>
    %16 = vector.shape_cast %15 : vector<1x8x8x32xbf16> to vector<8x8x32xbf16>
    %17 = vector.shape_cast %16 : vector<8x8x32xbf16> to vector<64x32xbf16>
    %c2_17 = arith.constant 2 : index
    %c0_18 = arith.constant 0 : index
    %c0_19 = arith.constant 0 : index
    %18 = vector.load %arg2[%c2_17, %c0_18, %c0_19] : memref<9x32x12xbf16, #tpu.memory_space<vmem>>, vector<1x32x12xbf16>
    %19 = vector.shape_cast %18 : vector<1x32x12xbf16> to vector<32x12xbf16>
    %cst_20 = arith.constant dense<0.000000e+00> : vector<64x12xf32>
    %20 = tpu.matmul %17, %19, %cst_20 {dimension_numbers = #tpu.dot_dimension_numbers<[1], [0], [0], [1], [0, 0, 1, 1], [], []>} : vector<64x32xbf16>, vector<32x12xbf16>, vector<64x12xf32> -> vector<64x12xf32>
    %21 = arith.addf %14, %20 : vector<64x12xf32>
    %c0_21 = arith.constant 0 : index
    %c1_22 = arith.constant 1 : index
    %c0_23 = arith.constant 0 : index
    %c0_24 = arith.constant 0 : index
    %22 = vector.load %arg1[%c0_21, %c1_22, %c0_23, %c0_24] : memref<1x10x10x32xbf16, #tpu.memory_space<vmem>>, vector<1x8x8x32xbf16>
    %23 = vector.shape_cast %22 : vector<1x8x8x32xbf16> to vector<8x8x32xbf16>
    %24 = vector.shape_cast %23 : vector<8x8x32xbf16> to vector<64x32xbf16>
    %c3 = arith.constant 3 : index
    %c0_25 = arith.constant 0 : index
    %c0_26 = arith.constant 0 : index
    %25 = vector.load %arg2[%c3, %c0_25, %c0_26] : memref<9x32x12xbf16, #tpu.memory_space<vmem>>, vector<1x32x12xbf16>
    %26 = vector.shape_cast %25 : vector<1x32x12xbf16> to vector<32x12xbf16>
    %cst_27 = arith.constant dense<0.000000e+00> : vector<64x12xf32>
    %27 = tpu.matmul %24, %26, %cst_27 {dimension_numbers = #tpu.dot_dimension_numbers<[1], [0], [0], [1], [0, 0, 1, 1], [], []>} : vector<64x32xbf16>, vector<32x12xbf16>, vector<64x12xf32> -> vector<64x12xf32>
    %28 = arith.addf %21, %27 : vector<64x12xf32>
    %c0_28 = arith.constant 0 : index
    %c1_29 = arith.constant 1 : index
    %c1_30 = arith.constant 1 : index
    %c0_31 = arith.constant 0 : index
    %29 = vector.load %arg1[%c0_28, %c1_29, %c1_30, %c0_31] : memref<1x10x10x32xbf16, #tpu.memory_space<vmem>>, vector<1x8x8x32xbf16>
    %30 = vector.shape_cast %29 : vector<1x8x8x32xbf16> to vector<8x8x32xbf16>
    %31 = vector.shape_cast %30 : vector<8x8x32xbf16> to vector<64x32xbf16>
    %c4 = arith.constant 4 : index
    %c0_32 = arith.constant 0 : index
    %c0_33 = arith.constant 0 : index
    %32 = vector.load %arg2[%c4, %c0_32, %c0_33] : memref<9x32x12xbf16, #tpu.memory_space<vmem>>, vector<1x32x12xbf16>
    %33 = vector.shape_cast %32 : vector<1x32x12xbf16> to vector<32x12xbf16>
    %cst_34 = arith.constant dense<0.000000e+00> : vector<64x12xf32>
    %34 = tpu.matmul %31, %33, %cst_34 {dimension_numbers = #tpu.dot_dimension_numbers<[1], [0], [0], [1], [0, 0, 1, 1], [], []>} : vector<64x32xbf16>, vector<32x12xbf16>, vector<64x12xf32> -> vector<64x12xf32>
    %35 = arith.addf %28, %34 : vector<64x12xf32>
    %c0_35 = arith.constant 0 : index
    %c1_36 = arith.constant 1 : index
    %c2_37 = arith.constant 2 : index
    %c0_38 = arith.constant 0 : index
    %36 = vector.load %arg1[%c0_35, %c1_36, %c2_37, %c0_38] : memref<1x10x10x32xbf16, #tpu.memory_space<vmem>>, vector<1x8x8x32xbf16>
    %37 = vector.shape_cast %36 : vector<1x8x8x32xbf16> to vector<8x8x32xbf16>
    %38 = vector.shape_cast %37 : vector<8x8x32xbf16> to vector<64x32xbf16>
    %c5 = arith.constant 5 : index
    %c0_39 = arith.constant 0 : index
    %c0_40 = arith.constant 0 : index
    %39 = vector.load %arg2[%c5, %c0_39, %c0_40] : memref<9x32x12xbf16, #tpu.memory_space<vmem>>, vector<1x32x12xbf16>
    %40 = vector.shape_cast %39 : vector<1x32x12xbf16> to vector<32x12xbf16>
    %cst_41 = arith.constant dense<0.000000e+00> : vector<64x12xf32>
    %41 = tpu.matmul %38, %40, %cst_41 {dimension_numbers = #tpu.dot_dimension_numbers<[1], [0], [0], [1], [0, 0, 1, 1], [], []>} : vector<64x32xbf16>, vector<32x12xbf16>, vector<64x12xf32> -> vector<64x12xf32>
    %42 = arith.addf %35, %41 : vector<64x12xf32>
    %c0_42 = arith.constant 0 : index
    %c2_43 = arith.constant 2 : index
    %c0_44 = arith.constant 0 : index
    %c0_45 = arith.constant 0 : index
    %43 = vector.load %arg1[%c0_42, %c2_43, %c0_44, %c0_45] : memref<1x10x10x32xbf16, #tpu.memory_space<vmem>>, vector<1x8x8x32xbf16>
    %44 = vector.shape_cast %43 : vector<1x8x8x32xbf16> to vector<8x8x32xbf16>
    %45 = vector.shape_cast %44 : vector<8x8x32xbf16> to vector<64x32xbf16>
    %c6 = arith.constant 6 : index
    %c0_46 = arith.constant 0 : index
    %c0_47 = arith.constant 0 : index
    %46 = vector.load %arg2[%c6, %c0_46, %c0_47] : memref<9x32x12xbf16, #tpu.memory_space<vmem>>, vector<1x32x12xbf16>
    %47 = vector.shape_cast %46 : vector<1x32x12xbf16> to vector<32x12xbf16>
    %cst_48 = arith.constant dense<0.000000e+00> : vector<64x12xf32>
    %48 = tpu.matmul %45, %47, %cst_48 {dimension_numbers = #tpu.dot_dimension_numbers<[1], [0], [0], [1], [0, 0, 1, 1], [], []>} : vector<64x32xbf16>, vector<32x12xbf16>, vector<64x12xf32> -> vector<64x12xf32>
    %49 = arith.addf %42, %48 : vector<64x12xf32>
    %c0_49 = arith.constant 0 : index
    %c2_50 = arith.constant 2 : index
    %c1_51 = arith.constant 1 : index
    %c0_52 = arith.constant 0 : index
    %50 = vector.load %arg1[%c0_49, %c2_50, %c1_51, %c0_52] : memref<1x10x10x32xbf16, #tpu.memory_space<vmem>>, vector<1x8x8x32xbf16>
    %51 = vector.shape_cast %50 : vector<1x8x8x32xbf16> to vector<8x8x32xbf16>
    %52 = vector.shape_cast %51 : vector<8x8x32xbf16> to vector<64x32xbf16>
    %c7 = arith.constant 7 : index
    %c0_53 = arith.constant 0 : index
    %c0_54 = arith.constant 0 : index
    %53 = vector.load %arg2[%c7, %c0_53, %c0_54] : memref<9x32x12xbf16, #tpu.memory_space<vmem>>, vector<1x32x12xbf16>
    %54 = vector.shape_cast %53 : vector<1x32x12xbf16> to vector<32x12xbf16>
    %cst_55 = arith.constant dense<0.000000e+00> : vector<64x12xf32>
    %55 = tpu.matmul %52, %54, %cst_55 {dimension_numbers = #tpu.dot_dimension_numbers<[1], [0], [0], [1], [0, 0, 1, 1], [], []>} : vector<64x32xbf16>, vector<32x12xbf16>, vector<64x12xf32> -> vector<64x12xf32>
    %56 = arith.addf %49, %55 : vector<64x12xf32>
    %c0_56 = arith.constant 0 : index
    %c2_57 = arith.constant 2 : index
    %c2_58 = arith.constant 2 : index
    %c0_59 = arith.constant 0 : index
    %57 = vector.load %arg1[%c0_56, %c2_57, %c2_58, %c0_59] : memref<1x10x10x32xbf16, #tpu.memory_space<vmem>>, vector<1x8x8x32xbf16>
    %58 = vector.shape_cast %57 : vector<1x8x8x32xbf16> to vector<8x8x32xbf16>
    %59 = vector.shape_cast %58 : vector<8x8x32xbf16> to vector<64x32xbf16>
    %c8 = arith.constant 8 : index
    %c0_60 = arith.constant 0 : index
    %c0_61 = arith.constant 0 : index
    %60 = vector.load %arg2[%c8, %c0_60, %c0_61] : memref<9x32x12xbf16, #tpu.memory_space<vmem>>, vector<1x32x12xbf16>
    %61 = vector.shape_cast %60 : vector<1x32x12xbf16> to vector<32x12xbf16>
    %cst_62 = arith.constant dense<0.000000e+00> : vector<64x12xf32>
    %62 = tpu.matmul %59, %61, %cst_62 {dimension_numbers = #tpu.dot_dimension_numbers<[1], [0], [0], [1], [0, 0, 1, 1], [], []>} : vector<64x32xbf16>, vector<32x12xbf16>, vector<64x12xf32> -> vector<64x12xf32>
    %63 = arith.addf %56, %62 : vector<64x12xf32>
    %c0_63 = arith.constant 0 : index
    %c0_64 = arith.constant 0 : index
    %64 = vector.load %arg3[%c0_63, %c0_64] : memref<1x12xf32, #tpu.memory_space<vmem>>, vector<1x12xf32>
    %65 = vector.broadcast %64 : vector<1x12xf32> to vector<64x12xf32>
    %66 = arith.addf %63, %65 : vector<64x12xf32>
    %67 = vector.shape_cast %66 : vector<64x12xf32> to vector<8x8x12xf32>
    %c0_65 = arith.constant 0 : index
    %c0_66 = arith.constant 0 : index
    %c0_67 = arith.constant 0 : index
    %c0_68 = arith.constant 0 : index
    %68 = vector.load %arg4[%c0_65, %c0_66, %c0_67, %c0_68] : memref<1x8x8x12xf32, #tpu.memory_space<vmem>>, vector<1x8x8x12xf32>
    %69 = vector.shape_cast %68 : vector<1x8x8x12xf32> to vector<8x8x12xf32>
    %70 = vector.shape_cast %67 : vector<8x8x12xf32> to vector<1x8x8x12xf32>
    tpu.vector_store %arg4[%c0_65, %c0_66, %c0_67, %c0_68], %70 {strides = array<i32>} : memref<1x8x8x12xf32, #tpu.memory_space<vmem>>, vector<1x8x8x12xf32>,
    return
  }
  func.func @transform_0(%arg0: i32) -> (i32, i32, i32, i32) {
    %c0_i32 = arith.constant 0 : i32
    %c0_i32_0 = arith.constant 0 : i32
    %c0_i32_1 = arith.constant 0 : i32
    %c0_i32_2 = arith.constant 0 : i32
    return %arg0, %c0_i32, %c0_i32_0, %c0_i32_1 : i32, i32, i32, i32
  }
  func.func @transform_1(%arg0: i32) -> (i32, i32, i32) {
    %c0_i32 = arith.constant 0 : i32
    %c0_i32_0 = arith.constant 0 : i32
    %c0_i32_1 = arith.constant 0 : i32
    %c0_i32_2 = arith.constant 0 : i32
    return %c0_i32, %c0_i32_0, %c0_i32_1 : i32, i32, i32
  }
  func.func @transform_2(%arg0: i32) -> (i32, i32) {
    %c0_i32 = arith.constant 0 : i32
    %c0_i32_0 = arith.constant 0 : i32
    %c0_i32_1 = arith.constant 0 : i32
    return %c0_i32, %c0_i32_0 : i32, i32
  }
  func.func @transform_3(%arg0: i32) -> (i32, i32, i32, i32) {
    %c0_i32 = arith.constant 0 : i32
    %c0_i32_0 = arith.constant 0 : i32
    %c0_i32_1 = arith.constant 0 : i32
    %c0_i32_2 = arith.constant 0 : i32
    return %arg0, %c0_i32, %c0_i32_0, %c0_i32_1 : i32, i32, i32, i32
  }
}

</mosaic_0001>

<llo_original>
// kernel: _lambda_.5
$region0: #{_lambda_.5}
  #allocation0 [shape = 'u32[]', space=smem, size = 0x4, offset = 0x4, fixed_abs, tag = 'smem constant byte address 0x4 - core index']
  #allocation1 [shape = 'u32[144,128]{1,0:T(1,128)}', space=vmem, size = 0x12000, scoped, tag = 'internal scratch']
  %s0 = inlined_call_operand.vmem [shape: f32[1,512], index: 0, kind: input, shape index: {}]
  %s1 = inlined_call_operand.vmem [shape: f32[1,512], index: 1, kind: output, shape index: {}]
  %s2 = sld [smem:[#allocation0]]
  $region14: #{_lambda_.5} parent=0
    _
  %s4 = ssub.s32 1, %s2
  %s5 = scalar_select 0, %s4, %s2
  // Predicated region
  $region2: #{_lambda_.5} parent=0 // pred_check
    _
  $region3: #{_lambda_.5} parent=0 // pred_check_branch
    %7 = sbr.rel (0) target = $region5
  $region4: #{_lambda_.5} parent=0 // pred_region
    _
  $region5: #{_lambda_.5} parent=0 // pred_fallthru
    _
  %v8 = vld [vmem:[%s0] sm:$0xf]
  %v9 = vmul.f32 %v8, 0.5
  %v10 = vadd.f32 %v9, 0.5
  %v11 = vmax.f32 %v10, 0.0
  %v12 = vmin.f32 %v11, 1.0
  %v13 = vmul.f32 %v12, 255.0
  %v14 = vround.ne.pseudo %v13
  %v15 = vmul.f32 %v14, 0.007843138
  %v16 = vsub.f32 %v15, 1.0
  %v17 = vlaneseq
  %vm18 = vcmp.ge.s32.totalorder %v17, 0
  %vm19 = vcmp.lt.s32.totalorder %v17, 512
  %vm20 = vmand %vm18, %vm19
  %21 = vst.msk [vmem:[%s1] sm:$0xf] %vm20, %v16
  // Predicated region
  $region6: #{_lambda_.5} parent=0 // pred_check
    _
  $region7: #{_lambda_.5} parent=0 // pred_check_branch
    %23 = sbr.rel (0) target = $region9
  $region8: #{_lambda_.5} parent=0 // pred_region
    _
  $region9: #{_lambda_.5} parent=0 // pred_fallthru
    _
  // Predicated region
  $region10: #{_lambda_.5} parent=0 // pred_check
    _
  $region11: #{_lambda_.5} parent=0 // pred_check_branch
    %25 = sbr.rel (0) target = $region13
  $region12: #{_lambda_.5} parent=0 // pred_region
    _
  $region13: #{_lambda_.5} parent=0 // pred_fallthru
    _

// kernel: _lambda_.7
$region0: #{_lambda_.7}
  #allocation0 [shape = 'u32[]', space=smem, size = 0x4, offset = 0x4, fixed_abs, tag = 'smem constant byte address 0x4 - core index']
  #allocation1 [shape = 'u32[144,128]{1,0:T(1,128)}', space=vmem, size = 0x12000, scoped, tag = 'internal scratch']
  %s0 = inlined_call_operand.vmem [shape: bf16[2,8,8,32], index: 0, kind: input, shape index: {}]
  %s1 = inlined_call_operand.vmem [shape: bf16[2,32,32], index: 1, kind: input, shape index: {}]
  %s2 = inlined_call_operand.vmem [shape: f32[2,1,32], index: 2, kind: input, shape index: {}]
  %s3 = inlined_call_operand.vmem [shape: bf16[2,8,8,32], index: 3, kind: output, shape index: {}]
  %s4 = sld [smem:[#allocation0]]
  $region45: #{_lambda_.7} parent=0
    _
  %s6 = ssub.s32 1, %s4
  %s7 = scalar_select 0, %s6, %s4
  loop: start=0, step=1, limit=4
  $region2: #{_lambda_.7} parent=0 // loop_pre_header
    _
  $region3: #{_lambda_.7} parent=0 // loop_header
    %s9 = sphi 0, %s13
    %p10 = scmp.ge.s32.totalorder %s9, 4
    %s19 = sphi 0, %s21
    %s22 = sphi 0, %s19
    %s23 = sphi 0, %s22
    %s39 = sphi 0, %s23
    %s43 = sphi 0, %s43
    %s45 = sphi 0, %s43
    %s46 = sphi 0, %s45
    %s60 = sphi 0, %s46
    %s64 = sphi 0, %s64
    %s66 = sphi 0, %s64
    %s67 = sphi 0, %s66
    %s81 = sphi 0, %s67
    %s87 = sphi 0, %s89
    %s90 = sphi 0, %s87
    %s91 = sphi 0, %s90
    %s107 = sphi 0, %s91
  $region4: #{_lambda_.7} parent=0 // loop_header_branch
    %12 = sbr.rel (%p10) target = $region8
  $region5: #{_lambda_.7} parent=0 // loop_body
    %s14 = ssub.s32 %s9, 1
    %s15 = ssub.s32 %s9, 2
    %s16 = sadd.s32 %s9, 1
    %s17 = ssub.s32 %s9, %s16
    %p18 = scmp.eq.s32.totalorder %s17, 0
    %s20 = sadd.s32 %s19, 1
    %s21 = scalar_select %p18, %s19, %s20
    %p24 = pneg %p18
    %p25 = scmp.eq.s32.totalorder %s9, 1
    %p26 = por %p24, %p25
    %p27 = scmp.ne.s32.totalorder %s19, %s22
    %p28 = scmp.eq.s32.totalorder %s9, 0
    %p29 = por %p27, %p28
    %p30 = scmp.ne.s32.totalorder %s19, %s22
    %p31 = scmp.eq.s32.totalorder %s14, 1
    %p32 = por %p30, %p31
    %p33 = scmp.ne.s32.totalorder %s22, %s23
    %p34 = scmp.eq.s32.totalorder %s14, 0
    %p35 = por %p33, %p34
    %p36 = scmp.ne.s32.totalorder %s22, %s23
    %p37 = scmp.eq.s32.totalorder %s15, 1
    %p38 = por %p36, %p37
    %p40 = scmp.ne.s32.totalorder %s23, %s39
    %p41 = scmp.eq.s32.totalorder %s15, 0
    %p42 = por %p40, %p41
    %s44 = sadd.s32 %s43, 1
    %p47 = scmp.eq.s32.totalorder %s9, 1
    %p48 = scmp.ne.s32.totalorder %s43, %s45
    %p49 = scmp.eq.s32.totalorder %s9, 0
    %p50 = por %p48, %p49
    %p51 = scmp.ne.s32.totalorder %s43, %s45
    %p52 = scmp.eq.s32.totalorder %s14, 1
    %p53 = por %p51, %p52
    %p54 = scmp.ne.s32.totalorder %s45, %s46
    %p55 = scmp.eq.s32.totalorder %s14, 0
    %p56 = por %p54, %p55
    %p57 = scmp.ne.s32.totalorder %s45, %s46
    %p58 = scmp.eq.s32.totalorder %s15, 1
    %p59 = por %p57, %p58
    %p61 = scmp.ne.s32.totalorder %s46, %s60
    %p62 = scmp.eq.s32.totalorder %s15, 0
    %p63 = por %p61, %p62
    %s65 = sadd.s32 %s64, 1
    %p68 = scmp.eq.s32.totalorder %s9, 1
    %p69 = scmp.ne.s32.totalorder %s64, %s66
    %p70 = scmp.eq.s32.totalorder %s9, 0
    %p71 = por %p69, %p70
    %p72 = scmp.ne.s32.totalorder %s64, %s66
    %p73 = scmp.eq.s32.totalorder %s14, 1
    %p74 = por %p72, %p73
    %p75 = scmp.ne.s32.totalorder %s66, %s67
    %p76 = scmp.eq.s32.totalorder %s14, 0
    %p77 = por %p75, %p76
    %p78 = scmp.ne.s32.totalorder %s66, %s67
    %p79 = scmp.eq.s32.totalorder %s15, 1
    %p80 = por %p78, %p79
    %p82 = scmp.ne.s32.totalorder %s67, %s81
    %p83 = scmp.eq.s32.totalorder %s15, 0
    %p84 = por %p82, %p83
    %s85 = ssub.s32 %s9, %s16
    %p86 = scmp.eq.s32.totalorder %s85, 0
    %s88 = sadd.s32 %s87, 1
    %s89 = scalar_select %p86, %s87, %s88
    %p92 = pneg %p86
    %p93 = scmp.eq.s32.totalorder %s9, 1
    %p94 = por %p92, %p93
    %p95 = scmp.ne.s32.totalorder %s87, %s90
    %p96 = scmp.eq.s32.totalorder %s9, 0
    %p97 = por %p95, %p96
    %p98 = scmp.ne.s32.totalorder %s87, %s90
    %p99 = scmp.eq.s32.totalorder %s14, 1
    %p100 = por %p98, %p99
    %p101 = scmp.ne.s32.totalorder %s90, %s91
    %p102 = scmp.eq.s32.totalorder %s14, 0
    %p103 = por %p101, %p102
    %p104 = scmp.ne.s32.totalorder %s90, %s91
    %p105 = scmp.eq.s32.totalorder %s15, 1
    %p106 = por %p104, %p105
    %p108 = scmp.ne.s32.totalorder %s91, %s107
    %p109 = scmp.eq.s32.totalorder %s15, 0
    %p110 = por %p108, %p109
    %p111 = scmp.le.s32.totalorder 1, %s9
    %p112 = scmp.lt.s32.totalorder %s9, 3
    %p113 = pnand %p111, %p112
    %p114 = pneg %p113
    // Predicated region
    $region9: #{_lambda_.7} parent=5 // pred_check
      _
    $region10: #{_lambda_.7} parent=5 // pred_check_branch
      %116 = sbr.rel (%p113) target = $region12
    $region11: #{_lambda_.7} parent=5 // pred_region
      %s117 = ssub.s32 %s9, 1
      // Predicated region
      $region13: #{_lambda_.7} parent=11 // pred_check
        %p118 = pneg %p56
      $region14: #{_lambda_.7} parent=11 // pred_check_branch
        %120 = sbr.rel (%p118) target = $region16
      $region15: #{_lambda_.7} parent=11 // pred_region
        _
      $region16: #{_lambda_.7} parent=11 // pred_fallthru
        _
      // Predicated region
      $region17: #{_lambda_.7} parent=11 // pred_check
        %p121 = pneg %p77
      $region18: #{_lambda_.7} parent=11 // pred_check_branch
        %123 = sbr.rel (%p121) target = $region20
      $region19: #{_lambda_.7} parent=11 // pred_region
        _
      $region20: #{_lambda_.7} parent=11 // pred_fallthru
        _
    $region12: #{_lambda_.7} parent=5 // pred_fallthru
      _
    %p124 = scmp.lt.s32.totalorder %s9, 2
    // Predicated region
    $region21: #{_lambda_.7} parent=5 // pred_check
      %p125 = pneg %p124
    $region22: #{_lambda_.7} parent=5 // pred_check_branch
      %127 = sbr.rel (%p125) target = $region24
    $region23: #{_lambda_.7} parent=5 // pred_region
      // Predicated region
      $region25: #{_lambda_.7} parent=23 // pred_check
        %p128 = pneg %p29
      $region26: #{_lambda_.7} parent=23 // pred_check_branch
        %130 = sbr.rel (%p128) target = $region28
      $region27: #{_lambda_.7} parent=23 // pred_region
        %p131 = scmp.lt.s32.totalorder %s9, 1
        %s132 = scalar_select %p131, %s9, 1
        %s133 = smul.addr %s132, 8
        %s134 = smul.addr %s133, 4
        %s135 = scalar_lea.vmem %s0, %s134
      $region28: #{_lambda_.7} parent=23 // pred_fallthru
        _
    $region24: #{_lambda_.7} parent=5 // pred_fallthru
      _
    %p136 = scmp.le.s32.totalorder 1, %s9
    %p137 = scmp.lt.s32.totalorder %s9, 3
    %p138 = pnand %p136, %p137
    %p139 = pneg %p138
    // Predicated region
    $region29: #{_lambda_.7} parent=5 // pred_check
      _
    $region30: #{_lambda_.7} parent=5 // pred_check_branch
      %141 = sbr.rel (%p138) target = $region32
    $region31: #{_lambda_.7} parent=5 // pred_region
      %s142 = ssub.s32 %s9, 1
      %p143 = scmp.lt.s32.totalorder %s14, 1
      %s144 = scalar_select %p143, %s14, 1
      %s145 = smul.addr %s144, 8
      %s146 = smul.addr %s145, 4
      %s147 = scalar_lea.vmem %s0, %s146
      %p148 = pneg %p35
      %p149 = pneg %p32
      %p150 = pneg %p56
      %p151 = pneg %p53
      %p152 = pneg %p77
      %p153 = pneg %p74
      %p154 = pneg %p103
      %p155 = pneg %p100
      %p156 = scmp.lt.s32.totalorder %s14, 1
      %s157 = scalar_select %p156, %s14, 1
      %s158 = smul.addr %s157, 8
      %s159 = smul.addr %s158, 4
      %s160 = scalar_lea.vmem %s3, %s159
      %p161 = scmp.lt.s32.totalorder %s14, 1
      %s162 = scalar_select %p161, %s14, 1
      %s163 = smul.addr %s162, 8
      %s164 = smul.addr %s163, 4
      %s165 = scalar_lea.vmem %s0, %s164
      %p166 = scmp.lt.s32.totalorder %s14, 1
      %s167 = scalar_select %p166, %s14, 1
      %s168 = smul.addr %s167, 8
      %s169 = smul.addr %s168, 4
      %s170 = scalar_lea.vmem %s3, %s169
      %v172 = vld [vmem:[%s165] sm:$0xf]
      %v173 = vld [vmem:[%s165 + $0x4] sm:$0xf]
      %v174 = vld [vmem:[%s165 + $0x8] sm:$0xf]
      %v175 = vld [vmem:[%s165 + $0xc] sm:$0xf]
      %v176 = vld [vmem:[%s165 + $0x10] sm:$0xf]
      %v177 = vld [vmem:[%s165 + $0x14] sm:$0xf]
      %v178 = vld [vmem:[%s165 + $0x18] sm:$0xf]
      %v179 = vld [vmem:[%s165 + $0x1c] sm:$0xf]
      %v180 = vunpack.c.l.bf16 %v172
      %v181 = vunpack.c.l.bf16 %v173
      %v182 = vunpack.c.l.bf16 %v174
      %v183 = vunpack.c.l.bf16 %v175
      %v184 = vunpack.c.l.bf16 %v176
      %v185 = vunpack.c.l.bf16 %v177
      %v186 = vunpack.c.l.bf16 %v178
      %v187 = vunpack.c.l.bf16 %v179
      %v188 = vld [vmem:[%s1] sm:$0xf]
      %v189 = vld [vmem:[%s1 + $0x4] sm:$0xf]
      %v190 = vld [vmem:[%s1 + $0x8] sm:$0xf]
      %v191 = vld [vmem:[%s1 + $0xc] sm:$0xf]
      %v200 = vunpack.c.l.b16 %v172
      %v201 = vunpack.c.l.b16 %v173
      %v202 = vunpack.c.l.b16 %v174
      %v203 = vunpack.c.l.b16 %v175
      %v204 = vunpack.c.l.b16 %v176
      %v205 = vunpack.c.l.b16 %v177
      %v206 = vunpack.c.l.b16 %v178
      %v207 = vunpack.c.l.b16 %v179
      %v208 = vpack.c.b16 %v201, %v200
      %v209 = vpack.c.b16 %v203, %v202
      %v210 = vpack.c.b16 %v205, %v204
      %v211 = vpack.c.b16 %v207, %v206
      %v216 = vunpack.c.l.b16 %v188
      %v217 = vunpack.c.l.b16 %v189
      %v218 = vunpack.c.l.b16 %v190
      %v219 = vunpack.c.l.b16 %v191
      %v220 = vpack.c.b16 %v217, %v216
      %v221 = vpack.c.b16 %v219, %v218
      %vm224 = vcmask 261120
      %v226 = vsel %vm224, %v208, 0
      %v229 = vsel %vm224, %v209, 0
      %v232 = vsel %vm224, %v210, 0
      %v235 = vsel %vm224, %v211, 0
      %237 = vmatprep.subr.bf16.mxu0 0
      %238 = vmatpush1.bf16.msra.mxu0 0
      %239 = vmatprep.subr.bf16.mxu0 0
      %240 = vmatpush1.bf16.msra.mxu0 0
      %241 = vmatprep.subr.bf16.mxu0 0
      %242 = vmatpush1.bf16.msra.mxu0 0
      %243 = vmatprep.subr.bf16.mxu0 0
      %244 = vmatpush1.bf16.msra.mxu0 0
      %245 = vmatprep.subr.bf16.mxu0 0
      %246 = vmatpush1.bf16.msra.mxu0 0
      %247 = vmatprep.subr.bf16.mxu0 0
      %248 = vmatpush1.bf16.msra.mxu0 0
      %249 = vmatprep.subr.bf16.mxu0 0
      %250 = vmatpush1.bf16.msra.mxu0 %v221
      %251 = vmatprep.subr.bf16.mxu0 0
      %252 = vmatpush1.bf16.msra.mxu0 %v220
      %253 = vmatprep.subr.bf16.mxu0 0
      %254 = vmatpush2.bf16.msra.mxu0 0
      %255 = vmatprep.subr.bf16.mxu0 0
      %256 = vmatpush2.bf16.msra.mxu0 0
      %257 = vmatprep.subr.bf16.mxu0 0
      %258 = vmatpush2.bf16.msra.mxu0 0
      %259 = vmatprep.subr.bf16.mxu0 0
      %260 = vmatpush2.bf16.msra.mxu0 0
      %261 = vmatprep.subr.bf16.mxu0 0
      %262 = vmatpush2.bf16.msra.mxu0 0
      %263 = vmatprep.subr.bf16.mxu0 0
      %264 = vmatpush2.bf16.msra.mxu0 0
      %265 = vmatprep.subr.bf16.mxu0 0
      %266 = vmatpush2.bf16.msra.mxu0 0
      %267 = vmatprep.subr.bf16.mxu0 0
      %268 = vmatpush2.bf16.msra.mxu0 0
      %269 = vmatprep.mubr.bf16.mxu0 0
      %270 = vmatmul.mubr.bf16.gmra.mxu0 %v226
      %v271 = vpop.f32.mrf.mxu0
      %v272 = vadd.f32 0.0, %v271
      %v273 = vpop.f32.mrf.mxu0
      %v274 = vpop.f32.mrf.mxu0
      %v275 = vadd.f32 0.0, %v274
      %v276 = vpop.f32.mrf.mxu0
      %277 = vmatprep.mubr.bf16.mxu0 0
      %278 = vmatmul.mubr.bf16.gmra.mxu0 %v229
      %v279 = vpop.f32.mrf.mxu0
      %v280 = vadd.f32 0.0, %v279
      %v281 = vpop.f32.mrf.mxu0
      %v282 = vpop.f32.mrf.mxu0
      %v283 = vadd.f32 0.0, %v282
      %v284 = vpop.f32.mrf.mxu0
      %285 = vmatprep.mubr.bf16.mxu0 0
      %286 = vmatmul.mubr.bf16.gmra.mxu0 %v232
      %v287 = vpop.f32.mrf.mxu0
      %v288 = vadd.f32 0.0, %v287
      %v289 = vpop.f32.mrf.mxu0
      %v290 = vpop.f32.mrf.mxu0
      %v291 = vadd.f32 0.0, %v290
      %v292 = vpop.f32.mrf.mxu0
      %293 = vmatprep.mubr.bf16.mxu0 0
      %294 = vmatmul.mubr.bf16.gmra.mxu0 %v235
      %v295 = vpop.f32.mrf.mxu0
      %v296 = vadd.f32 0.0, %v295
      %v297 = vpop.f32.mrf.mxu0
      %v298 = vpop.f32.mrf.mxu0
      %v299 = vadd.f32 0.0, %v298
      %v300 = vpop.f32.mrf.mxu0
      %301 = vdwg.mxu0
      %v302 = vadd.f32 %v180, %v272
      %v303 = vadd.f32 %v181, %v275
      %v304 = vadd.f32 %v182, %v280
      %v305 = vadd.f32 %v183, %v283
      %v306 = vadd.f32 %v184, %v288
      %v307 = vadd.f32 %v185, %v291
      %v308 = vadd.f32 %v186, %v296
      %v309 = vadd.f32 %v187, %v299
      %v310 = vld [vmem:[%s2] sm:$0x1]
      %v312 = vlaneseq
      %v313 = vshrl.u32 %v312, 7
      %v314 = vsub.s32 0, %v313
      %v315 = vrot.slane %v310, %v314
      %v317 = vadd.f32 %v302, %v315
      %v318 = vadd.f32 %v303, %v315
      %v319 = vadd.f32 %v304, %v315
      %v320 = vadd.f32 %v305, %v315
      %v321 = vadd.f32 %v306, %v315
      %v322 = vadd.f32 %v307, %v315
      %v323 = vadd.f32 %v308, %v315
      %v324 = vadd.f32 %v309, %v315
      %v325 = vpack.c.bf16 %v318, %v317
      %v326 = vpack.c.bf16 %v320, %v319
      %v327 = vpack.c.bf16 %v322, %v321
      %v328 = vpack.c.bf16 %v324, %v323
      %s329 = scalar_lea.vmem %s1, 16
      %v330 = vld [vmem:[%s329] sm:$0xf]
      %v331 = vld [vmem:[%s329 + $0x4] sm:$0xf]
      %v332 = vld [vmem:[%s329 + $0x8] sm:$0xf]
      %v333 = vld [vmem:[%s329 + $0xc] sm:$0xf]
      %v338 = vunpack.c.l.b16 %v330
      %v339 = vunpack.c.l.b16 %v331
      %v340 = vunpack.c.l.b16 %v332
      %v341 = vunpack.c.l.b16 %v333
      %v342 = vpack.c.b16 %v339, %v338
      %v343 = vpack.c.b16 %v341, %v340
      %v347 = vsel %vm224, %v325, 0
      %v350 = vsel %vm224, %v326, 0
      %v353 = vsel %vm224, %v327, 0
      %v356 = vsel %vm224, %v328, 0
      %358 = vmatprep.subr.bf16.mxu0 0
      %359 = vmatpush1.bf16.msra.mxu0 0
      %360 = vmatprep.subr.bf16.mxu0 0
      %361 = vmatpush1.bf16.msra.mxu0 0
      %362 = vmatprep.subr.bf16.mxu0 0
      %363 = vmatpush1.bf16.msra.mxu0 0
      %364 = vmatprep.subr.bf16.mxu0 0
      %365 = vmatpush1.bf16.msra.mxu0 0
      %366 = vmatprep.subr.bf16.mxu0 0
      %367 = vmatpush1.bf16.msra.mxu0 0
      %368 = vmatprep.subr.bf16.mxu0 0
      %369 = vmatpush1.bf16.msra.mxu0 0
      %370 = vmatprep.subr.bf16.mxu0 0
      %371 = vmatpush1.bf16.msra.mxu0 %v343
      %372 = vmatprep.subr.bf16.mxu0 0
      %373 = vmatpush1.bf16.msra.mxu0 %v342
      %374 = vmatprep.subr.bf16.mxu0 0
      %375 = vmatpush2.bf16.msra.mxu0 0
      %376 = vmatprep.subr.bf16.mxu0 0
      %377 = vmatpush2.bf16.msra.mxu0 0
      %378 = vmatprep.subr.bf16.mxu0 0
      %379 = vmatpush2.bf16.msra.mxu0 0
      %380 = vmatprep.subr.bf16.mxu0 0
      %381 = vmatpush2.bf16.msra.mxu0 0
      %382 = vmatprep.subr.bf16.mxu0 0
      %383 = vmatpush2.bf16.msra.mxu0 0
      %384 = vmatprep.subr.bf16.mxu0 0
      %385 = vmatpush2.bf16.msra.mxu0 0
      %386 = vmatprep.subr.bf16.mxu0 0
      %387 = vmatpush2.bf16.msra.mxu0 0
      %388 = vmatprep.subr.bf16.mxu0 0
      %389 = vmatpush2.bf16.msra.mxu0 0
      %390 = vmatprep.mubr.bf16.mxu0 0
      %391 = vmatmul.mubr.bf16.gmra.mxu0 %v347
      %v392 = vpop.f32.mrf.mxu0
      %v393 = vadd.f32 0.0, %v392
      %v394 = vpop.f32.mrf.mxu0
      %v395 = vpop.f32.mrf.mxu0
      %v396 = vadd.f32 0.0, %v395
      %v397 = vpop.f32.mrf.mxu0
      %398 = vmatprep.mubr.bf16.mxu0 0
      %399 = vmatmul.mubr.bf16.gmra.mxu0 %v350
      %v400 = vpop.f32.mrf.mxu0
      %v401 = vadd.f32 0.0, %v400
      %v402 = vpop.f32.mrf.mxu0
      %v403 = vpop.f32.mrf.mxu0
      %v404 = vadd.f32 0.0, %v403
      %v405 = vpop.f32.mrf.mxu0
      %406 = vmatprep.mubr.bf16.mxu0 0
      %407 = vmatmul.mubr.bf16.gmra.mxu0 %v353
      %v408 = vpop.f32.mrf.mxu0
      %v409 = vadd.f32 0.0, %v408
      %v410 = vpop.f32.mrf.mxu0
      %v411 = vpop.f32.mrf.mxu0
      %v412 = vadd.f32 0.0, %v411
      %v413 = vpop.f32.mrf.mxu0
      %414 = vmatprep.mubr.bf16.mxu0 0
      %415 = vmatmul.mubr.bf16.gmra.mxu0 %v356
      %v416 = vpop.f32.mrf.mxu0
      %v417 = vadd.f32 0.0, %v416
      %v418 = vpop.f32.mrf.mxu0
      %v419 = vpop.f32.mrf.mxu0
      %v420 = vadd.f32 0.0, %v419
      %v421 = vpop.f32.mrf.mxu0
      %422 = vdwg.mxu0
      %v423 = vadd.f32 %v317, %v393
      %v424 = vadd.f32 %v318, %v396
      %v425 = vadd.f32 %v319, %v401
      %v426 = vadd.f32 %v320, %v404
      %v427 = vadd.f32 %v321, %v409
      %v428 = vadd.f32 %v322, %v412
      %v429 = vadd.f32 %v323, %v417
      %v430 = vadd.f32 %v324, %v420
      %s431 = scalar_lea.vmem %s2, 1
      %v432 = vld [vmem:[%s431] sm:$0x1]
      %v434 = vlaneseq
      %v435 = vshrl.u32 %v434, 7
      %v436 = vsub.s32 0, %v435
      %v437 = vrot.slane %v432, %v436
      %v439 = vadd.f32 %v423, %v437
      %v440 = vadd.f32 %v424, %v437
      %v441 = vadd.f32 %v425, %v437
      %v442 = vadd.f32 %v426, %v437
      %v443 = vadd.f32 %v427, %v437
      %v444 = vadd.f32 %v428, %v437
      %v445 = vadd.f32 %v429, %v437
      %v446 = vadd.f32 %v430, %v437
      %v447 = vpack.c.bf16 %v439, %v439
      %v448 = vpack.c.bf16 %v440, %v440
      %v449 = vpack.c.bf16 %v441, %v441
      %v450 = vpack.c.bf16 %v442, %v442
      %v451 = vpack.c.bf16 %v443, %v443
      %v452 = vpack.c.bf16 %v444, %v444
      %v453 = vpack.c.bf16 %v445, %v445
      %v454 = vpack.c.bf16 %v446, %v446
      %vm455 = vcmask 257024
      %456 = vst.msk [vmem:[%s170] sm:$0xf] %vm455, %v447
      %457 = vst.msk [vmem:[%s170 + $0x4] sm:$0xf] %vm455, %v448
      %458 = vst.msk [vmem:[%s170 + $0x8] sm:$0xf] %vm455, %v449
      %459 = vst.msk [vmem:[%s170 + $0xc] sm:$0xf] %vm455, %v450
      %460 = vst.msk [vmem:[%s170 + $0x10] sm:$0xf] %vm455, %v451
      %461 = vst.msk [vmem:[%s170 + $0x14] sm:$0xf] %vm455, %v452
      %462 = vst.msk [vmem:[%s170 + $0x18] sm:$0xf] %vm455, %v453
      %463 = vst.msk [vmem:[%s170 + $0x1c] sm:$0xf] %vm455, %v454
      %p464 = scmp.lt.s32.totalorder %s14, 1
      %s465 = scalar_select %p464, %s14, 1
      %s466 = smul.addr %s465, 8
      %s467 = smul.addr %s466, 4
      %s468 = scalar_lea.vmem %s3, %s467
      // Predicated region
      $region33: #{_lambda_.7} parent=31 // pred_check
        %p469 = pneg %p100
      $region34: #{_lambda_.7} parent=31 // pred_check_branch
        %471 = sbr.rel (%p469) target = $region36
      $region35: #{_lambda_.7} parent=31 // pred_region
        _
      $region36: #{_lambda_.7} parent=31 // pred_fallthru
        _
    $region32: #{_lambda_.7} parent=5 // pred_fallthru
      _
    %p472 = scmp.le.s32.totalorder 2, %s9
    // Predicated region
    $region37: #{_lambda_.7} parent=5 // pred_check
      %p473 = pneg %p472
    $region38: #{_lambda_.7} parent=5 // pred_check_branch
      %475 = sbr.rel (%p473) target = $region40
    $region39: #{_lambda_.7} parent=5 // pred_region
      %s476 = ssub.s32 %s9, 2
      // Predicated region
      $region41: #{_lambda_.7} parent=39 // pred_check
        %p477 = pneg %p106
      $region42: #{_lambda_.7} parent=39 // pred_check_branch
        %479 = sbr.rel (%p477) target = $region44
      $region43: #{_lambda_.7} parent=39 // pred_region
        %p480 = scmp.lt.s32.totalorder %s15, 1
        %s481 = scalar_select %p480, %s15, 1
        %s482 = smul.addr %s481, 8
        %s483 = smul.addr %s482, 4
        %s484 = scalar_lea.vmem %s3, %s483
      $region44: #{_lambda_.7} parent=39 // pred_fallthru
        _
    $region40: #{_lambda_.7} parent=5 // pred_fallthru
      _
  $region6: #{_lambda_.7} parent=0 // loop_footer
    %s13 = sadd.s32 1, %s9
  $region7: #{_lambda_.7} parent=0 // loop_footer_branch
    %8 = sbr.rel target = $region3
  $region8: #{_lambda_.7} parent=0 // loop_exit
    _

// kernel: _lambda_.6
$region0: #{_lambda_.6}
  #allocation0 [shape = 'u32[]', space=smem, size = 0x4, offset = 0x4, fixed_abs, tag = 'smem constant byte address 0x4 - core index']
  #allocation1 [shape = 'u32[144,128]{1,0:T(1,128)}', space=vmem, size = 0x12000, scoped, tag = 'internal scratch']
  %s0 = inlined_call_operand.vmem [shape: bf16[2,10,10,3], index: 0, kind: input, shape index: {}]
  %s1 = inlined_call_operand.vmem [shape: bf16[9,3,32], index: 1, kind: input, shape index: {}]
  %s2 = inlined_call_operand.vmem [shape: f32[1,32], index: 2, kind: input, shape index: {}]
  %s3 = inlined_call_operand.vmem [shape: bf16[2,8,8,32], index: 3, kind: output, shape index: {}]
  %s4 = sld [smem:[#allocation0]]
  $region45: #{_lambda_.6} parent=0
    _
  %s6 = ssub.s32 1, %s4
  %s7 = scalar_select 0, %s6, %s4
  loop: start=0, step=1, limit=4
  $region2: #{_lambda_.6} parent=0 // loop_pre_header
    _
  $region3: #{_lambda_.6} parent=0 // loop_header
    %s9 = sphi 0, %s13
    %p10 = scmp.ge.s32.totalorder %s9, 4
    %s19 = sphi 0, %s21
    %s22 = sphi 0, %s19
    %s23 = sphi 0, %s22
    %s39 = sphi 0, %s23
    %s43 = sphi 0, %s43
    %s45 = sphi 0, %s43
    %s46 = sphi 0, %s45
    %s60 = sphi 0, %s46
    %s64 = sphi 0, %s64
    %s66 = sphi 0, %s64
    %s67 = sphi 0, %s66
    %s81 = sphi 0, %s67
    %s87 = sphi 0, %s89
    %s90 = sphi 0, %s87
    %s91 = sphi 0, %s90
    %s107 = sphi 0, %s91
  $region4: #{_lambda_.6} parent=0 // loop_header_branch
    %12 = sbr.rel (%p10) target = $region8
  $region5: #{_lambda_.6} parent=0 // loop_body
    %s14 = ssub.s32 %s9, 1
    %s15 = ssub.s32 %s9, 2
    %s16 = sadd.s32 %s9, 1
    %s17 = ssub.s32 %s9, %s16
    %p18 = scmp.eq.s32.totalorder %s17, 0
    %s20 = sadd.s32 %s19, 1
    %s21 = scalar_select %p18, %s19, %s20
    %p24 = pneg %p18
    %p25 = scmp.eq.s32.totalorder %s9, 1
    %p26 = por %p24, %p25
    %p27 = scmp.ne.s32.totalorder %s19, %s22
    %p28 = scmp.eq.s32.totalorder %s9, 0
    %p29 = por %p27, %p28
    %p30 = scmp.ne.s32.totalorder %s19, %s22
    %p31 = scmp.eq.s32.totalorder %s14, 1
    %p32 = por %p30, %p31
    %p33 = scmp.ne.s32.totalorder %s22, %s23
    %p34 = scmp.eq.s32.totalorder %s14, 0
    %p35 = por %p33, %p34
    %p36 = scmp.ne.s32.totalorder %s22, %s23
    %p37 = scmp.eq.s32.totalorder %s15, 1
    %p38 = por %p36, %p37
    %p40 = scmp.ne.s32.totalorder %s23, %s39
    %p41 = scmp.eq.s32.totalorder %s15, 0
    %p42 = por %p40, %p41
    %s44 = sadd.s32 %s43, 1
    %p47 = scmp.eq.s32.totalorder %s9, 1
    %p48 = scmp.ne.s32.totalorder %s43, %s45
    %p49 = scmp.eq.s32.totalorder %s9, 0
    %p50 = por %p48, %p49
    %p51 = scmp.ne.s32.totalorder %s43, %s45
    %p52 = scmp.eq.s32.totalorder %s14, 1
    %p53 = por %p51, %p52
    %p54 = scmp.ne.s32.totalorder %s45, %s46
    %p55 = scmp.eq.s32.totalorder %s14, 0
    %p56 = por %p54, %p55
    %p57 = scmp.ne.s32.totalorder %s45, %s46
    %p58 = scmp.eq.s32.totalorder %s15, 1
    %p59 = por %p57, %p58
    %p61 = scmp.ne.s32.totalorder %s46, %s60
    %p62 = scmp.eq.s32.totalorder %s15, 0
    %p63 = por %p61, %p62
    %s65 = sadd.s32 %s64, 1
    %p68 = scmp.eq.s32.totalorder %s9, 1
    %p69 = scmp.ne.s32.totalorder %s64, %s66
    %p70 = scmp.eq.s32.totalorder %s9, 0
    %p71 = por %p69, %p70
    %p72 = scmp.ne.s32.totalorder %s64, %s66
    %p73 = scmp.eq.s32.totalorder %s14, 1
    %p74 = por %p72, %p73
    %p75 = scmp.ne.s32.totalorder %s66, %s67
    %p76 = scmp.eq.s32.totalorder %s14, 0
    %p77 = por %p75, %p76
    %p78 = scmp.ne.s32.totalorder %s66, %s67
    %p79 = scmp.eq.s32.totalorder %s15, 1
    %p80 = por %p78, %p79
    %p82 = scmp.ne.s32.totalorder %s67, %s81
    %p83 = scmp.eq.s32.totalorder %s15, 0
    %p84 = por %p82, %p83
    %s85 = ssub.s32 %s9, %s16
    %p86 = scmp.eq.s32.totalorder %s85, 0
    %s88 = sadd.s32 %s87, 1
    %s89 = scalar_select %p86, %s87, %s88
    %p92 = pneg %p86
    %p93 = scmp.eq.s32.totalorder %s9, 1
    %p94 = por %p92, %p93
    %p95 = scmp.ne.s32.totalorder %s87, %s90
    %p96 = scmp.eq.s32.totalorder %s9, 0
    %p97 = por %p95, %p96
    %p98 = scmp.ne.s32.totalorder %s87, %s90
    %p99 = scmp.eq.s32.totalorder %s14, 1
    %p100 = por %p98, %p99
    %p101 = scmp.ne.s32.totalorder %s90, %s91
    %p102 = scmp.eq.s32.totalorder %s14, 0
    %p103 = por %p101, %p102
    %p104 = scmp.ne.s32.totalorder %s90, %s91
    %p105 = scmp.eq.s32.totalorder %s15, 1
    %p106 = por %p104, %p105
    %p108 = scmp.ne.s32.totalorder %s91, %s107
    %p109 = scmp.eq.s32.totalorder %s15, 0
    %p110 = por %p108, %p109
    %p111 = scmp.le.s32.totalorder 1, %s9
    %p112 = scmp.lt.s32.totalorder %s9, 3
    %p113 = pnand %p111, %p112
    %p114 = pneg %p113
    // Predicated region
    $region9: #{_lambda_.6} parent=5 // pred_check
      _
    $region10: #{_lambda_.6} parent=5 // pred_check_branch
      %116 = sbr.rel (%p113) target = $region12
    $region11: #{_lambda_.6} parent=5 // pred_region
      %s117 = ssub.s32 %s9, 1
      // Predicated region
      $region13: #{_lambda_.6} parent=11 // pred_check
        %p118 = pneg %p56
      $region14: #{_lambda_.6} parent=11 // pred_check_branch
        %120 = sbr.rel (%p118) target = $region16
      $region15: #{_lambda_.6} parent=11 // pred_region
        _
      $region16: #{_lambda_.6} parent=11 // pred_fallthru
        _
      // Predicated region
      $region17: #{_lambda_.6} parent=11 // pred_check
        %p121 = pneg %p77
      $region18: #{_lambda_.6} parent=11 // pred_check_branch
        %123 = sbr.rel (%p121) target = $region20
      $region19: #{_lambda_.6} parent=11 // pred_region
        _
      $region20: #{_lambda_.6} parent=11 // pred_fallthru
        _
    $region12: #{_lambda_.6} parent=5 // pred_fallthru
      _
    %p124 = scmp.lt.s32.totalorder %s9, 2
    // Predicated region
    $region21: #{_lambda_.6} parent=5 // pred_check
      %p125 = pneg %p124
    $region22: #{_lambda_.6} parent=5 // pred_check_branch
      %127 = sbr.rel (%p125) target = $region24
    $region23: #{_lambda_.6} parent=5 // pred_region
      // Predicated region
      $region25: #{_lambda_.6} parent=23 // pred_check
        %p128 = pneg %p29
      $region26: #{_lambda_.6} parent=23 // pred_check_branch
        %130 = sbr.rel (%p128) target = $region28
      $region27: #{_lambda_.6} parent=23 // pred_region
        %p131 = scmp.lt.s32.totalorder %s9, 1
        %s132 = scalar_select %p131, %s9, 1
        %s133 = smul.addr %s132, 20
        %s134 = smul.addr %s133, 4
        %s135 = scalar_lea.vmem %s0, %s134
      $region28: #{_lambda_.6} parent=23 // pred_fallthru
        _
    $region24: #{_lambda_.6} parent=5 // pred_fallthru
      _
    %p136 = scmp.le.s32.totalorder 1, %s9
    %p137 = scmp.lt.s32.totalorder %s9, 3
    %p138 = pnand %p136, %p137
    %p139 = pneg %p138
    // Predicated region
    $region29: #{_lambda_.6} parent=5 // pred_check
      _
    $region30: #{_lambda_.6} parent=5 // pred_check_branch
      %141 = sbr.rel (%p138) target = $region32
    $region31: #{_lambda_.6} parent=5 // pred_region
      %s142 = ssub.s32 %s9, 1
      %p143 = scmp.lt.s32.totalorder %s14, 1
      %s144 = scalar_select %p143, %s14, 1
      %s145 = smul.addr %s144, 20
      %s146 = smul.addr %s145, 4
      %s147 = scalar_lea.vmem %s0, %s146
      %p148 = pneg %p35
      %p149 = pneg %p32
      %p150 = pneg %p56
      %p151 = pneg %p53
      %p152 = pneg %p77
      %p153 = pneg %p74
      %p154 = pneg %p103
      %p155 = pneg %p100
      %p156 = scmp.lt.s32.totalorder %s14, 1
      %s157 = scalar_select %p156, %s14, 1
      %s158 = smul.addr %s157, 8
      %s159 = smul.addr %s158, 4
      %s160 = scalar_lea.vmem %s3, %s159
      %p161 = scmp.lt.s32.totalorder %s14, 1
      %s162 = scalar_select %p161, %s14, 1
      %s163 = smul.addr %s162, 20
      %s164 = smul.addr %s163, 4
      %s165 = scalar_lea.vmem %s0, %s164
      %p166 = scmp.lt.s32.totalorder %s14, 1
      %s167 = scalar_select %p166, %s14, 1
      %s168 = smul.addr %s167, 8
      %s169 = smul.addr %s168, 4
      %s170 = scalar_lea.vmem %s3, %s169
      %v172 = vld [vmem:[%s165] sm:$0xf]
      %v173 = vld [vmem:[%s165 + $0x8] sm:$0xf]
      %v174 = vld [vmem:[%s165 + $0x10] sm:$0xf]
      %v175 = vld [vmem:[%s165 + $0x18] sm:$0xf]
      %v176 = vld [vmem:[%s165 + $0x20] sm:$0xf]
      %v177 = vld [vmem:[%s165 + $0x28] sm:$0xf]
      %v178 = vld [vmem:[%s165 + $0x30] sm:$0xf]
      %v179 = vld [vmem:[%s165 + $0x38] sm:$0xf]
      %v180 = vld [vmem:[%s1] sm:$0x3]
      %v181 = vld [vmem:[%s165 + $0x4] sm:$0x1]
      %v182 = vld [vmem:[%s165 + $0xc] sm:$0x1]
      %v183 = vld [vmem:[%s165 + $0x14] sm:$0x1]
      %v184 = vld [vmem:[%s165 + $0x1c] sm:$0x1]
      %v185 = vld [vmem:[%s165 + $0x24] sm:$0x1]
      %v186 = vld [vmem:[%s165 + $0x2c] sm:$0x1]
      %v187 = vld [vmem:[%s165 + $0x34] sm:$0x1]
      %v188 = vld [vmem:[%s165 + $0x3c] sm:$0x1]
      %vm189 = vsmask.f32 3328
      %vm190 = vsmask.f32 7440
      %vm191 = vmor %vm189, %vm190
      %v193 = vshrl.u32 %v172, 16
      %v195 = vrot.slane %v193, 4
      %v196 = vshll.u32 %v172, 16
      %v198 = vrot.slane %v196, 5
      %v199 = vor.u32 %v195, %v198
      %v200 = vrot.slane %v199, 4
      %v202 = vshll.u32 %v181, 16
      %v204 = vrot.slane %v202, 5
      %v205 = vsel %vm191, %v200, %v204
      %v207 = vshrl.u32 %v173, 16
      %v209 = vrot.slane %v207, 4
      %v210 = vshll.u32 %v173, 16
      %v212 = vrot.slane %v210, 5
      %v213 = vor.u32 %v209, %v212
      %v214 = vrot.slane %v213, 4
      %v216 = vshll.u32 %v182, 16
      %v218 = vrot.slane %v216, 5
      %v219 = vsel %vm191, %v214, %v218
      %v221 = vshrl.u32 %v174, 16
      %v223 = vrot.slane %v221, 4
      %v224 = vshll.u32 %v174, 16
      %v226 = vrot.slane %v224, 5
      %v227 = vor.u32 %v223, %v226
      %v228 = vrot.slane %v227, 4
      %v230 = vshll.u32 %v183, 16
      %v232 = vrot.slane %v230, 5
      %v233 = vsel %vm191, %v228, %v232
      %v235 = vshrl.u32 %v175, 16
      %v237 = vrot.slane %v235, 4
      %v238 = vshll.u32 %v175, 16
      %v240 = vrot.slane %v238, 5
      %v241 = vor.u32 %v237, %v240
      %v242 = vrot.slane %v241, 4
      %v244 = vshll.u32 %v184, 16
      %v246 = vrot.slane %v244, 5
      %v247 = vsel %vm191, %v242, %v246
      %v249 = vshrl.u32 %v176, 16
      %v251 = vrot.slane %v249, 4
      %v252 = vshll.u32 %v176, 16
      %v254 = vrot.slane %v252, 5
      %v255 = vor.u32 %v251, %v254
      %v256 = vrot.slane %v255, 4
      %v258 = vshll.u32 %v185, 16
      %v260 = vrot.slane %v258, 5
      %v261 = vsel %vm191, %v256, %v260
      %v263 = vshrl.u32 %v177, 16
      %v265 = vrot.slane %v263, 4
      %v266 = vshll.u32 %v177, 16
      %v268 = vrot.slane %v266, 5
      %v269 = vor.u32 %v265, %v268
      %v270 = vrot.slane %v269, 4
      %v272 = vshll.u32 %v186, 16
      %v274 = vrot.slane %v272, 5
      %v275 = vsel %vm191, %v270, %v274
      %v277 = vshrl.u32 %v178, 16
      %v279 = vrot.slane %v277, 4
      %v280 = vshll.u32 %v178, 16
      %v282 = vrot.slane %v280, 5
      %v283 = vor.u32 %v279, %v282
      %v284 = vrot.slane %v283, 4
      %v286 = vshll.u32 %v187, 16
      %v288 = vrot.slane %v286, 5
      %v289 = vsel %vm191, %v284, %v288
      %v291 = vshrl.u32 %v179, 16
      %v293 = vrot.slane %v291, 4
      %v294 = vshll.u32 %v179, 16
      %v296 = vrot.slane %v294, 5
      %v297 = vor.u32 %v293, %v296
      %v298 = vrot.slane %v297, 4
      %v300 = vshll.u32 %v188, 16
      %v302 = vrot.slane %v300, 5
      %v303 = vsel %vm191, %v298, %v302
      %s304 = scalar_lea.vmem %s1, 2
      %v305 = vld [vmem:[%s304] sm:$0x3]
      %v306 = vunpack.c.l.b16 %v205
      %v307 = vunpack.c.l.b16 %v219
      %v308 = vunpack.c.l.b16 %v233
      %v309 = vunpack.c.l.b16 %v247
      %v310 = vunpack.c.l.b16 %v261
      %v311 = vunpack.c.l.b16 %v275
      %v312 = vunpack.c.l.b16 %v289
      %v313 = vunpack.c.l.b16 %v303
      %v314 = vpack.c.b16 %v307, %v306
      %v315 = vpack.c.b16 %v309, %v308
      %v316 = vpack.c.b16 %v311, %v310
      %v317 = vpack.c.b16 %v313, %v312
      %vm318 = vcmask 23552
      %v320 = vsel %vm318, %v314, 0
      %v323 = vsel %vm318, %v315, 0
      %v326 = vsel %vm318, %v316, 0
      %v329 = vsel %vm318, %v317, 0
      %vm331 = vcmask 1040384
      %vm332 = vcmask 1041408
      %v333 = vsel %vm331, 4294967295, 65535
      %v334 = vsel %vm332, %v333, 0
      %v336 = vand.u32 %v305, %v334
      %338 = vmatprep.subr.bf16.mxu0 0
      %339 = vmatpush1.bf16.msra.mxu0 0
      %340 = vmatprep.subr.bf16.mxu0 0
      %341 = vmatpush1.bf16.msra.mxu0 0
      %342 = vmatprep.subr.bf16.mxu0 0
      %343 = vmatpush1.bf16.msra.mxu0 0
      %344 = vmatprep.subr.bf16.mxu0 0
      %345 = vmatpush1.bf16.msra.mxu0 0
      %346 = vmatprep.subr.bf16.mxu0 0
      %347 = vmatpush1.bf16.msra.mxu0 0
      %348 = vmatprep.subr.bf16.mxu0 0
      %349 = vmatpush1.bf16.msra.mxu0 0
      %350 = vmatprep.subr.bf16.mxu0 0
      %351 = vmatpush1.bf16.msra.mxu0 0
      %352 = vmatprep.subr.bf16.mxu0 0
      %353 = vmatpush1.bf16.msra.mxu0 %v336
      %354 = vmatprep.subr.bf16.mxu0 0
      %355 = vmatpush2.bf16.msra.mxu0 0
      %356 = vmatprep.subr.bf16.mxu0 0
      %357 = vmatpush2.bf16.msra.mxu0 0
      %358 = vmatprep.subr.bf16.mxu0 0
      %359 = vmatpush2.bf16.msra.mxu0 0
      %360 = vmatprep.subr.bf16.mxu0 0
      %361 = vmatpush2.bf16.msra.mxu0 0
      %362 = vmatprep.subr.bf16.mxu0 0
      %363 = vmatpush2.bf16.msra.mxu0 0
      %364 = vmatprep.subr.bf16.mxu0 0
      %365 = vmatpush2.bf16.msra.mxu0 0
      %366 = vmatprep.subr.bf16.mxu0 0
      %367 = vmatpush2.bf16.msra.mxu0 0
      %368 = vmatprep.subr.bf16.mxu0 0
      %369 = vmatpush2.bf16.msra.mxu0 0
      %370 = vmatprep.mubr.bf16.mxu0 0
      %371 = vmatmul.mubr.bf16.gmra.mxu0 %v320
      %v372 = vpop.f32.mrf.mxu0
      %v373 = vadd.f32 0.0, %v372
      %v374 = vpop.f32.mrf.mxu0
      %v375 = vpop.f32.mrf.mxu0
      %v376 = vadd.f32 0.0, %v375
      %v377 = vpop.f32.mrf.mxu0
      %378 = vmatprep.mubr.bf16.mxu0 0
      %379 = vmatmul.mubr.bf16.gmra.mxu0 %v323
      %v380 = vpop.f32.mrf.mxu0
      %v381 = vadd.f32 0.0, %v380
      %v382 = vpop.f32.mrf.mxu0
      %v383 = vpop.f32.mrf.mxu0
      %v384 = vadd.f32 0.0, %v383
      %v385 = vpop.f32.mrf.mxu0
      %386 = vmatprep.mubr.bf16.mxu0 0
      %387 = vmatmul.mubr.bf16.gmra.mxu0 %v326
      %v388 = vpop.f32.mrf.mxu0
      %v389 = vadd.f32 0.0, %v388
      %v390 = vpop.f32.mrf.mxu0
      %v391 = vpop.f32.mrf.mxu0
      %v392 = vadd.f32 0.0, %v391
      %v393 = vpop.f32.mrf.mxu0
      %394 = vmatprep.mubr.bf16.mxu0 0
      %395 = vmatmul.mubr.bf16.gmra.mxu0 %v329
      %v396 = vpop.f32.mrf.mxu0
      %v397 = vadd.f32 0.0, %v396
      %v398 = vpop.f32.mrf.mxu0
      %v399 = vpop.f32.mrf.mxu0
      %v400 = vadd.f32 0.0, %v399
      %v401 = vpop.f32.mrf.mxu0
      %402 = vdwg.mxu0
      %v411 = vunpack.c.l.b16 %v172
      %v412 = vunpack.c.l.b16 %v173
      %v413 = vunpack.c.l.b16 %v174
      %v414 = vunpack.c.l.b16 %v175
      %v415 = vunpack.c.l.b16 %v176
      %v416 = vunpack.c.l.b16 %v177
      %v417 = vunpack.c.l.b16 %v178
      %v418 = vunpack.c.l.b16 %v179
      %v419 = vpack.c.b16 %v412, %v411
      %v420 = vpack.c.b16 %v414, %v413
      %v421 = vpack.c.b16 %v416, %v415
      %v422 = vpack.c.b16 %v418, %v417
      %v424 = vsel %vm318, %v419, 0
      %v427 = vsel %vm318, %v420, 0
      %v430 = vsel %vm318, %v421, 0
      %v433 = vsel %vm318, %v422, 0
      %v436 = vand.u32 %v180, %v334
      %438 = vmatprep.subr.bf16.mxu0 0
      %439 = vmatpush1.bf16.msra.mxu0 0
      %440 = vmatprep.subr.bf16.mxu0 0
      %441 = vmatpush1.bf16.msra.mxu0 0
      %442 = vmatprep.subr.bf16.mxu0 0
      %443 = vmatpush1.bf16.msra.mxu0 0
      %444 = vmatprep.subr.bf16.mxu0 0
      %445 = vmatpush1.bf16.msra.mxu0 0
      %446 = vmatprep.subr.bf16.mxu0 0
      %447 = vmatpush1.bf16.msra.mxu0 0
      %448 = vmatprep.subr.bf16.mxu0 0
      %449 = vmatpush1.bf16.msra.mxu0 0
      %450 = vmatprep.subr.bf16.mxu0 0
      %451 = vmatpush1.bf16.msra.mxu0 0
      %452 = vmatprep.subr.bf16.mxu0 0
      %453 = vmatpush1.bf16.msra.mxu0 %v436
      %454 = vmatprep.subr.bf16.mxu0 0
      %455 = vmatpush2.bf16.msra.mxu0 0
      %456 = vmatprep.subr.bf16.mxu0 0
      %457 = vmatpush2.bf16.msra.mxu0 0
      %458 = vmatprep.subr.bf16.mxu0 0
      %459 = vmatpush2.bf16.msra.mxu0 0
      %460 = vmatprep.subr.bf16.mxu0 0
      %461 = vmatpush2.bf16.msra.mxu0 0
      %462 = vmatprep.subr.bf16.mxu0 0
      %463 = vmatpush2.bf16.msra.mxu0 0
      %464 = vmatprep.subr.bf16.mxu0 0
      %465 = vmatpush2.bf16.msra.mxu0 0
      %466 = vmatprep.subr.bf16.mxu0 0
      %467 = vmatpush2.bf16.msra.mxu0 0
      %468 = vmatprep.subr.bf16.mxu0 0
      %469 = vmatpush2.bf16.msra.mxu0 0
      %470 = vmatprep.mubr.bf16.mxu0 0
      %471 = vmatmul.mubr.bf16.gmra.mxu0 %v424
      %v472 = vpop.f32.mrf.mxu0
      %v473 = vadd.f32 %v373, %v472
      %v474 = vpop.f32.mrf.mxu0
      %v475 = vpop.f32.mrf.mxu0
      %v476 = vadd.f32 %v376, %v475
      %v477 = vpop.f32.mrf.mxu0
      %478 = vmatprep.mubr.bf16.mxu0 0
      %479 = vmatmul.mubr.bf16.gmra.mxu0 %v427
      %v480 = vpop.f32.mrf.mxu0
      %v481 = vadd.f32 %v381, %v480
      %v482 = vpop.f32.mrf.mxu0
      %v483 = vpop.f32.mrf.mxu0
      %v484 = vadd.f32 %v384, %v483
      %v485 = vpop.f32.mrf.mxu0
      %486 = vmatprep.mubr.bf16.mxu0 0
      %487 = vmatmul.mubr.bf16.gmra.mxu0 %v430
      %v488 = vpop.f32.mrf.mxu0
      %v489 = vadd.f32 %v389, %v488
      %v490 = vpop.f32.mrf.mxu0
      %v491 = vpop.f32.mrf.mxu0
      %v492 = vadd.f32 %v392, %v491
      %v493 = vpop.f32.mrf.mxu0
      %494 = vmatprep.mubr.bf16.mxu0 0
      %495 = vmatmul.mubr.bf16.gmra.mxu0 %v433
      %v496 = vpop.f32.mrf.mxu0
      %v497 = vadd.f32 %v397, %v496
      %v498 = vpop.f32.mrf.mxu0
      %v499 = vpop.f32.mrf.mxu0
      %v500 = vadd.f32 %v400, %v499
      %v501 = vpop.f32.mrf.mxu0
      %502 = vdwg.mxu0
      %v503 = vld [vmem:[%s165] sm:$0xe]
      %v504 = vld [vmem:[%s165 + $0x8] sm:$0xe]
      %v505 = vld [vmem:[%s165 + $0x10] sm:$0xe]
      %v506 = vld [vmem:[%s165 + $0x18] sm:$0xe]
      %v507 = vld [vmem:[%s165 + $0x20] sm:$0xe]
      %v508 = vld [vmem:[%s165 + $0x28] sm:$0xe]
      %v509 = vld [vmem:[%s165 + $0x30] sm:$0xe]
      %v510 = vld [vmem:[%s165 + $0x38] sm:$0xe]
      %vm527 = vcmask 1042432
      %vm528 = vcmask 1046532
      %vm529 = vmor %vm527, %vm528
      %v530 = vrot.slane %v503, 5
      %v531 = vrot.slane %v530, 4
      %v532 = vrot.slane %v181, 5
      %v533 = vsel %vm529, %v531, %v532
      %v534 = vrot.slane %v504, 5
      %v535 = vrot.slane %v534, 4
      %v536 = vrot.slane %v182, 5
      %v537 = vsel %vm529, %v535, %v536
      %v538 = vrot.slane %v505, 5
      %v539 = vrot.slane %v538, 4
      %v540 = vrot.slane %v183, 5
      %v541 = vsel %vm529, %v539, %v540
      %v542 = vrot.slane %v506, 5
      %v543 = vrot.slane %v542, 4
      %v544 = vrot.slane %v184, 5
      %v545 = vsel %vm529, %v543, %v544
      %v546 = vrot.slane %v507, 5
      %v547 = vrot.slane %v546, 4
      %v548 = vrot.slane %v185, 5
      %v549 = vsel %vm529, %v547, %v548
      %v550 = vrot.slane %v508, 5
      %v551 = vrot.slane %v550, 4
      %v552 = vrot.slane %v186, 5
      %v553 = vsel %vm529, %v551, %v552
      %v554 = vrot.slane %v509, 5
      %v555 = vrot.slane %v554, 4
      %v556 = vrot.slane %v187, 5
      %v557 = vsel %vm529, %v555, %v556
      %v558 = vrot.slane %v510, 5
      %v559 = vrot.slane %v558, 4
      %v560 = vrot.slane %v188, 5
      %v561 = vsel %vm529, %v559, %v560
      %s562 = scalar_lea.vmem %s1, 4
      %v563 = vld [vmem:[%s562] sm:$0x3]
      %v564 = vunpack.c.l.b16 %v533
      %v565 = vunpack.c.l.b16 %v537
      %v566 = vunpack.c.l.b16 %v541
      %v567 = vunpack.c.l.b16 %v545
      %v568 = vunpack.c.l.b16 %v549
      %v569 = vunpack.c.l.b16 %v553
      %v570 = vunpack.c.l.b16 %v557
      %v571 = vunpack.c.l.b16 %v561
      %v572 = vpack.c.b16 %v565, %v564
      %v573 = vpack.c.b16 %v567, %v566
      %v574 = vpack.c.b16 %v569, %v568
      %v575 = vpack.c.b16 %v571, %v570
      %v577 = vsel %vm318, %v572, 0
      %v580 = vsel %vm318, %v573, 0
      %v583 = vsel %vm318, %v574, 0
      %v586 = vsel %vm318, %v575, 0
      %v589 = vand.u32 %v563, %v334
      %591 = vmatprep.subr.bf16.mxu0 0
      %592 = vmatpush1.bf16.msra.mxu0 0
      %593 = vmatprep.subr.bf16.mxu0 0
      %594 = vmatpush1.bf16.msra.mxu0 0
      %595 = vmatprep.subr.bf16.mxu0 0
      %596 = vmatpush1.bf16.msra.mxu0 0
      %597 = vmatprep.subr.bf16.mxu0 0
      %598 = vmatpush1.bf16.msra.mxu0 0
      %599 = vmatprep.subr.bf16.mxu0 0
      %600 = vmatpush1.bf16.msra.mxu0 0
      %601 = vmatprep.subr.bf16.mxu0 0
      %602 = vmatpush1.bf16.msra.mxu0 0
      %603 = vmatprep.subr.bf16.mxu0 0
      %604 = vmatpush1.bf16.msra.mxu0 0
      %605 = vmatprep.subr.bf16.mxu0 0
      %606 = vmatpush1.bf16.msra.mxu0 %v589
      %607 = vmatprep.subr.bf16.mxu0 0
      %608 = vmatpush2.bf16.msra.mxu0 0
      %609 = vmatprep.subr.bf16.mxu0 0
      %610 = vmatpush2.bf16.msra.mxu0 0
      %611 = vmatprep.subr.bf16.mxu0 0
      %612 = vmatpush2.bf16.msra.mxu0 0
      %613 = vmatprep.subr.bf16.mxu0 0
      %614 = vmatpush2.bf16.msra.mxu0 0
      %615 = vmatprep.subr.bf16.mxu0 0
      %616 = vmatpush2.bf16.msra.mxu0 0
      %617 = vmatprep.subr.bf16.mxu0 0
      %618 = vmatpush2.bf16.msra.mxu0 0
      %619 = vmatprep.subr.bf16.mxu0 0
      %620 = vmatpush2.bf16.msra.mxu0 0
      %621 = vmatprep.subr.bf16.mxu0 0
      %622 = vmatpush2.bf16.msra.mxu0 0
      %623 = vmatprep.mubr.bf16.mxu0 0
      %624 = vmatmul.mubr.bf16.gmra.mxu0 %v577
      %v625 = vpop.f32.mrf.mxu0
      %v626 = vadd.f32 0.0, %v625
      %v627 = vpop.f32.mrf.mxu0
      %v628 = vpop.f32.mrf.mxu0
      %v629 = vadd.f32 0.0, %v628
      %v630 = vpop.f32.mrf.mxu0
      %631 = vmatprep.mubr.bf16.mxu0 0
      %632 = vmatmul.mubr.bf16.gmra.mxu0 %v580
      %v633 = vpop.f32.mrf.mxu0
      %v634 = vadd.f32 0.0, %v633
      %v635 = vpop.f32.mrf.mxu0
      %v636 = vpop.f32.mrf.mxu0
      %v637 = vadd.f32 0.0, %v636
      %v638 = vpop.f32.mrf.mxu0
      %639 = vmatprep.mubr.bf16.mxu0 0
      %640 = vmatmul.mubr.bf16.gmra.mxu0 %v583
      %v641 = vpop.f32.mrf.mxu0
      %v642 = vadd.f32 0.0, %v641
      %v643 = vpop.f32.mrf.mxu0
      %v644 = vpop.f32.mrf.mxu0
      %v645 = vadd.f32 0.0, %v644
      %v646 = vpop.f32.mrf.mxu0
      %647 = vmatprep.mubr.bf16.mxu0 0
      %648 = vmatmul.mubr.bf16.gmra.mxu0 %v586
      %v649 = vpop.f32.mrf.mxu0
      %v650 = vadd.f32 0.0, %v649
      %v651 = vpop.f32.mrf.mxu0
      %v652 = vpop.f32.mrf.mxu0
      %v653 = vadd.f32 0.0, %v652
      %v654 = vpop.f32.mrf.mxu0
      %655 = vdwg.mxu0
      %v656 = vadd.f32 %v473, %v626
      %v657 = vadd.f32 %v476, %v629
      %v658 = vadd.f32 %v481, %v634
      %v659 = vadd.f32 %v484, %v637
      %v660 = vadd.f32 %v489, %v642
      %v661 = vadd.f32 %v492, %v645
      %v662 = vadd.f32 %v497, %v650
      %v663 = vadd.f32 %v500, %v653
      %s664 = scalar_lea.vmem %s165, 8
      %v665 = vld [vmem:[%s664] sm:$0xf]
      %v666 = vld [vmem:[%s664 + $0x8] sm:$0xf]
      %v667 = vld [vmem:[%s664 + $0x10] sm:$0xf]
      %v668 = vld [vmem:[%s664 + $0x18] sm:$0xf]
      %v669 = vld [vmem:[%s664 + $0x20] sm:$0xf]
      %v670 = vld [vmem:[%s664 + $0x28] sm:$0xf]
      %v671 = vld [vmem:[%s664 + $0x30] sm:$0xf]
      %v672 = vld [vmem:[%s664 + $0x38] sm:$0xf]
      %s673 = scalar_lea.vmem %s1, 6
      %v674 = vld [vmem:[%s673] sm:$0x3]
      %v683 = vunpack.c.l.b16 %v665
      %v684 = vunpack.c.l.b16 %v666
      %v685 = vunpack.c.l.b16 %v667
      %v686 = vunpack.c.l.b16 %v668
      %v687 = vunpack.c.l.b16 %v669
      %v688 = vunpack.c.l.b16 %v670
      %v689 = vunpack.c.l.b16 %v671
      %v690 = vunpack.c.l.b16 %v672
      %v691 = vpack.c.b16 %v684, %v683
      %v692 = vpack.c.b16 %v686, %v685
      %v693 = vpack.c.b16 %v688, %v687
      %v694 = vpack.c.b16 %v690, %v689
      %v696 = vsel %vm318, %v691, 0
      %v699 = vsel %vm318, %v692, 0
      %v702 = vsel %vm318, %v693, 0
      %v705 = vsel %vm318, %v694, 0
      %v708 = vand.u32 %v674, %v334
      %710 = vmatprep.subr.bf16.mxu0 0
      %711 = vmatpush1.bf16.msra.mxu0 0
      %712 = vmatprep.subr.bf16.mxu0 0
      %713 = vmatpush1.bf16.msra.mxu0 0
      %714 = vmatprep.subr.bf16.mxu0 0
      %715 = vmatpush1.bf16.msra.mxu0 0
      %716 = vmatprep.subr.bf16.mxu0 0
      %717 = vmatpush1.bf16.msra.mxu0 0
      %718 = vmatprep.subr.bf16.mxu0 0
      %719 = vmatpush1.bf16.msra.mxu0 0
      %720 = vmatprep.subr.bf16.mxu0 0
      %721 = vmatpush1.bf16.msra.mxu0 0
      %722 = vmatprep.subr.bf16.mxu0 0
      %723 = vmatpush1.bf16.msra.mxu0 0
      %724 = vmatprep.subr.bf16.mxu0 0
      %725 = vmatpush1.bf16.msra.mxu0 %v708
      %726 = vmatprep.subr.bf16.mxu0 0
      %727 = vmatpush2.bf16.msra.mxu0 0
      %728 = vmatprep.subr.bf16.mxu0 0
      %729 = vmatpush2.bf16.msra.mxu0 0
      %730 = vmatprep.subr.bf16.mxu0 0
      %731 = vmatpush2.bf16.msra.mxu0 0
      %732 = vmatprep.subr.bf16.mxu0 0
      %733 = vmatpush2.bf16.msra.mxu0 0
      %734 = vmatprep.subr.bf16.mxu0 0
      %735 = vmatpush2.bf16.msra.mxu0 0
      %736 = vmatprep.subr.bf16.mxu0 0
      %737 = vmatpush2.bf16.msra.mxu0 0
      %738 = vmatprep.subr.bf16.mxu0 0
      %739 = vmatpush2.bf16.msra.mxu0 0
      %740 = vmatprep.subr.bf16.mxu0 0
      %741 = vmatpush2.bf16.msra.mxu0 0
      %742 = vmatprep.mubr.bf16.mxu0 0
      %743 = vmatmul.mubr.bf16.gmra.mxu0 %v696
      %v744 = vpop.f32.mrf.mxu0
      %v745 = vadd.f32 0.0, %v744
      %v746 = vpop.f32.mrf.mxu0
      %v747 = vpop.f32.mrf.mxu0
      %v748 = vadd.f32 0.0, %v747
      %v749 = vpop.f32.mrf.mxu0
      %750 = vmatprep.mubr.bf16.mxu0 0
      %751 = vmatmul.mubr.bf16.gmra.mxu0 %v699
      %v752 = vpop.f32.mrf.mxu0
      %v753 = vadd.f32 0.0, %v752
      %v754 = vpop.f32.mrf.mxu0
      %v755 = vpop.f32.mrf.mxu0
      %v756 = vadd.f32 0.0, %v755
      %v757 = vpop.f32.mrf.mxu0
      %758 = vmatprep.mubr.bf16.mxu0 0
      %759 = vmatmul.mubr.bf16.gmra.mxu0 %v702
      %v760 = vpop.f32.mrf.mxu0
      %v761 = vadd.f32 0.0, %v760
      %v762 = vpop.f32.mrf.mxu0
      %v763 = vpop.f32.mrf.mxu0
      %v764 = vadd.f32 0.0, %v763
      %v765 = vpop.f32.mrf.mxu0
      %766 = vmatprep.mubr.bf16.mxu0 0
      %767 = vmatmul.mubr.bf16.gmra.mxu0 %v705
      %v768 = vpop.f32.mrf.mxu0
      %v769 = vadd.f32 0.0, %v768
      %v770 = vpop.f32.mrf.mxu0
      %v771 = vpop.f32.mrf.mxu0
      %v772 = vadd.f32 0.0, %v771
      %v773 = vpop.f32.mrf.mxu0
      %774 = vdwg.mxu0
      %v775 = vadd.f32 %v656, %v745
      %v776 = vadd.f32 %v657, %v748
      %v777 = vadd.f32 %v658, %v753
      %v778 = vadd.f32 %v659, %v756
      %v779 = vadd.f32 %v660, %v761
      %v780 = vadd.f32 %v661, %v764
      %v781 = vadd.f32 %v662, %v769
      %v782 = vadd.f32 %v663, %v772
      %v783 = vld [vmem:[%s664] sm:$0xf]
      %v784 = vld [vmem:[%s664 + $0x4] sm:$0x1]
      %v785 = vld [vmem:[%s664 + $0x8] sm:$0xf]
      %v786 = vld [vmem:[%s664 + $0xc] sm:$0x1]
      %v787 = vld [vmem:[%s664 + $0x10] sm:$0xf]
      %v788 = vld [vmem:[%s664 + $0x14] sm:$0x1]
      %v789 = vld [vmem:[%s664 + $0x18] sm:$0xf]
      %v790 = vld [vmem:[%s664 + $0x1c] sm:$0x1]
      %v791 = vld [vmem:[%s664 + $0x20] sm:$0xf]
      %v792 = vld [vmem:[%s664 + $0x24] sm:$0x1]
      %v793 = vld [vmem:[%s664 + $0x28] sm:$0xf]
      %v794 = vld [vmem:[%s664 + $0x2c] sm:$0x1]
      %v795 = vld [vmem:[%s664 + $0x30] sm:$0xf]
      %v796 = vld [vmem:[%s664 + $0x34] sm:$0x1]
      %v797 = vld [vmem:[%s664 + $0x38] sm:$0xf]
      %v798 = vld [vmem:[%s664 + $0x3c] sm:$0x1]
      %v800 = vshrl.u32 %v783, 16
      %v802 = vrot.slane %v800, 4
      %v803 = vshll.u32 %v783, 16
      %v805 = vrot.slane %v803, 5
      %v806 = vor.u32 %v802, %v805
      %v807 = vrot.slane %v806, 4
      %v809 = vshll.u32 %v784, 16
      %v811 = vrot.slane %v809, 5
      %v812 = vsel %vm191, %v807, %v811
      %v814 = vshrl.u32 %v785, 16
      %v816 = vrot.slane %v814, 4
      %v817 = vshll.u32 %v785, 16
      %v819 = vrot.slane %v817, 5
      %v820 = vor.u32 %v816, %v819
      %v821 = vrot.slane %v820, 4
      %v823 = vshll.u32 %v786, 16
      %v825 = vrot.slane %v823, 5
      %v826 = vsel %vm191, %v821, %v825
      %v828 = vshrl.u32 %v787, 16
      %v830 = vrot.slane %v828, 4
      %v831 = vshll.u32 %v787, 16
      %v833 = vrot.slane %v831, 5
      %v834 = vor.u32 %v830, %v833
      %v835 = vrot.slane %v834, 4
      %v837 = vshll.u32 %v788, 16
      %v839 = vrot.slane %v837, 5
      %v840 = vsel %vm191, %v835, %v839
      %v842 = vshrl.u32 %v789, 16
      %v844 = vrot.slane %v842, 4
      %v845 = vshll.u32 %v789, 16
      %v847 = vrot.slane %v845, 5
      %v848 = vor.u32 %v844, %v847
      %v849 = vrot.slane %v848, 4
      %v851 = vshll.u32 %v790, 16
      %v853 = vrot.slane %v851, 5
      %v854 = vsel %vm191, %v849, %v853
      %v856 = vshrl.u32 %v791, 16
      %v858 = vrot.slane %v856, 4
      %v859 = vshll.u32 %v791, 16
      %v861 = vrot.slane %v859, 5
      %v862 = vor.u32 %v858, %v861
      %v863 = vrot.slane %v862, 4
      %v865 = vshll.u32 %v792, 16
      %v867 = vrot.slane %v865, 5
      %v868 = vsel %vm191, %v863, %v867
      %v870 = vshrl.u32 %v793, 16
      %v872 = vrot.slane %v870, 4
      %v873 = vshll.u32 %v793, 16
      %v875 = vrot.slane %v873, 5
      %v876 = vor.u32 %v872, %v875
      %v877 = vrot.slane %v876, 4
      %v879 = vshll.u32 %v794, 16
      %v881 = vrot.slane %v879, 5
      %v882 = vsel %vm191, %v877, %v881
      %v884 = vshrl.u32 %v795, 16
      %v886 = vrot.slane %v884, 4
      %v887 = vshll.u32 %v795, 16
      %v889 = vrot.slane %v887, 5
      %v890 = vor.u32 %v886, %v889
      %v891 = vrot.slane %v890, 4
      %v893 = vshll.u32 %v796, 16
      %v895 = vrot.slane %v893, 5
      %v896 = vsel %vm191, %v891, %v895
      %v898 = vshrl.u32 %v797, 16
      %v900 = vrot.slane %v898, 4
      %v901 = vshll.u32 %v797, 16
      %v903 = vrot.slane %v901, 5
      %v904 = vor.u32 %v900, %v903
      %v905 = vrot.slane %v904, 4
      %v907 = vshll.u32 %v798, 16
      %v909 = vrot.slane %v907, 5
      %v910 = vsel %vm191, %v905, %v909
      %s911 = scalar_lea.vmem %s1, 8
      %v912 = vld [vmem:[%s911] sm:$0x3]
      %v913 = vunpack.c.l.b16 %v812
      %v914 = vunpack.c.l.b16 %v826
      %v915 = vunpack.c.l.b16 %v840
      %v916 = vunpack.c.l.b16 %v854
      %v917 = vunpack.c.l.b16 %v868
      %v918 = vunpack.c.l.b16 %v882
      %v919 = vunpack.c.l.b16 %v896
      %v920 = vunpack.c.l.b16 %v910
      %v921 = vpack.c.b16 %v914, %v913
      %v922 = vpack.c.b16 %v916, %v915
      %v923 = vpack.c.b16 %v918, %v917
      %v924 = vpack.c.b16 %v920, %v919
      %v926 = vsel %vm318, %v921, 0
      %v929 = vsel %vm318, %v922, 0
      %v932 = vsel %vm318, %v923, 0
      %v935 = vsel %vm318, %v924, 0
      %v938 = vand.u32 %v912, %v334
      %940 = vmatprep.subr.bf16.mxu0 0
      %941 = vmatpush1.bf16.msra.mxu0 0
      %942 = vmatprep.subr.bf16.mxu0 0
      %943 = vmatpush1.bf16.msra.mxu0 0
      %944 = vmatprep.subr.bf16.mxu0 0
      %945 = vmatpush1.bf16.msra.mxu0 0
      %946 = vmatprep.subr.bf16.mxu0 0
      %947 = vmatpush1.bf16.msra.mxu0 0
      %948 = vmatprep.subr.bf16.mxu0 0
      %949 = vmatpush1.bf16.msra.mxu0 0
      %950 = vmatprep.subr.bf16.mxu0 0
      %951 = vmatpush1.bf16.msra.mxu0 0
      %952 = vmatprep.subr.bf16.mxu0 0
      %953 = vmatpush1.bf16.msra.mxu0 0
      %954 = vmatprep.subr.bf16.mxu0 0
      %955 = vmatpush1.bf16.msra.mxu0 %v938
      %956 = vmatprep.subr.bf16.mxu0 0
      %957 = vmatpush2.bf16.msra.mxu0 0
      %958 = vmatprep.subr.bf16.mxu0 0
      %959 = vmatpush2.bf16.msra.mxu0 0
      %960 = vmatprep.subr.bf16.mxu0 0
      %961 = vmatpush2.bf16.msra.mxu0 0
      %962 = vmatprep.subr.bf16.mxu0 0
      %963 = vmatpush2.bf16.msra.mxu0 0
      %964 = vmatprep.subr.bf16.mxu0 0
      %965 = vmatpush2.bf16.msra.mxu0 0
      %966 = vmatprep.subr.bf16.mxu0 0
      %967 = vmatpush2.bf16.msra.mxu0 0
      %968 = vmatprep.subr.bf16.mxu0 0
      %969 = vmatpush2.bf16.msra.mxu0 0
      %970 = vmatprep.subr.bf16.mxu0 0
      %971 = vmatpush2.bf16.msra.mxu0 0
      %972 = vmatprep.mubr.bf16.mxu0 0
      %973 = vmatmul.mubr.bf16.gmra.mxu0 %v926
      %v974 = vpop.f32.mrf.mxu0
      %v975 = vadd.f32 0.0, %v974
      %v976 = vpop.f32.mrf.mxu0
      %v977 = vpop.f32.mrf.mxu0
      %v978 = vadd.f32 0.0, %v977
      %v979 = vpop.f32.mrf.mxu0
      %980 = vmatprep.mubr.bf16.mxu0 0
      %981 = vmatmul.mubr.bf16.gmra.mxu0 %v929
      %v982 = vpop.f32.mrf.mxu0
      %v983 = vadd.f32 0.0, %v982
      %v984 = vpop.f32.mrf.mxu0
      %v985 = vpop.f32.mrf.mxu0
      %v986 = vadd.f32 0.0, %v985
      %v987 = vpop.f32.mrf.mxu0
      %988 = vmatprep.mubr.bf16.mxu0 0
      %989 = vmatmul.mubr.bf16.gmra.mxu0 %v932
      %v990 = vpop.f32.mrf.mxu0
      %v991 = vadd.f32 0.0, %v990
      %v992 = vpop.f32.mrf.mxu0
      %v993 = vpop.f32.mrf.mxu0
      %v994 = vadd.f32 0.0, %v993
      %v995 = vpop.f32.mrf.mxu0
      %996 = vmatprep.mubr.bf16.mxu0 0
      %997 = vmatmul.mubr.bf16.gmra.mxu0 %v935
      %v998 = vpop.f32.mrf.mxu0
      %v999 = vadd.f32 0.0, %v998
      %v1000 = vpop.f32.mrf.mxu0
      %v1001 = vpop.f32.mrf.mxu0
      %v1002 = vadd.f32 0.0, %v1001
      %v1003 = vpop.f32.mrf.mxu0
      %1004 = vdwg.mxu0
      %v1005 = vadd.f32 %v775, %v975
      %v1006 = vadd.f32 %v776, %v978
      %v1007 = vadd.f32 %v777, %v983
      %v1008 = vadd.f32 %v778, %v986
      %v1009 = vadd.f32 %v779, %v991
      %v1010 = vadd.f32 %v780, %v994
      %v1011 = vadd.f32 %v781, %v999
      %v1012 = vadd.f32 %v782, %v1002
      %v1013 = vld [vmem:[%s664] sm:$0xe]
      %v1014 = vld [vmem:[%s664 + $0x8] sm:$0xe]
      %v1015 = vld [vmem:[%s664 + $0x10] sm:$0xe]
      %v1016 = vld [vmem:[%s664 + $0x18] sm:$0xe]
      %v1017 = vld [vmem:[%s664 + $0x20] sm:$0xe]
      %v1018 = vld [vmem:[%s664 + $0x28] sm:$0xe]
      %v1019 = vld [vmem:[%s664 + $0x30] sm:$0xe]
      %v1020 = vld [vmem:[%s664 + $0x38] sm:$0xe]
      %v1037 = vrot.slane %v1013, 5
      %v1038 = vrot.slane %v1037, 4
      %v1039 = vrot.slane %v784, 5
      %v1040 = vsel %vm529, %v1038, %v1039
      %v1041 = vrot.slane %v1014, 5
      %v1042 = vrot.slane %v1041, 4
      %v1043 = vrot.slane %v786, 5
      %v1044 = vsel %vm529, %v1042, %v1043
      %v1045 = vrot.slane %v1015, 5
      %v1046 = vrot.slane %v1045, 4
      %v1047 = vrot.slane %v788, 5
      %v1048 = vsel %vm529, %v1046, %v1047
      %v1049 = vrot.slane %v1016, 5
      %v1050 = vrot.slane %v1049, 4
      %v1051 = vrot.slane %v790, 5
      %v1052 = vsel %vm529, %v1050, %v1051
      %v1053 = vrot.slane %v1017, 5
      %v1054 = vrot.slane %v1053, 4
      %v1055 = vrot.slane %v792, 5
      %v1056 = vsel %vm529, %v1054, %v1055
      %v1057 = vrot.slane %v1018, 5
      %v1058 = vrot.slane %v1057, 4
      %v1059 = vrot.slane %v794, 5
      %v1060 = vsel %vm529, %v1058, %v1059
      %v1061 = vrot.slane %v1019, 5
      %v1062 = vrot.slane %v1061, 4
      %v1063 = vrot.slane %v796, 5
      %v1064 = vsel %vm529, %v1062, %v1063
      %v1065 = vrot.slane %v1020, 5
      %v1066 = vrot.slane %v1065, 4
      %v1067 = vrot.slane %v798, 5
      %v1068 = vsel %vm529, %v1066, %v1067
      %s1069 = scalar_lea.vmem %s1, 10
      %v1070 = vld [vmem:[%s1069] sm:$0x3]
      %v1071 = vunpack.c.l.b16 %v1040
      %v1072 = vunpack.c.l.b16 %v1044
      %v1073 = vunpack.c.l.b16 %v1048
      %v1074 = vunpack.c.l.b16 %v1052
      %v1075 = vunpack.c.l.b16 %v1056
      %v1076 = vunpack.c.l.b16 %v1060
      %v1077 = vunpack.c.l.b16 %v1064
      %v1078 = vunpack.c.l.b16 %v1068
      %v1079 = vpack.c.b16 %v1072, %v1071
      %v1080 = vpack.c.b16 %v1074, %v1073
      %v1081 = vpack.c.b16 %v1076, %v1075
      %v1082 = vpack.c.b16 %v1078, %v1077
      %v1084 = vsel %vm318, %v1079, 0
      %v1087 = vsel %vm318, %v1080, 0
      %v1090 = vsel %vm318, %v1081, 0
      %v1093 = vsel %vm318, %v1082, 0
      %v1096 = vand.u32 %v1070, %v334
      %1098 = vmatprep.subr.bf16.mxu0 0
      %1099 = vmatpush1.bf16.msra.mxu0 0
      %1100 = vmatprep.subr.bf16.mxu0 0
      %1101 = vmatpush1.bf16.msra.mxu0 0
      %1102 = vmatprep.subr.bf16.mxu0 0
      %1103 = vmatpush1.bf16.msra.mxu0 0
      %1104 = vmatprep.subr.bf16.mxu0 0
      %1105 = vmatpush1.bf16.msra.mxu0 0
      %1106 = vmatprep.subr.bf16.mxu0 0
      %1107 = vmatpush1.bf16.msra.mxu0 0
      %1108 = vmatprep.subr.bf16.mxu0 0
      %1109 = vmatpush1.bf16.msra.mxu0 0
      %1110 = vmatprep.subr.bf16.mxu0 0
      %1111 = vmatpush1.bf16.msra.mxu0 0
      %1112 = vmatprep.subr.bf16.mxu0 0
      %1113 = vmatpush1.bf16.msra.mxu0 %v1096
      %1114 = vmatprep.subr.bf16.mxu0 0
      %1115 = vmatpush2.bf16.msra.mxu0 0
      %1116 = vmatprep.subr.bf16.mxu0 0
      %1117 = vmatpush2.bf16.msra.mxu0 0
      %1118 = vmatprep.subr.bf16.mxu0 0
      %1119 = vmatpush2.bf16.msra.mxu0 0
      %1120 = vmatprep.subr.bf16.mxu0 0
      %1121 = vmatpush2.bf16.msra.mxu0 0
      %1122 = vmatprep.subr.bf16.mxu0 0
      %1123 = vmatpush2.bf16.msra.mxu0 0
      %1124 = vmatprep.subr.bf16.mxu0 0
      %1125 = vmatpush2.bf16.msra.mxu0 0
      %1126 = vmatprep.subr.bf16.mxu0 0
      %1127 = vmatpush2.bf16.msra.mxu0 0
      %1128 = vmatprep.subr.bf16.mxu0 0
      %1129 = vmatpush2.bf16.msra.mxu0 0
      %1130 = vmatprep.mubr.bf16.mxu0 0
      %1131 = vmatmul.mubr.bf16.gmra.mxu0 %v1084
      %v1132 = vpop.f32.mrf.mxu0
      %v1133 = vadd.f32 0.0, %v1132
      %v1134 = vpop.f32.mrf.mxu0
      %v1135 = vpop.f32.mrf.mxu0
      %v1136 = vadd.f32 0.0, %v1135
      %v1137 = vpop.f32.mrf.mxu0
      %1138 = vmatprep.mubr.bf16.mxu0 0
      %1139 = vmatmul.mubr.bf16.gmra.mxu0 %v1087
      %v1140 = vpop.f32.mrf.mxu0
      %v1141 = vadd.f32 0.0, %v1140
      %v1142 = vpop.f32.mrf.mxu0
      %v1143 = vpop.f32.mrf.mxu0
      %v1144 = vadd.f32 0.0, %v1143
      %v1145 = vpop.f32.mrf.mxu0
      %1146 = vmatprep.mubr.bf16.mxu0 0
      %1147 = vmatmul.mubr.bf16.gmra.mxu0 %v1090
      %v1148 = vpop.f32.mrf.mxu0
      %v1149 = vadd.f32 0.0, %v1148
      %v1150 = vpop.f32.mrf.mxu0
      %v1151 = vpop.f32.mrf.mxu0
      %v1152 = vadd.f32 0.0, %v1151
      %v1153 = vpop.f32.mrf.mxu0
      %1154 = vmatprep.mubr.bf16.mxu0 0
      %1155 = vmatmul.mubr.bf16.gmra.mxu0 %v1093
      %v1156 = vpop.f32.mrf.mxu0
      %v1157 = vadd.f32 0.0, %v1156
      %v1158 = vpop.f32.mrf.mxu0
      %v1159 = vpop.f32.mrf.mxu0
      %v1160 = vadd.f32 0.0, %v1159
      %v1161 = vpop.f32.mrf.mxu0
      %1162 = vdwg.mxu0
      %v1163 = vadd.f32 %v1005, %v1133
      %v1164 = vadd.f32 %v1006, %v1136
      %v1165 = vadd.f32 %v1007, %v1141
      %v1166 = vadd.f32 %v1008, %v1144
      %v1167 = vadd.f32 %v1009, %v1149
      %v1168 = vadd.f32 %v1010, %v1152
      %v1169 = vadd.f32 %v1011, %v1157
      %v1170 = vadd.f32 %v1012, %v1160
      %s1171 = scalar_lea.vmem %s165, 16
      %v1172 = vld [vmem:[%s1171] sm:$0xf]
      %v1173 = vld [vmem:[%s1171 + $0x8] sm:$0xf]
      %v1174 = vld [vmem:[%s1171 + $0x10] sm:$0xf]
      %v1175 = vld [vmem:[%s1171 + $0x18] sm:$0xf]
      %v1176 = vld [vmem:[%s1171 + $0x20] sm:$0xf]
      %v1177 = vld [vmem:[%s1171 + $0x28] sm:$0xf]
      %v1178 = vld [vmem:[%s1171 + $0x30] sm:$0xf]
      %v1179 = vld [vmem:[%s1171 + $0x38] sm:$0xf]
      %s1180 = scalar_lea.vmem %s1, 12
      %v1181 = vld [vmem:[%s1180] sm:$0x3]
      %v1190 = vunpack.c.l.b16 %v1172
      %v1191 = vunpack.c.l.b16 %v1173
      %v1192 = vunpack.c.l.b16 %v1174
      %v1193 = vunpack.c.l.b16 %v1175
      %v1194 = vunpack.c.l.b16 %v1176
      %v1195 = vunpack.c.l.b16 %v1177
      %v1196 = vunpack.c.l.b16 %v1178
      %v1197 = vunpack.c.l.b16 %v1179
      %v1198 = vpack.c.b16 %v1191, %v1190
      %v1199 = vpack.c.b16 %v1193, %v1192
      %v1200 = vpack.c.b16 %v1195, %v1194
      %v1201 = vpack.c.b16 %v1197, %v1196
      %v1203 = vsel %vm318, %v1198, 0
      %v1206 = vsel %vm318, %v1199, 0
      %v1209 = vsel %vm318, %v1200, 0
      %v1212 = vsel %vm318, %v1201, 0
      %v1215 = vand.u32 %v1181, %v334
      %1217 = vmatprep.subr.bf16.mxu0 0
      %1218 = vmatpush1.bf16.msra.mxu0 0
      %1219 = vmatprep.subr.bf16.mxu0 0
      %1220 = vmatpush1.bf16.msra.mxu0 0
      %1221 = vmatprep.subr.bf16.mxu0 0
      %1222 = vmatpush1.bf16.msra.mxu0 0
      %1223 = vmatprep.subr.bf16.mxu0 0
      %1224 = vmatpush1.bf16.msra.mxu0 0
      %1225 = vmatprep.subr.bf16.mxu0 0
      %1226 = vmatpush1.bf16.msra.mxu0 0
      %1227 = vmatprep.subr.bf16.mxu0 0
      %1228 = vmatpush1.bf16.msra.mxu0 0
      %1229 = vmatprep.subr.bf16.mxu0 0
      %1230 = vmatpush1.bf16.msra.mxu0 0
      %1231 = vmatprep.subr.bf16.mxu0 0
      %1232 = vmatpush1.bf16.msra.mxu0 %v1215
      %1233 = vmatprep.subr.bf16.mxu0 0
      %1234 = vmatpush2.bf16.msra.mxu0 0
      %1235 = vmatprep.subr.bf16.mxu0 0
      %1236 = vmatpush2.bf16.msra.mxu0 0
      %1237 = vmatprep.subr.bf16.mxu0 0
      %1238 = vmatpush2.bf16.msra.mxu0 0
      %1239 = vmatprep.subr.bf16.mxu0 0
      %1240 = vmatpush2.bf16.msra.mxu0 0
      %1241 = vmatprep.subr.bf16.mxu0 0
      %1242 = vmatpush2.bf16.msra.mxu0 0
      %1243 = vmatprep.subr.bf16.mxu0 0
      %1244 = vmatpush2.bf16.msra.mxu0 0
      %1245 = vmatprep.subr.bf16.mxu0 0
      %1246 = vmatpush2.bf16.msra.mxu0 0
      %1247 = vmatprep.subr.bf16.mxu0 0
      %1248 = vmatpush2.bf16.msra.mxu0 0
      %1249 = vmatprep.mubr.bf16.mxu0 0
      %1250 = vmatmul.mubr.bf16.gmra.mxu0 %v1203
      %v1251 = vpop.f32.mrf.mxu0
      %v1252 = vadd.f32 0.0, %v1251
      %v1253 = vpop.f32.mrf.mxu0
      %v1254 = vpop.f32.mrf.mxu0
      %v1255 = vadd.f32 0.0, %v1254
      %v1256 = vpop.f32.mrf.mxu0
      %1257 = vmatprep.mubr.bf16.mxu0 0
      %1258 = vmatmul.mubr.bf16.gmra.mxu0 %v1206
      %v1259 = vpop.f32.mrf.mxu0
      %v1260 = vadd.f32 0.0, %v1259
      %v1261 = vpop.f32.mrf.mxu0
      %v1262 = vpop.f32.mrf.mxu0
      %v1263 = vadd.f32 0.0, %v1262
      %v1264 = vpop.f32.mrf.mxu0
      %1265 = vmatprep.mubr.bf16.mxu0 0
      %1266 = vmatmul.mubr.bf16.gmra.mxu0 %v1209
      %v1267 = vpop.f32.mrf.mxu0
      %v1268 = vadd.f32 0.0, %v1267
      %v1269 = vpop.f32.mrf.mxu0
      %v1270 = vpop.f32.mrf.mxu0
      %v1271 = vadd.f32 0.0, %v1270
      %v1272 = vpop.f32.mrf.mxu0
      %1273 = vmatprep.mubr.bf16.mxu0 0
      %1274 = vmatmul.mubr.bf16.gmra.mxu0 %v1212
      %v1275 = vpop.f32.mrf.mxu0
      %v1276 = vadd.f32 0.0, %v1275
      %v1277 = vpop.f32.mrf.mxu0
      %v1278 = vpop.f32.mrf.mxu0
      %v1279 = vadd.f32 0.0, %v1278
      %v1280 = vpop.f32.mrf.mxu0
      %1281 = vdwg.mxu0
      %v1282 = vadd.f32 %v1163, %v1252
      %v1283 = vadd.f32 %v1164, %v1255
      %v1284 = vadd.f32 %v1165, %v1260
      %v1285 = vadd.f32 %v1166, %v1263
      %v1286 = vadd.f32 %v1167, %v1268
      %v1287 = vadd.f32 %v1168, %v1271
      %v1288 = vadd.f32 %v1169, %v1276
      %v1289 = vadd.f32 %v1170, %v1279
      %v1290 = vld [vmem:[%s1171] sm:$0xf]
      %v1291 = vld [vmem:[%s1171 + $0x4] sm:$0x1]
      %v1292 = vld [vmem:[%s1171 + $0x8] sm:$0xf]
      %v1293 = vld [vmem:[%s1171 + $0xc] sm:$0x1]
      %v1294 = vld [vmem:[%s1171 + $0x10] sm:$0xf]
      %v1295 = vld [vmem:[%s1171 + $0x14] sm:$0x1]
      %v1296 = vld [vmem:[%s1171 + $0x18] sm:$0xf]
      %v1297 = vld [vmem:[%s1171 + $0x1c] sm:$0x1]
      %v1298 = vld [vmem:[%s1171 + $0x20] sm:$0xf]
      %v1299 = vld [vmem:[%s1171 + $0x24] sm:$0x1]
      %v1300 = vld [vmem:[%s1171 + $0x28] sm:$0xf]
      %v1301 = vld [vmem:[%s1171 + $0x2c] sm:$0x1]
      %v1302 = vld [vmem:[%s1171 + $0x30] sm:$0xf]
      %v1303 = vld [vmem:[%s1171 + $0x34] sm:$0x1]
      %v1304 = vld [vmem:[%s1171 + $0x38] sm:$0xf]
      %v1305 = vld [vmem:[%s1171 + $0x3c] sm:$0x1]
      %v1307 = vshrl.u32 %v1290, 16
      %v1309 = vrot.slane %v1307, 4
      %v1310 = vshll.u32 %v1290, 16
      %v1312 = vrot.slane %v1310, 5
      %v1313 = vor.u32 %v1309, %v1312
      %v1314 = vrot.slane %v1313, 4
      %v1316 = vshll.u32 %v1291, 16
      %v1318 = vrot.slane %v1316, 5
      %v1319 = vsel %vm191, %v1314, %v1318
      %v1321 = vshrl.u32 %v1292, 16
      %v1323 = vrot.slane %v1321, 4
      %v1324 = vshll.u32 %v1292, 16
      %v1326 = vrot.slane %v1324, 5
      %v1327 = vor.u32 %v1323, %v1326
      %v1328 = vrot.slane %v1327, 4
      %v1330 = vshll.u32 %v1293, 16
      %v1332 = vrot.slane %v1330, 5
      %v1333 = vsel %vm191, %v1328, %v1332
      %v1335 = vshrl.u32 %v1294, 16
      %v1337 = vrot.slane %v1335, 4
      %v1338 = vshll.u32 %v1294, 16
      %v1340 = vrot.slane %v1338, 5
      %v1341 = vor.u32 %v1337, %v1340
      %v1342 = vrot.slane %v1341, 4
      %v1344 = vshll.u32 %v1295, 16
      %v1346 = vrot.slane %v1344, 5
      %v1347 = vsel %vm191, %v1342, %v1346
      %v1349 = vshrl.u32 %v1296, 16
      %v1351 = vrot.slane %v1349, 4
      %v1352 = vshll.u32 %v1296, 16
      %v1354 = vrot.slane %v1352, 5
      %v1355 = vor.u32 %v1351, %v1354
      %v1356 = vrot.slane %v1355, 4
      %v1358 = vshll.u32 %v1297, 16
      %v1360 = vrot.slane %v1358, 5
      %v1361 = vsel %vm191, %v1356, %v1360
      %v1363 = vshrl.u32 %v1298, 16
      %v1365 = vrot.slane %v1363, 4
      %v1366 = vshll.u32 %v1298, 16
      %v1368 = vrot.slane %v1366, 5
      %v1369 = vor.u32 %v1365, %v1368
      %v1370 = vrot.slane %v1369, 4
      %v1372 = vshll.u32 %v1299, 16
      %v1374 = vrot.slane %v1372, 5
      %v1375 = vsel %vm191, %v1370, %v1374
      %v1377 = vshrl.u32 %v1300, 16
      %v1379 = vrot.slane %v1377, 4
      %v1380 = vshll.u32 %v1300, 16
      %v1382 = vrot.slane %v1380, 5
      %v1383 = vor.u32 %v1379, %v1382
      %v1384 = vrot.slane %v1383, 4
      %v1386 = vshll.u32 %v1301, 16
      %v1388 = vrot.slane %v1386, 5
      %v1389 = vsel %vm191, %v1384, %v1388
      %v1391 = vshrl.u32 %v1302, 16
      %v1393 = vrot.slane %v1391, 4
      %v1394 = vshll.u32 %v1302, 16
      %v1396 = vrot.slane %v1394, 5
      %v1397 = vor.u32 %v1393, %v1396
      %v1398 = vrot.slane %v1397, 4
      %v1400 = vshll.u32 %v1303, 16
      %v1402 = vrot.slane %v1400, 5
      %v1403 = vsel %vm191, %v1398, %v1402
      %v1405 = vshrl.u32 %v1304, 16
      %v1407 = vrot.slane %v1405, 4
      %v1408 = vshll.u32 %v1304, 16
      %v1410 = vrot.slane %v1408, 5
      %v1411 = vor.u32 %v1407, %v1410
      %v1412 = vrot.slane %v1411, 4
      %v1414 = vshll.u32 %v1305, 16
      %v1416 = vrot.slane %v1414, 5
      %v1417 = vsel %vm191, %v1412, %v1416
      %s1418 = scalar_lea.vmem %s1, 14
      %v1419 = vld [vmem:[%s1418] sm:$0x3]
      %v1420 = vunpack.c.l.b16 %v1319
      %v1421 = vunpack.c.l.b16 %v1333
      %v1422 = vunpack.c.l.b16 %v1347
      %v1423 = vunpack.c.l.b16 %v1361
      %v1424 = vunpack.c.l.b16 %v1375
      %v1425 = vunpack.c.l.b16 %v1389
      %v1426 = vunpack.c.l.b16 %v1403
      %v1427 = vunpack.c.l.b16 %v1417
      %v1428 = vpack.c.b16 %v1421, %v1420
      %v1429 = vpack.c.b16 %v1423, %v1422
      %v1430 = vpack.c.b16 %v1425, %v1424
      %v1431 = vpack.c.b16 %v1427, %v1426
      %v1433 = vsel %vm318, %v1428, 0
      %v1436 = vsel %vm318, %v1429, 0
      %v1439 = vsel %vm318, %v1430, 0
      %v1442 = vsel %vm318, %v1431, 0
      %v1445 = vand.u32 %v1419, %v334
      %1447 = vmatprep.subr.bf16.mxu0 0
      %1448 = vmatpush1.bf16.msra.mxu0 0
      %1449 = vmatprep.subr.bf16.mxu0 0
      %1450 = vmatpush1.bf16.msra.mxu0 0
      %1451 = vmatprep.subr.bf16.mxu0 0
      %1452 = vmatpush1.bf16.msra.mxu0 0
      %1453 = vmatprep.subr.bf16.mxu0 0
      %1454 = vmatpush1.bf16.msra.mxu0 0
      %1455 = vmatprep.subr.bf16.mxu0 0
      %1456 = vmatpush1.bf16.msra.mxu0 0
      %1457 = vmatprep.subr.bf16.mxu0 0
      %1458 = vmatpush1.bf16.msra.mxu0 0
      %1459 = vmatprep.subr.bf16.mxu0 0
      %1460 = vmatpush1.bf16.msra.mxu0 0
      %1461 = vmatprep.subr.bf16.mxu0 0
      %1462 = vmatpush1.bf16.msra.mxu0 %v1445
      %1463 = vmatprep.subr.bf16.mxu0 0
      %1464 = vmatpush2.bf16.msra.mxu0 0
      %1465 = vmatprep.subr.bf16.mxu0 0
      %1466 = vmatpush2.bf16.msra.mxu0 0
      %1467 = vmatprep.subr.bf16.mxu0 0
      %1468 = vmatpush2.bf16.msra.mxu0 0
      %1469 = vmatprep.subr.bf16.mxu0 0
      %1470 = vmatpush2.bf16.msra.mxu0 0
      %1471 = vmatprep.subr.bf16.mxu0 0
      %1472 = vmatpush2.bf16.msra.mxu0 0
      %1473 = vmatprep.subr.bf16.mxu0 0
      %1474 = vmatpush2.bf16.msra.mxu0 0
      %1475 = vmatprep.subr.bf16.mxu0 0
      %1476 = vmatpush2.bf16.msra.mxu0 0
      %1477 = vmatprep.subr.bf16.mxu0 0
      %1478 = vmatpush2.bf16.msra.mxu0 0
      %1479 = vmatprep.mubr.bf16.mxu0 0
      %1480 = vmatmul.mubr.bf16.gmra.mxu0 %v1433
      %v1481 = vpop.f32.mrf.mxu0
      %v1482 = vadd.f32 0.0, %v1481
      %v1483 = vpop.f32.mrf.mxu0
      %v1484 = vpop.f32.mrf.mxu0
      %v1485 = vadd.f32 0.0, %v1484
      %v1486 = vpop.f32.mrf.mxu0
      %1487 = vmatprep.mubr.bf16.mxu0 0
      %1488 = vmatmul.mubr.bf16.gmra.mxu0 %v1436
      %v1489 = vpop.f32.mrf.mxu0
      %v1490 = vadd.f32 0.0, %v1489
      %v1491 = vpop.f32.mrf.mxu0
      %v1492 = vpop.f32.mrf.mxu0
      %v1493 = vadd.f32 0.0, %v1492
      %v1494 = vpop.f32.mrf.mxu0
      %1495 = vmatprep.mubr.bf16.mxu0 0
      %1496 = vmatmul.mubr.bf16.gmra.mxu0 %v1439
      %v1497 = vpop.f32.mrf.mxu0
      %v1498 = vadd.f32 0.0, %v1497
      %v1499 = vpop.f32.mrf.mxu0
      %v1500 = vpop.f32.mrf.mxu0
      %v1501 = vadd.f32 0.0, %v1500
      %v1502 = vpop.f32.mrf.mxu0
      %1503 = vmatprep.mubr.bf16.mxu0 0
      %1504 = vmatmul.mubr.bf16.gmra.mxu0 %v1442
      %v1505 = vpop.f32.mrf.mxu0
      %v1506 = vadd.f32 0.0, %v1505
      %v1507 = vpop.f32.mrf.mxu0
      %v1508 = vpop.f32.mrf.mxu0
      %v1509 = vadd.f32 0.0, %v1508
      %v1510 = vpop.f32.mrf.mxu0
      %1511 = vdwg.mxu0
      %v1512 = vadd.f32 %v1282, %v1482
      %v1513 = vadd.f32 %v1283, %v1485
      %v1514 = vadd.f32 %v1284, %v1490
      %v1515 = vadd.f32 %v1285, %v1493
      %v1516 = vadd.f32 %v1286, %v1498
      %v1517 = vadd.f32 %v1287, %v1501
      %v1518 = vadd.f32 %v1288, %v1506
      %v1519 = vadd.f32 %v1289, %v1509
      %v1520 = vld [vmem:[%s1171] sm:$0xe]
      %v1521 = vld [vmem:[%s1171 + $0x8] sm:$0xe]
      %v1522 = vld [vmem:[%s1171 + $0x10] sm:$0xe]
      %v1523 = vld [vmem:[%s1171 + $0x18] sm:$0xe]
      %v1524 = vld [vmem:[%s1171 + $0x20] sm:$0xe]
      %v1525 = vld [vmem:[%s1171 + $0x28] sm:$0xe]
      %v1526 = vld [vmem:[%s1171 + $0x30] sm:$0xe]
      %v1527 = vld [vmem:[%s1171 + $0x38] sm:$0xe]
      %v1544 = vrot.slane %v1520, 5
      %v1545 = vrot.slane %v1544, 4
      %v1546 = vrot.slane %v1291, 5
      %v1547 = vsel %vm529, %v1545, %v1546
      %v1548 = vrot.slane %v1521, 5
      %v1549 = vrot.slane %v1548, 4
      %v1550 = vrot.slane %v1293, 5
      %v1551 = vsel %vm529, %v1549, %v1550
      %v1552 = vrot.slane %v1522, 5
      %v1553 = vrot.slane %v1552, 4
      %v1554 = vrot.slane %v1295, 5
      %v1555 = vsel %vm529, %v1553, %v1554
      %v1556 = vrot.slane %v1523, 5
      %v1557 = vrot.slane %v1556, 4
      %v1558 = vrot.slane %v1297, 5
      %v1559 = vsel %vm529, %v1557, %v1558
      %v1560 = vrot.slane %v1524, 5
      %v1561 = vrot.slane %v1560, 4
      %v1562 = vrot.slane %v1299, 5
      %v1563 = vsel %vm529, %v1561, %v1562
      %v1564 = vrot.slane %v1525, 5
      %v1565 = vrot.slane %v1564, 4
      %v1566 = vrot.slane %v1301, 5
      %v1567 = vsel %vm529, %v1565, %v1566
      %v1568 = vrot.slane %v1526, 5
      %v1569 = vrot.slane %v1568, 4
      %v1570 = vrot.slane %v1303, 5
      %v1571 = vsel %vm529, %v1569, %v1570
      %v1572 = vrot.slane %v1527, 5
      %v1573 = vrot.slane %v1572, 4
      %v1574 = vrot.slane %v1305, 5
      %v1575 = vsel %vm529, %v1573, %v1574
      %s1576 = scalar_lea.vmem %s1, 16
      %v1577 = vld [vmem:[%s1576] sm:$0x3]
      %v1578 = vunpack.c.l.b16 %v1547
      %v1579 = vunpack.c.l.b16 %v1551
      %v1580 = vunpack.c.l.b16 %v1555
      %v1581 = vunpack.c.l.b16 %v1559
      %v1582 = vunpack.c.l.b16 %v1563
      %v1583 = vunpack.c.l.b16 %v1567
      %v1584 = vunpack.c.l.b16 %v1571
      %v1585 = vunpack.c.l.b16 %v1575
      %v1586 = vpack.c.b16 %v1579, %v1578
      %v1587 = vpack.c.b16 %v1581, %v1580
      %v1588 = vpack.c.b16 %v1583, %v1582
      %v1589 = vpack.c.b16 %v1585, %v1584
      %v1591 = vsel %vm318, %v1586, 0
      %v1594 = vsel %vm318, %v1587, 0
      %v1597 = vsel %vm318, %v1588, 0
      %v1600 = vsel %vm318, %v1589, 0
      %v1603 = vand.u32 %v1577, %v334
      %1605 = vmatprep.subr.bf16.mxu0 0
      %1606 = vmatpush1.bf16.msra.mxu0 0
      %1607 = vmatprep.subr.bf16.mxu0 0
      %1608 = vmatpush1.bf16.msra.mxu0 0
      %1609 = vmatprep.subr.bf16.mxu0 0
      %1610 = vmatpush1.bf16.msra.mxu0 0
      %1611 = vmatprep.subr.bf16.mxu0 0
      %1612 = vmatpush1.bf16.msra.mxu0 0
      %1613 = vmatprep.subr.bf16.mxu0 0
      %1614 = vmatpush1.bf16.msra.mxu0 0
      %1615 = vmatprep.subr.bf16.mxu0 0
      %1616 = vmatpush1.bf16.msra.mxu0 0
      %1617 = vmatprep.subr.bf16.mxu0 0
      %1618 = vmatpush1.bf16.msra.mxu0 0
      %1619 = vmatprep.subr.bf16.mxu0 0
      %1620 = vmatpush1.bf16.msra.mxu0 %v1603
      %1621 = vmatprep.subr.bf16.mxu0 0
      %1622 = vmatpush2.bf16.msra.mxu0 0
      %1623 = vmatprep.subr.bf16.mxu0 0
      %1624 = vmatpush2.bf16.msra.mxu0 0
      %1625 = vmatprep.subr.bf16.mxu0 0
      %1626 = vmatpush2.bf16.msra.mxu0 0
      %1627 = vmatprep.subr.bf16.mxu0 0
      %1628 = vmatpush2.bf16.msra.mxu0 0
      %1629 = vmatprep.subr.bf16.mxu0 0
      %1630 = vmatpush2.bf16.msra.mxu0 0
      %1631 = vmatprep.subr.bf16.mxu0 0
      %1632 = vmatpush2.bf16.msra.mxu0 0
      %1633 = vmatprep.subr.bf16.mxu0 0
      %1634 = vmatpush2.bf16.msra.mxu0 0
      %1635 = vmatprep.subr.bf16.mxu0 0
      %1636 = vmatpush2.bf16.msra.mxu0 0
      %1637 = vmatprep.mubr.bf16.mxu0 0
      %1638 = vmatmul.mubr.bf16.gmra.mxu0 %v1591
      %v1639 = vpop.f32.mrf.mxu0
      %v1640 = vadd.f32 0.0, %v1639
      %v1641 = vpop.f32.mrf.mxu0
      %v1642 = vpop.f32.mrf.mxu0
      %v1643 = vadd.f32 0.0, %v1642
      %v1644 = vpop.f32.mrf.mxu0
      %1645 = vmatprep.mubr.bf16.mxu0 0
      %1646 = vmatmul.mubr.bf16.gmra.mxu0 %v1594
      %v1647 = vpop.f32.mrf.mxu0
      %v1648 = vadd.f32 0.0, %v1647
      %v1649 = vpop.f32.mrf.mxu0
      %v1650 = vpop.f32.mrf.mxu0
      %v1651 = vadd.f32 0.0, %v1650
      %v1652 = vpop.f32.mrf.mxu0
      %1653 = vmatprep.mubr.bf16.mxu0 0
      %1654 = vmatmul.mubr.bf16.gmra.mxu0 %v1597
      %v1655 = vpop.f32.mrf.mxu0
      %v1656 = vadd.f32 0.0, %v1655
      %v1657 = vpop.f32.mrf.mxu0
      %v1658 = vpop.f32.mrf.mxu0
      %v1659 = vadd.f32 0.0, %v1658
      %v1660 = vpop.f32.mrf.mxu0
      %1661 = vmatprep.mubr.bf16.mxu0 0
      %1662 = vmatmul.mubr.bf16.gmra.mxu0 %v1600
      %v1663 = vpop.f32.mrf.mxu0
      %v1664 = vadd.f32 0.0, %v1663
      %v1665 = vpop.f32.mrf.mxu0
      %v1666 = vpop.f32.mrf.mxu0
      %v1667 = vadd.f32 0.0, %v1666
      %v1668 = vpop.f32.mrf.mxu0
      %1669 = vdwg.mxu0
      %v1670 = vadd.f32 %v1512, %v1640
      %v1671 = vadd.f32 %v1513, %v1643
      %v1672 = vadd.f32 %v1514, %v1648
      %v1673 = vadd.f32 %v1515, %v1651
      %v1674 = vadd.f32 %v1516, %v1656
      %v1675 = vadd.f32 %v1517, %v1659
      %v1676 = vadd.f32 %v1518, %v1664
      %v1677 = vadd.f32 %v1519, %v1667
      %v1678 = vld [vmem:[%s2] sm:$0x1]
      %v1680 = vlaneseq
      %v1681 = vshrl.u32 %v1680, 7
      %v1682 = vsub.s32 0, %v1681
      %v1683 = vrot.slane %v1678, %v1682
      %v1685 = vadd.f32 %v1670, %v1683
      %v1686 = vadd.f32 %v1671, %v1683
      %v1687 = vadd.f32 %v1672, %v1683
      %v1688 = vadd.f32 %v1673, %v1683
      %v1689 = vadd.f32 %v1674, %v1683
      %v1690 = vadd.f32 %v1675, %v1683
      %v1691 = vadd.f32 %v1676, %v1683
      %v1692 = vadd.f32 %v1677, %v1683
      %v1693 = vpack.c.bf16 %v1685, %v1685
      %v1694 = vpack.c.bf16 %v1686, %v1686
      %v1695 = vpack.c.bf16 %v1687, %v1687
      %v1696 = vpack.c.bf16 %v1688, %v1688
      %v1697 = vpack.c.bf16 %v1689, %v1689
      %v1698 = vpack.c.bf16 %v1690, %v1690
      %v1699 = vpack.c.bf16 %v1691, %v1691
      %v1700 = vpack.c.bf16 %v1692, %v1692
      %vm1701 = vcmask 257024
      %1702 = vst.msk [vmem:[%s170] sm:$0xf] %vm1701, %v1693
      %1703 = vst.msk [vmem:[%s170 + $0x4] sm:$0xf] %vm1701, %v1694
      %1704 = vst.msk [vmem:[%s170 + $0x8] sm:$0xf] %vm1701, %v1695
      %1705 = vst.msk [vmem:[%s170 + $0xc] sm:$0xf] %vm1701, %v1696
      %1706 = vst.msk [vmem:[%s170 + $0x10] sm:$0xf] %vm1701, %v1697
      %1707 = vst.msk [vmem:[%s170 + $0x14] sm:$0xf] %vm1701, %v1698
      %1708 = vst.msk [vmem:[%s170 + $0x18] sm:$0xf] %vm1701, %v1699
      %1709 = vst.msk [vmem:[%s170 + $0x1c] sm:$0xf] %vm1701, %v1700
      %p1710 = scmp.lt.s32.totalorder %s14, 1
      %s1711 = scalar_select %p1710, %s14, 1
      %s1712 = smul.addr %s1711, 8
      %s1713 = smul.addr %s1712, 4
      %s1714 = scalar_lea.vmem %s3, %s1713
      // Predicated region
      $region33: #{_lambda_.6} parent=31 // pred_check
        %p1715 = pneg %p100
      $region34: #{_lambda_.6} parent=31 // pred_check_branch
        %1717 = sbr.rel (%p1715) target = $region36
      $region35: #{_lambda_.6} parent=31 // pred_region
        _
      $region36: #{_lambda_.6} parent=31 // pred_fallthru
        _
    $region32: #{_lambda_.6} parent=5 // pred_fallthru
      _
    %p1718 = scmp.le.s32.totalorder 2, %s9
    // Predicated region
    $region37: #{_lambda_.6} parent=5 // pred_check
      %p1719 = pneg %p1718
    $region38: #{_lambda_.6} parent=5 // pred_check_branch
      %1721 = sbr.rel (%p1719) target = $region40
    $region39: #{_lambda_.6} parent=5 // pred_region
      %s1722 = ssub.s32 %s9, 2
      // Predicated region
      $region41: #{_lambda_.6} parent=39 // pred_check
        %p1723 = pneg %p106
      $region42: #{_lambda_.6} parent=39 // pred_check_branch
        %1725 = sbr.rel (%p1723) target = $region44
      $region43: #{_lambda_.6} parent=39 // pred_region
        %p1726 = scmp.lt.s32.totalorder %s15, 1
        %s1727 = scalar_select %p1726, %s15, 1
        %s1728 = smul.addr %s1727, 8
        %s1729 = smul.addr %s1728, 4
        %s1730 = scalar_lea.vmem %s3, %s1729
      $region44: #{_lambda_.6} parent=39 // pred_fallthru
        _
    $region40: #{_lambda_.6} parent=5 // pred_fallthru
      _
  $region6: #{_lambda_.6} parent=0 // loop_footer
    %s13 = sadd.s32 1, %s9
  $region7: #{_lambda_.6} parent=0 // loop_footer_branch
    %8 = sbr.rel target = $region3
  $region8: #{_lambda_.6} parent=0 // loop_exit
    _

// kernel: _lambda_.8
$region0: #{_lambda_.8}
  #allocation0 [shape = 'u32[]', space=smem, size = 0x4, offset = 0x4, fixed_abs, tag = 'smem constant byte address 0x4 - core index']
  #allocation1 [shape = 'u32[144,128]{1,0:T(1,128)}', space=vmem, size = 0x12000, scoped, tag = 'internal scratch']
  %s0 = inlined_call_operand.vmem [shape: bf16[2,10,10,32], index: 0, kind: input, shape index: {}]
  %s1 = inlined_call_operand.vmem [shape: bf16[9,32,32], index: 1, kind: input, shape index: {}]
  %s2 = inlined_call_operand.vmem [shape: f32[1,32], index: 2, kind: input, shape index: {}]
  %s3 = inlined_call_operand.vmem [shape: bf16[2,8,8,32], index: 3, kind: input, shape index: {}]
  %s4 = inlined_call_operand.vmem [shape: bf16[2,8,8,32], index: 4, kind: output, shape index: {}]
  %s5 = sld [smem:[#allocation0]]
  $region49: #{_lambda_.8} parent=0
    _
  %s7 = ssub.s32 1, %s5
  %s8 = scalar_select 0, %s7, %s5
  loop: start=0, step=1, limit=4
  $region2: #{_lambda_.8} parent=0 // loop_pre_header
    _
  $region3: #{_lambda_.8} parent=0 // loop_header
    %s10 = sphi 0, %s14
    %p11 = scmp.ge.s32.totalorder %s10, 4
    %s20 = sphi 0, %s22
    %s23 = sphi 0, %s20
    %s24 = sphi 0, %s23
    %s40 = sphi 0, %s24
    %s44 = sphi 0, %s44
    %s46 = sphi 0, %s44
    %s47 = sphi 0, %s46
    %s61 = sphi 0, %s47
    %s65 = sphi 0, %s65
    %s67 = sphi 0, %s65
    %s68 = sphi 0, %s67
    %s82 = sphi 0, %s68
    %s88 = sphi 0, %s90
    %s91 = sphi 0, %s88
    %s92 = sphi 0, %s91
    %s108 = sphi 0, %s92
    %s114 = sphi 0, %s116
    %s117 = sphi 0, %s114
    %s118 = sphi 0, %s117
    %s134 = sphi 0, %s118
  $region4: #{_lambda_.8} parent=0 // loop_header_branch
    %13 = sbr.rel (%p11) target = $region8
  $region5: #{_lambda_.8} parent=0 // loop_body
    %s15 = ssub.s32 %s10, 1
    %s16 = ssub.s32 %s10, 2
    %s17 = sadd.s32 %s10, 1
    %s18 = ssub.s32 %s10, %s17
    %p19 = scmp.eq.s32.totalorder %s18, 0
    %s21 = sadd.s32 %s20, 1
    %s22 = scalar_select %p19, %s20, %s21
    %p25 = pneg %p19
    %p26 = scmp.eq.s32.totalorder %s10, 1
    %p27 = por %p25, %p26
    %p28 = scmp.ne.s32.totalorder %s20, %s23
    %p29 = scmp.eq.s32.totalorder %s10, 0
    %p30 = por %p28, %p29
    %p31 = scmp.ne.s32.totalorder %s20, %s23
    %p32 = scmp.eq.s32.totalorder %s15, 1
    %p33 = por %p31, %p32
    %p34 = scmp.ne.s32.totalorder %s23, %s24
    %p35 = scmp.eq.s32.totalorder %s15, 0
    %p36 = por %p34, %p35
    %p37 = scmp.ne.s32.totalorder %s23, %s24
    %p38 = scmp.eq.s32.totalorder %s16, 1
    %p39 = por %p37, %p38
    %p41 = scmp.ne.s32.totalorder %s24, %s40
    %p42 = scmp.eq.s32.totalorder %s16, 0
    %p43 = por %p41, %p42
    %s45 = sadd.s32 %s44, 1
    %p48 = scmp.eq.s32.totalorder %s10, 1
    %p49 = scmp.ne.s32.totalorder %s44, %s46
    %p50 = scmp.eq.s32.totalorder %s10, 0
    %p51 = por %p49, %p50
    %p52 = scmp.ne.s32.totalorder %s44, %s46
    %p53 = scmp.eq.s32.totalorder %s15, 1
    %p54 = por %p52, %p53
    %p55 = scmp.ne.s32.totalorder %s46, %s47
    %p56 = scmp.eq.s32.totalorder %s15, 0
    %p57 = por %p55, %p56
    %p58 = scmp.ne.s32.totalorder %s46, %s47
    %p59 = scmp.eq.s32.totalorder %s16, 1
    %p60 = por %p58, %p59
    %p62 = scmp.ne.s32.totalorder %s47, %s61
    %p63 = scmp.eq.s32.totalorder %s16, 0
    %p64 = por %p62, %p63
    %s66 = sadd.s32 %s65, 1
    %p69 = scmp.eq.s32.totalorder %s10, 1
    %p70 = scmp.ne.s32.totalorder %s65, %s67
    %p71 = scmp.eq.s32.totalorder %s10, 0
    %p72 = por %p70, %p71
    %p73 = scmp.ne.s32.totalorder %s65, %s67
    %p74 = scmp.eq.s32.totalorder %s15, 1
    %p75 = por %p73, %p74
    %p76 = scmp.ne.s32.totalorder %s67, %s68
    %p77 = scmp.eq.s32.totalorder %s15, 0
    %p78 = por %p76, %p77
    %p79 = scmp.ne.s32.totalorder %s67, %s68
    %p80 = scmp.eq.s32.totalorder %s16, 1
    %p81 = por %p79, %p80
    %p83 = scmp.ne.s32.totalorder %s68, %s82
    %p84 = scmp.eq.s32.totalorder %s16, 0
    %p85 = por %p83, %p84
    %s86 = ssub.s32 %s10, %s17
    %p87 = scmp.eq.s32.totalorder %s86, 0
    %s89 = sadd.s32 %s88, 1
    %s90 = scalar_select %p87, %s88, %s89
    %p93 = pneg %p87
    %p94 = scmp.eq.s32.totalorder %s10, 1
    %p95 = por %p93, %p94
    %p96 = scmp.ne.s32.totalorder %s88, %s91
    %p97 = scmp.eq.s32.totalorder %s10, 0
    %p98 = por %p96, %p97
    %p99 = scmp.ne.s32.totalorder %s88, %s91
    %p100 = scmp.eq.s32.totalorder %s15, 1
    %p101 = por %p99, %p100
    %p102 = scmp.ne.s32.totalorder %s91, %s92
    %p103 = scmp.eq.s32.totalorder %s15, 0
    %p104 = por %p102, %p103
    %p105 = scmp.ne.s32.totalorder %s91, %s92
    %p106 = scmp.eq.s32.totalorder %s16, 1
    %p107 = por %p105, %p106
    %p109 = scmp.ne.s32.totalorder %s92, %s108
    %p110 = scmp.eq.s32.totalorder %s16, 0
    %p111 = por %p109, %p110
    %s112 = ssub.s32 %s10, %s17
    %p113 = scmp.eq.s32.totalorder %s112, 0
    %s115 = sadd.s32 %s114, 1
    %s116 = scalar_select %p113, %s114, %s115
    %p119 = pneg %p113
    %p120 = scmp.eq.s32.totalorder %s10, 1
    %p121 = por %p119, %p120
    %p122 = scmp.ne.s32.totalorder %s114, %s117
    %p123 = scmp.eq.s32.totalorder %s10, 0
    %p124 = por %p122, %p123
    %p125 = scmp.ne.s32.totalorder %s114, %s117
    %p126 = scmp.eq.s32.totalorder %s15, 1
    %p127 = por %p125, %p126
    %p128 = scmp.ne.s32.totalorder %s117, %s118
    %p129 = scmp.eq.s32.totalorder %s15, 0
    %p130 = por %p128, %p129
    %p131 = scmp.ne.s32.totalorder %s117, %s118
    %p132 = scmp.eq.s32.totalorder %s16, 1
    %p133 = por %p131, %p132
    %p135 = scmp.ne.s32.totalorder %s118, %s134
    %p136 = scmp.eq.s32.totalorder %s16, 0
    %p137 = por %p135, %p136
    %p138 = scmp.le.s32.totalorder 1, %s10
    %p139 = scmp.lt.s32.totalorder %s10, 3
    %p140 = pnand %p138, %p139
    %p141 = pneg %p140
    // Predicated region
    $region9: #{_lambda_.8} parent=5 // pred_check
      _
    $region10: #{_lambda_.8} parent=5 // pred_check_branch
      %143 = sbr.rel (%p140) target = $region12
    $region11: #{_lambda_.8} parent=5 // pred_region
      %s144 = ssub.s32 %s10, 1
      // Predicated region
      $region13: #{_lambda_.8} parent=11 // pred_check
        %p145 = pneg %p57
      $region14: #{_lambda_.8} parent=11 // pred_check_branch
        %147 = sbr.rel (%p145) target = $region16
      $region15: #{_lambda_.8} parent=11 // pred_region
        _
      $region16: #{_lambda_.8} parent=11 // pred_fallthru
        _
      // Predicated region
      $region17: #{_lambda_.8} parent=11 // pred_check
        %p148 = pneg %p78
      $region18: #{_lambda_.8} parent=11 // pred_check_branch
        %150 = sbr.rel (%p148) target = $region20
      $region19: #{_lambda_.8} parent=11 // pred_region
        _
      $region20: #{_lambda_.8} parent=11 // pred_fallthru
        _
    $region12: #{_lambda_.8} parent=5 // pred_fallthru
      _
    %p151 = scmp.lt.s32.totalorder %s10, 2
    // Predicated region
    $region21: #{_lambda_.8} parent=5 // pred_check
      %p152 = pneg %p151
    $region22: #{_lambda_.8} parent=5 // pred_check_branch
      %154 = sbr.rel (%p152) target = $region24
    $region23: #{_lambda_.8} parent=5 // pred_region
      // Predicated region
      $region25: #{_lambda_.8} parent=23 // pred_check
        %p155 = pneg %p30
      $region26: #{_lambda_.8} parent=23 // pred_check_branch
        %157 = sbr.rel (%p155) target = $region28
      $region27: #{_lambda_.8} parent=23 // pred_region
        %p158 = scmp.lt.s32.totalorder %s10, 1
        %s159 = scalar_select %p158, %s10, 1
        %s160 = smul.addr %s159, 20
        %s161 = smul.addr %s160, 4
        %s162 = scalar_lea.vmem %s0, %s161
      $region28: #{_lambda_.8} parent=23 // pred_fallthru
        _
      // Predicated region
      $region29: #{_lambda_.8} parent=23 // pred_check
        %p163 = pneg %p98
      $region30: #{_lambda_.8} parent=23 // pred_check_branch
        %165 = sbr.rel (%p163) target = $region32
      $region31: #{_lambda_.8} parent=23 // pred_region
        %p166 = scmp.lt.s32.totalorder %s10, 1
        %s167 = scalar_select %p166, %s10, 1
        %s168 = smul.addr %s167, 8
        %s169 = smul.addr %s168, 4
        %s170 = scalar_lea.vmem %s3, %s169
      $region32: #{_lambda_.8} parent=23 // pred_fallthru
        _
    $region24: #{_lambda_.8} parent=5 // pred_fallthru
      _
    %p171 = scmp.le.s32.totalorder 1, %s10
    %p172 = scmp.lt.s32.totalorder %s10, 3
    %p173 = pnand %p171, %p172
    %p174 = pneg %p173
    // Predicated region
    $region33: #{_lambda_.8} parent=5 // pred_check
      _
    $region34: #{_lambda_.8} parent=5 // pred_check_branch
      %176 = sbr.rel (%p173) target = $region36
    $region35: #{_lambda_.8} parent=5 // pred_region
      %s177 = ssub.s32 %s10, 1
      %p178 = scmp.lt.s32.totalorder %s15, 1
      %s179 = scalar_select %p178, %s15, 1
      %s180 = smul.addr %s179, 20
      %s181 = smul.addr %s180, 4
      %s182 = scalar_lea.vmem %s0, %s181
      %p183 = pneg %p36
      %p184 = pneg %p33
      %p185 = pneg %p57
      %p186 = pneg %p54
      %p187 = pneg %p78
      %p188 = pneg %p75
      %p189 = scmp.lt.s32.totalorder %s15, 1
      %s190 = scalar_select %p189, %s15, 1
      %s191 = smul.addr %s190, 8
      %s192 = smul.addr %s191, 4
      %s193 = scalar_lea.vmem %s3, %s192
      %p194 = pneg %p104
      %p195 = pneg %p101
      %p196 = pneg %p130
      %p197 = pneg %p127
      %p198 = scmp.lt.s32.totalorder %s15, 1
      %s199 = scalar_select %p198, %s15, 1
      %s200 = smul.addr %s199, 8
      %s201 = smul.addr %s200, 4
      %s202 = scalar_lea.vmem %s4, %s201
      %p203 = scmp.lt.s32.totalorder %s15, 1
      %s204 = scalar_select %p203, %s15, 1
      %s205 = smul.addr %s204, 20
      %s206 = smul.addr %s205, 4
      %s207 = scalar_lea.vmem %s0, %s206
      %p208 = scmp.lt.s32.totalorder %s15, 1
      %s209 = scalar_select %p208, %s15, 1
      %s210 = smul.addr %s209, 8
      %s211 = smul.addr %s210, 4
      %s212 = scalar_lea.vmem %s3, %s211
      %p213 = scmp.lt.s32.totalorder %s15, 1
      %s214 = scalar_select %p213, %s15, 1
      %s215 = smul.addr %s214, 8
      %s216 = smul.addr %s215, 4
      %s217 = scalar_lea.vmem %s4, %s216
      %v219 = vld [vmem:[%s207] sm:$0xf]
      %v220 = vld [vmem:[%s207 + $0x8] sm:$0xf]
      %v221 = vld [vmem:[%s207 + $0x10] sm:$0xf]
      %v222 = vld [vmem:[%s207 + $0x18] sm:$0xf]
      %v223 = vld [vmem:[%s207 + $0x20] sm:$0xf]
      %v224 = vld [vmem:[%s207 + $0x28] sm:$0xf]
      %v225 = vld [vmem:[%s207 + $0x30] sm:$0xf]
      %v226 = vld [vmem:[%s207 + $0x38] sm:$0xf]
      %v227 = vld [vmem:[%s1] sm:$0xf]
      %v228 = vld [vmem:[%s1 + $0x4] sm:$0xf]
      %v229 = vld [vmem:[%s1 + $0x8] sm:$0xf]
      %v230 = vld [vmem:[%s1 + $0xc] sm:$0xf]
      %v231 = vld [vmem:[%s207 + $0x4] sm:$0x1]
      %v232 = vld [vmem:[%s207 + $0xc] sm:$0x1]
      %v233 = vld [vmem:[%s207 + $0x14] sm:$0x1]
      %v234 = vld [vmem:[%s207 + $0x1c] sm:$0x1]
      %v235 = vld [vmem:[%s207 + $0x24] sm:$0x1]
      %v236 = vld [vmem:[%s207 + $0x2c] sm:$0x1]
      %v237 = vld [vmem:[%s207 + $0x34] sm:$0x1]
      %v238 = vld [vmem:[%s207 + $0x3c] sm:$0x1]
      %vm239 = vsmask.f32 3328
      %vm240 = vsmask.f32 7440
      %vm241 = vmor %vm239, %vm240
      %v243 = vshrl.u32 %v219, 16
      %v245 = vrot.slane %v243, 4
      %v246 = vshll.u32 %v219, 16
      %v248 = vrot.slane %v246, 5
      %v249 = vor.u32 %v245, %v248
      %v250 = vrot.slane %v249, 4
      %v252 = vshll.u32 %v231, 16
      %v254 = vrot.slane %v252, 5
      %v255 = vsel %vm241, %v250, %v254
      %v257 = vshrl.u32 %v220, 16
      %v259 = vrot.slane %v257, 4
      %v260 = vshll.u32 %v220, 16
      %v262 = vrot.slane %v260, 5
      %v263 = vor.u32 %v259, %v262
      %v264 = vrot.slane %v263, 4
      %v266 = vshll.u32 %v232, 16
      %v268 = vrot.slane %v266, 5
      %v269 = vsel %vm241, %v264, %v268
      %v271 = vshrl.u32 %v221, 16
      %v273 = vrot.slane %v271, 4
      %v274 = vshll.u32 %v221, 16
      %v276 = vrot.slane %v274, 5
      %v277 = vor.u32 %v273, %v276
      %v278 = vrot.slane %v277, 4
      %v280 = vshll.u32 %v233, 16
      %v282 = vrot.slane %v280, 5
      %v283 = vsel %vm241, %v278, %v282
      %v285 = vshrl.u32 %v222, 16
      %v287 = vrot.slane %v285, 4
      %v288 = vshll.u32 %v222, 16
      %v290 = vrot.slane %v288, 5
      %v291 = vor.u32 %v287, %v290
      %v292 = vrot.slane %v291, 4
      %v294 = vshll.u32 %v234, 16
      %v296 = vrot.slane %v294, 5
      %v297 = vsel %vm241, %v292, %v296
      %v299 = vshrl.u32 %v223, 16
      %v301 = vrot.slane %v299, 4
      %v302 = vshll.u32 %v223, 16
      %v304 = vrot.slane %v302, 5
      %v305 = vor.u32 %v301, %v304
      %v306 = vrot.slane %v305, 4
      %v308 = vshll.u32 %v235, 16
      %v310 = vrot.slane %v308, 5
      %v311 = vsel %vm241, %v306, %v310
      %v313 = vshrl.u32 %v224, 16
      %v315 = vrot.slane %v313, 4
      %v316 = vshll.u32 %v224, 16
      %v318 = vrot.slane %v316, 5
      %v319 = vor.u32 %v315, %v318
      %v320 = vrot.slane %v319, 4
      %v322 = vshll.u32 %v236, 16
      %v324 = vrot.slane %v322, 5
      %v325 = vsel %vm241, %v320, %v324
      %v327 = vshrl.u32 %v225, 16
      %v329 = vrot.slane %v327, 4
      %v330 = vshll.u32 %v225, 16
      %v332 = vrot.slane %v330, 5
      %v333 = vor.u32 %v329, %v332
      %v334 = vrot.slane %v333, 4
      %v336 = vshll.u32 %v237, 16
      %v338 = vrot.slane %v336, 5
      %v339 = vsel %vm241, %v334, %v338
      %v341 = vshrl.u32 %v226, 16
      %v343 = vrot.slane %v341, 4
      %v344 = vshll.u32 %v226, 16
      %v346 = vrot.slane %v344, 5
      %v347 = vor.u32 %v343, %v346
      %v348 = vrot.slane %v347, 4
      %v350 = vshll.u32 %v238, 16
      %v352 = vrot.slane %v350, 5
      %v353 = vsel %vm241, %v348, %v352
      %s354 = scalar_lea.vmem %s1, 16
      %v355 = vld [vmem:[%s354] sm:$0xf]
      %v356 = vld [vmem:[%s354 + $0x4] sm:$0xf]
      %v357 = vld [vmem:[%s354 + $0x8] sm:$0xf]
      %v358 = vld [vmem:[%s354 + $0xc] sm:$0xf]
      %v359 = vunpack.c.l.b16 %v255
      %v360 = vunpack.c.l.b16 %v269
      %v361 = vunpack.c.l.b16 %v283
      %v362 = vunpack.c.l.b16 %v297
      %v363 = vunpack.c.l.b16 %v311
      %v364 = vunpack.c.l.b16 %v325
      %v365 = vunpack.c.l.b16 %v339
      %v366 = vunpack.c.l.b16 %v353
      %v367 = vpack.c.b16 %v360, %v359
      %v368 = vpack.c.b16 %v362, %v361
      %v369 = vpack.c.b16 %v364, %v363
      %v370 = vpack.c.b16 %v366, %v365
      %v375 = vunpack.c.l.b16 %v355
      %v376 = vunpack.c.l.b16 %v356
      %v377 = vunpack.c.l.b16 %v357
      %v378 = vunpack.c.l.b16 %v358
      %v379 = vpack.c.b16 %v376, %v375
      %v380 = vpack.c.b16 %v378, %v377
      %vm383 = vcmask 261120
      %v385 = vsel %vm383, %v367, 0
      %v388 = vsel %vm383, %v368, 0
      %v391 = vsel %vm383, %v369, 0
      %v394 = vsel %vm383, %v370, 0
      %396 = vmatprep.subr.bf16.mxu0 0
      %397 = vmatpush1.bf16.msra.mxu0 0
      %398 = vmatprep.subr.bf16.mxu0 0
      %399 = vmatpush1.bf16.msra.mxu0 0
      %400 = vmatprep.subr.bf16.mxu0 0
      %401 = vmatpush1.bf16.msra.mxu0 0
      %402 = vmatprep.subr.bf16.mxu0 0
      %403 = vmatpush1.bf16.msra.mxu0 0
      %404 = vmatprep.subr.bf16.mxu0 0
      %405 = vmatpush1.bf16.msra.mxu0 0
      %406 = vmatprep.subr.bf16.mxu0 0
      %407 = vmatpush1.bf16.msra.mxu0 0
      %408 = vmatprep.subr.bf16.mxu0 0
      %409 = vmatpush1.bf16.msra.mxu0 %v380
      %410 = vmatprep.subr.bf16.mxu0 0
      %411 = vmatpush1.bf16.msra.mxu0 %v379
      %412 = vmatprep.subr.bf16.mxu0 0
      %413 = vmatpush2.bf16.msra.mxu0 0
      %414 = vmatprep.subr.bf16.mxu0 0
      %415 = vmatpush2.bf16.msra.mxu0 0
      %416 = vmatprep.subr.bf16.mxu0 0
      %417 = vmatpush2.bf16.msra.mxu0 0
      %418 = vmatprep.subr.bf16.mxu0 0
      %419 = vmatpush2.bf16.msra.mxu0 0
      %420 = vmatprep.subr.bf16.mxu0 0
      %421 = vmatpush2.bf16.msra.mxu0 0
      %422 = vmatprep.subr.bf16.mxu0 0
      %423 = vmatpush2.bf16.msra.mxu0 0
      %424 = vmatprep.subr.bf16.mxu0 0
      %425 = vmatpush2.bf16.msra.mxu0 0
      %426 = vmatprep.subr.bf16.mxu0 0
      %427 = vmatpush2.bf16.msra.mxu0 0
      %428 = vmatprep.mubr.bf16.mxu0 0
      %429 = vmatmul.mubr.bf16.gmra.mxu0 %v385
      %v430 = vpop.f32.mrf.mxu0
      %v431 = vadd.f32 0.0, %v430
      %v432 = vpop.f32.mrf.mxu0
      %v433 = vpop.f32.mrf.mxu0
      %v434 = vadd.f32 0.0, %v433
      %v435 = vpop.f32.mrf.mxu0
      %436 = vmatprep.mubr.bf16.mxu0 0
      %437 = vmatmul.mubr.bf16.gmra.mxu0 %v388
      %v438 = vpop.f32.mrf.mxu0
      %v439 = vadd.f32 0.0, %v438
      %v440 = vpop.f32.mrf.mxu0
      %v441 = vpop.f32.mrf.mxu0
      %v442 = vadd.f32 0.0, %v441
      %v443 = vpop.f32.mrf.mxu0
      %444 = vmatprep.mubr.bf16.mxu0 0
      %445 = vmatmul.mubr.bf16.gmra.mxu0 %v391
      %v446 = vpop.f32.mrf.mxu0
      %v447 = vadd.f32 0.0, %v446
      %v448 = vpop.f32.mrf.mxu0
      %v449 = vpop.f32.mrf.mxu0
      %v450 = vadd.f32 0.0, %v449
      %v451 = vpop.f32.mrf.mxu0
      %452 = vmatprep.mubr.bf16.mxu0 0
      %453 = vmatmul.mubr.bf16.gmra.mxu0 %v394
      %v454 = vpop.f32.mrf.mxu0
      %v455 = vadd.f32 0.0, %v454
      %v456 = vpop.f32.mrf.mxu0
      %v457 = vpop.f32.mrf.mxu0
      %v458 = vadd.f32 0.0, %v457
      %v459 = vpop.f32.mrf.mxu0
      %460 = vdwg.mxu0
      %v469 = vunpack.c.l.b16 %v219
      %v470 = vunpack.c.l.b16 %v220
      %v471 = vunpack.c.l.b16 %v221
      %v472 = vunpack.c.l.b16 %v222
      %v473 = vunpack.c.l.b16 %v223
      %v474 = vunpack.c.l.b16 %v224
      %v475 = vunpack.c.l.b16 %v225
      %v476 = vunpack.c.l.b16 %v226
      %v477 = vpack.c.b16 %v470, %v469
      %v478 = vpack.c.b16 %v472, %v471
      %v479 = vpack.c.b16 %v474, %v473
      %v480 = vpack.c.b16 %v476, %v475
      %v485 = vunpack.c.l.b16 %v227
      %v486 = vunpack.c.l.b16 %v228
      %v487 = vunpack.c.l.b16 %v229
      %v488 = vunpack.c.l.b16 %v230
      %v489 = vpack.c.b16 %v486, %v485
      %v490 = vpack.c.b16 %v488, %v487
      %v494 = vsel %vm383, %v477, 0
      %v497 = vsel %vm383, %v478, 0
      %v500 = vsel %vm383, %v479, 0
      %v503 = vsel %vm383, %v480, 0
      %505 = vmatprep.subr.bf16.mxu0 0
      %506 = vmatpush1.bf16.msra.mxu0 0
      %507 = vmatprep.subr.bf16.mxu0 0
      %508 = vmatpush1.bf16.msra.mxu0 0
      %509 = vmatprep.subr.bf16.mxu0 0
      %510 = vmatpush1.bf16.msra.mxu0 0
      %511 = vmatprep.subr.bf16.mxu0 0
      %512 = vmatpush1.bf16.msra.mxu0 0
      %513 = vmatprep.subr.bf16.mxu0 0
      %514 = vmatpush1.bf16.msra.mxu0 0
      %515 = vmatprep.subr.bf16.mxu0 0
      %516 = vmatpush1.bf16.msra.mxu0 0
      %517 = vmatprep.subr.bf16.mxu0 0
      %518 = vmatpush1.bf16.msra.mxu0 %v490
      %519 = vmatprep.subr.bf16.mxu0 0
      %520 = vmatpush1.bf16.msra.mxu0 %v489
      %521 = vmatprep.subr.bf16.mxu0 0
      %522 = vmatpush2.bf16.msra.mxu0 0
      %523 = vmatprep.subr.bf16.mxu0 0
      %524 = vmatpush2.bf16.msra.mxu0 0
      %525 = vmatprep.subr.bf16.mxu0 0
      %526 = vmatpush2.bf16.msra.mxu0 0
      %527 = vmatprep.subr.bf16.mxu0 0
      %528 = vmatpush2.bf16.msra.mxu0 0
      %529 = vmatprep.subr.bf16.mxu0 0
      %530 = vmatpush2.bf16.msra.mxu0 0
      %531 = vmatprep.subr.bf16.mxu0 0
      %532 = vmatpush2.bf16.msra.mxu0 0
      %533 = vmatprep.subr.bf16.mxu0 0
      %534 = vmatpush2.bf16.msra.mxu0 0
      %535 = vmatprep.subr.bf16.mxu0 0
      %536 = vmatpush2.bf16.msra.mxu0 0
      %537 = vmatprep.mubr.bf16.mxu0 0
      %538 = vmatmul.mubr.bf16.gmra.mxu0 %v494
      %v539 = vpop.f32.mrf.mxu0
      %v540 = vadd.f32 %v431, %v539
      %v541 = vpop.f32.mrf.mxu0
      %v542 = vpop.f32.mrf.mxu0
      %v543 = vadd.f32 %v434, %v542
      %v544 = vpop.f32.mrf.mxu0
      %545 = vmatprep.mubr.bf16.mxu0 0
      %546 = vmatmul.mubr.bf16.gmra.mxu0 %v497
      %v547 = vpop.f32.mrf.mxu0
      %v548 = vadd.f32 %v439, %v547
      %v549 = vpop.f32.mrf.mxu0
      %v550 = vpop.f32.mrf.mxu0
      %v551 = vadd.f32 %v442, %v550
      %v552 = vpop.f32.mrf.mxu0
      %553 = vmatprep.mubr.bf16.mxu0 0
      %554 = vmatmul.mubr.bf16.gmra.mxu0 %v500
      %v555 = vpop.f32.mrf.mxu0
      %v556 = vadd.f32 %v447, %v555
      %v557 = vpop.f32.mrf.mxu0
      %v558 = vpop.f32.mrf.mxu0
      %v559 = vadd.f32 %v450, %v558
      %v560 = vpop.f32.mrf.mxu0
      %561 = vmatprep.mubr.bf16.mxu0 0
      %562 = vmatmul.mubr.bf16.gmra.mxu0 %v503
      %v563 = vpop.f32.mrf.mxu0
      %v564 = vadd.f32 %v455, %v563
      %v565 = vpop.f32.mrf.mxu0
      %v566 = vpop.f32.mrf.mxu0
      %v567 = vadd.f32 %v458, %v566
      %v568 = vpop.f32.mrf.mxu0
      %569 = vdwg.mxu0
      %v570 = vld [vmem:[%s207] sm:$0xe]
      %v571 = vld [vmem:[%s207 + $0x8] sm:$0xe]
      %v572 = vld [vmem:[%s207 + $0x10] sm:$0xe]
      %v573 = vld [vmem:[%s207 + $0x18] sm:$0xe]
      %v574 = vld [vmem:[%s207 + $0x20] sm:$0xe]
      %v575 = vld [vmem:[%s207 + $0x28] sm:$0xe]
      %v576 = vld [vmem:[%s207 + $0x30] sm:$0xe]
      %v577 = vld [vmem:[%s207 + $0x38] sm:$0xe]
      %vm594 = vcmask 1042432
      %vm595 = vcmask 1046532
      %vm596 = vmor %vm594, %vm595
      %v597 = vrot.slane %v570, 5
      %v598 = vrot.slane %v597, 4
      %v599 = vrot.slane %v231, 5
      %v600 = vsel %vm596, %v598, %v599
      %v601 = vrot.slane %v571, 5
      %v602 = vrot.slane %v601, 4
      %v603 = vrot.slane %v232, 5
      %v604 = vsel %vm596, %v602, %v603
      %v605 = vrot.slane %v572, 5
      %v606 = vrot.slane %v605, 4
      %v607 = vrot.slane %v233, 5
      %v608 = vsel %vm596, %v606, %v607
      %v609 = vrot.slane %v573, 5
      %v610 = vrot.slane %v609, 4
      %v611 = vrot.slane %v234, 5
      %v612 = vsel %vm596, %v610, %v611
      %v613 = vrot.slane %v574, 5
      %v614 = vrot.slane %v613, 4
      %v615 = vrot.slane %v235, 5
      %v616 = vsel %vm596, %v614, %v615
      %v617 = vrot.slane %v575, 5
      %v618 = vrot.slane %v617, 4
      %v619 = vrot.slane %v236, 5
      %v620 = vsel %vm596, %v618, %v619
      %v621 = vrot.slane %v576, 5
      %v622 = vrot.slane %v621, 4
      %v623 = vrot.slane %v237, 5
      %v624 = vsel %vm596, %v622, %v623
      %v625 = vrot.slane %v577, 5
      %v626 = vrot.slane %v625, 4
      %v627 = vrot.slane %v238, 5
      %v628 = vsel %vm596, %v626, %v627
      %s629 = scalar_lea.vmem %s1, 32
      %v630 = vld [vmem:[%s629] sm:$0xf]
      %v631 = vld [vmem:[%s629 + $0x4] sm:$0xf]
      %v632 = vld [vmem:[%s629 + $0x8] sm:$0xf]
      %v633 = vld [vmem:[%s629 + $0xc] sm:$0xf]
      %v634 = vunpack.c.l.b16 %v600
      %v635 = vunpack.c.l.b16 %v604
      %v636 = vunpack.c.l.b16 %v608
      %v637 = vunpack.c.l.b16 %v612
      %v638 = vunpack.c.l.b16 %v616
      %v639 = vunpack.c.l.b16 %v620
      %v640 = vunpack.c.l.b16 %v624
      %v641 = vunpack.c.l.b16 %v628
      %v642 = vpack.c.b16 %v635, %v634
      %v643 = vpack.c.b16 %v637, %v636
      %v644 = vpack.c.b16 %v639, %v638
      %v645 = vpack.c.b16 %v641, %v640
      %v650 = vunpack.c.l.b16 %v630
      %v651 = vunpack.c.l.b16 %v631
      %v652 = vunpack.c.l.b16 %v632
      %v653 = vunpack.c.l.b16 %v633
      %v654 = vpack.c.b16 %v651, %v650
      %v655 = vpack.c.b16 %v653, %v652
      %v659 = vsel %vm383, %v642, 0
      %v662 = vsel %vm383, %v643, 0
      %v665 = vsel %vm383, %v644, 0
      %v668 = vsel %vm383, %v645, 0
      %670 = vmatprep.subr.bf16.mxu0 0
      %671 = vmatpush1.bf16.msra.mxu0 0
      %672 = vmatprep.subr.bf16.mxu0 0
      %673 = vmatpush1.bf16.msra.mxu0 0
      %674 = vmatprep.subr.bf16.mxu0 0
      %675 = vmatpush1.bf16.msra.mxu0 0
      %676 = vmatprep.subr.bf16.mxu0 0
      %677 = vmatpush1.bf16.msra.mxu0 0
      %678 = vmatprep.subr.bf16.mxu0 0
      %679 = vmatpush1.bf16.msra.mxu0 0
      %680 = vmatprep.subr.bf16.mxu0 0
      %681 = vmatpush1.bf16.msra.mxu0 0
      %682 = vmatprep.subr.bf16.mxu0 0
      %683 = vmatpush1.bf16.msra.mxu0 %v655
      %684 = vmatprep.subr.bf16.mxu0 0
      %685 = vmatpush1.bf16.msra.mxu0 %v654
      %686 = vmatprep.subr.bf16.mxu0 0
      %687 = vmatpush2.bf16.msra.mxu0 0
      %688 = vmatprep.subr.bf16.mxu0 0
      %689 = vmatpush2.bf16.msra.mxu0 0
      %690 = vmatprep.subr.bf16.mxu0 0
      %691 = vmatpush2.bf16.msra.mxu0 0
      %692 = vmatprep.subr.bf16.mxu0 0
      %693 = vmatpush2.bf16.msra.mxu0 0
      %694 = vmatprep.subr.bf16.mxu0 0
      %695 = vmatpush2.bf16.msra.mxu0 0
      %696 = vmatprep.subr.bf16.mxu0 0
      %697 = vmatpush2.bf16.msra.mxu0 0
      %698 = vmatprep.subr.bf16.mxu0 0
      %699 = vmatpush2.bf16.msra.mxu0 0
      %700 = vmatprep.subr.bf16.mxu0 0
      %701 = vmatpush2.bf16.msra.mxu0 0
      %702 = vmatprep.mubr.bf16.mxu0 0
      %703 = vmatmul.mubr.bf16.gmra.mxu0 %v659
      %v704 = vpop.f32.mrf.mxu0
      %v705 = vadd.f32 0.0, %v704
      %v706 = vpop.f32.mrf.mxu0
      %v707 = vpop.f32.mrf.mxu0
      %v708 = vadd.f32 0.0, %v707
      %v709 = vpop.f32.mrf.mxu0
      %710 = vmatprep.mubr.bf16.mxu0 0
      %711 = vmatmul.mubr.bf16.gmra.mxu0 %v662
      %v712 = vpop.f32.mrf.mxu0
      %v713 = vadd.f32 0.0, %v712
      %v714 = vpop.f32.mrf.mxu0
      %v715 = vpop.f32.mrf.mxu0
      %v716 = vadd.f32 0.0, %v715
      %v717 = vpop.f32.mrf.mxu0
      %718 = vmatprep.mubr.bf16.mxu0 0
      %719 = vmatmul.mubr.bf16.gmra.mxu0 %v665
      %v720 = vpop.f32.mrf.mxu0
      %v721 = vadd.f32 0.0, %v720
      %v722 = vpop.f32.mrf.mxu0
      %v723 = vpop.f32.mrf.mxu0
      %v724 = vadd.f32 0.0, %v723
      %v725 = vpop.f32.mrf.mxu0
      %726 = vmatprep.mubr.bf16.mxu0 0
      %727 = vmatmul.mubr.bf16.gmra.mxu0 %v668
      %v728 = vpop.f32.mrf.mxu0
      %v729 = vadd.f32 0.0, %v728
      %v730 = vpop.f32.mrf.mxu0
      %v731 = vpop.f32.mrf.mxu0
      %v732 = vadd.f32 0.0, %v731
      %v733 = vpop.f32.mrf.mxu0
      %734 = vdwg.mxu0
      %v735 = vadd.f32 %v540, %v705
      %v736 = vadd.f32 %v543, %v708
      %v737 = vadd.f32 %v548, %v713
      %v738 = vadd.f32 %v551, %v716
      %v739 = vadd.f32 %v556, %v721
      %v740 = vadd.f32 %v559, %v724
      %v741 = vadd.f32 %v564, %v729
      %v742 = vadd.f32 %v567, %v732
      %s743 = scalar_lea.vmem %s207, 8
      %v744 = vld [vmem:[%s743] sm:$0xf]
      %v745 = vld [vmem:[%s743 + $0x8] sm:$0xf]
      %v746 = vld [vmem:[%s743 + $0x10] sm:$0xf]
      %v747 = vld [vmem:[%s743 + $0x18] sm:$0xf]
      %v748 = vld [vmem:[%s743 + $0x20] sm:$0xf]
      %v749 = vld [vmem:[%s743 + $0x28] sm:$0xf]
      %v750 = vld [vmem:[%s743 + $0x30] sm:$0xf]
      %v751 = vld [vmem:[%s743 + $0x38] sm:$0xf]
      %s752 = scalar_lea.vmem %s1, 48
      %v753 = vld [vmem:[%s752] sm:$0xf]
      %v754 = vld [vmem:[%s752 + $0x4] sm:$0xf]
      %v755 = vld [vmem:[%s752 + $0x8] sm:$0xf]
      %v756 = vld [vmem:[%s752 + $0xc] sm:$0xf]
      %v765 = vunpack.c.l.b16 %v744
      %v766 = vunpack.c.l.b16 %v745
      %v767 = vunpack.c.l.b16 %v746
      %v768 = vunpack.c.l.b16 %v747
      %v769 = vunpack.c.l.b16 %v748
      %v770 = vunpack.c.l.b16 %v749
      %v771 = vunpack.c.l.b16 %v750
      %v772 = vunpack.c.l.b16 %v751
      %v773 = vpack.c.b16 %v766, %v765
      %v774 = vpack.c.b16 %v768, %v767
      %v775 = vpack.c.b16 %v770, %v769
      %v776 = vpack.c.b16 %v772, %v771
      %v781 = vunpack.c.l.b16 %v753
      %v782 = vunpack.c.l.b16 %v754
      %v783 = vunpack.c.l.b16 %v755
      %v784 = vunpack.c.l.b16 %v756
      %v785 = vpack.c.b16 %v782, %v781
      %v786 = vpack.c.b16 %v784, %v783
      %v790 = vsel %vm383, %v773, 0
      %v793 = vsel %vm383, %v774, 0
      %v796 = vsel %vm383, %v775, 0
      %v799 = vsel %vm383, %v776, 0
      %801 = vmatprep.subr.bf16.mxu0 0
      %802 = vmatpush1.bf16.msra.mxu0 0
      %803 = vmatprep.subr.bf16.mxu0 0
      %804 = vmatpush1.bf16.msra.mxu0 0
      %805 = vmatprep.subr.bf16.mxu0 0
      %806 = vmatpush1.bf16.msra.mxu0 0
      %807 = vmatprep.subr.bf16.mxu0 0
      %808 = vmatpush1.bf16.msra.mxu0 0
      %809 = vmatprep.subr.bf16.mxu0 0
      %810 = vmatpush1.bf16.msra.mxu0 0
      %811 = vmatprep.subr.bf16.mxu0 0
      %812 = vmatpush1.bf16.msra.mxu0 0
      %813 = vmatprep.subr.bf16.mxu0 0
      %814 = vmatpush1.bf16.msra.mxu0 %v786
      %815 = vmatprep.subr.bf16.mxu0 0
      %816 = vmatpush1.bf16.msra.mxu0 %v785
      %817 = vmatprep.subr.bf16.mxu0 0
      %818 = vmatpush2.bf16.msra.mxu0 0
      %819 = vmatprep.subr.bf16.mxu0 0
      %820 = vmatpush2.bf16.msra.mxu0 0
      %821 = vmatprep.subr.bf16.mxu0 0
      %822 = vmatpush2.bf16.msra.mxu0 0
      %823 = vmatprep.subr.bf16.mxu0 0
      %824 = vmatpush2.bf16.msra.mxu0 0
      %825 = vmatprep.subr.bf16.mxu0 0
      %826 = vmatpush2.bf16.msra.mxu0 0
      %827 = vmatprep.subr.bf16.mxu0 0
      %828 = vmatpush2.bf16.msra.mxu0 0
      %829 = vmatprep.subr.bf16.mxu0 0
      %830 = vmatpush2.bf16.msra.mxu0 0
      %831 = vmatprep.subr.bf16.mxu0 0
      %832 = vmatpush2.bf16.msra.mxu0 0
      %833 = vmatprep.mubr.bf16.mxu0 0
      %834 = vmatmul.mubr.bf16.gmra.mxu0 %v790
      %v835 = vpop.f32.mrf.mxu0
      %v836 = vadd.f32 0.0, %v835
      %v837 = vpop.f32.mrf.mxu0
      %v838 = vpop.f32.mrf.mxu0
      %v839 = vadd.f32 0.0, %v838
      %v840 = vpop.f32.mrf.mxu0
      %841 = vmatprep.mubr.bf16.mxu0 0
      %842 = vmatmul.mubr.bf16.gmra.mxu0 %v793
      %v843 = vpop.f32.mrf.mxu0
      %v844 = vadd.f32 0.0, %v843
      %v845 = vpop.f32.mrf.mxu0
      %v846 = vpop.f32.mrf.mxu0
      %v847 = vadd.f32 0.0, %v846
      %v848 = vpop.f32.mrf.mxu0
      %849 = vmatprep.mubr.bf16.mxu0 0
      %850 = vmatmul.mubr.bf16.gmra.mxu0 %v796
      %v851 = vpop.f32.mrf.mxu0
      %v852 = vadd.f32 0.0, %v851
      %v853 = vpop.f32.mrf.mxu0
      %v854 = vpop.f32.mrf.mxu0
      %v855 = vadd.f32 0.0, %v854
      %v856 = vpop.f32.mrf.mxu0
      %857 = vmatprep.mubr.bf16.mxu0 0
      %858 = vmatmul.mubr.bf16.gmra.mxu0 %v799
      %v859 = vpop.f32.mrf.mxu0
      %v860 = vadd.f32 0.0, %v859
      %v861 = vpop.f32.mrf.mxu0
      %v862 = vpop.f32.mrf.mxu0
      %v863 = vadd.f32 0.0, %v862
      %v864 = vpop.f32.mrf.mxu0
      %865 = vdwg.mxu0
      %v866 = vadd.f32 %v735, %v836
      %v867 = vadd.f32 %v736, %v839
      %v868 = vadd.f32 %v737, %v844
      %v869 = vadd.f32 %v738, %v847
      %v870 = vadd.f32 %v739, %v852
      %v871 = vadd.f32 %v740, %v855
      %v872 = vadd.f32 %v741, %v860
      %v873 = vadd.f32 %v742, %v863
      %v874 = vld [vmem:[%s743] sm:$0xf]
      %v875 = vld [vmem:[%s743 + $0x4] sm:$0x1]
      %v876 = vld [vmem:[%s743 + $0x8] sm:$0xf]
      %v877 = vld [vmem:[%s743 + $0xc] sm:$0x1]
      %v878 = vld [vmem:[%s743 + $0x10] sm:$0xf]
      %v879 = vld [vmem:[%s743 + $0x14] sm:$0x1]
      %v880 = vld [vmem:[%s743 + $0x18] sm:$0xf]
      %v881 = vld [vmem:[%s743 + $0x1c] sm:$0x1]
      %v882 = vld [vmem:[%s743 + $0x20] sm:$0xf]
      %v883 = vld [vmem:[%s743 + $0x24] sm:$0x1]
      %v884 = vld [vmem:[%s743 + $0x28] sm:$0xf]
      %v885 = vld [vmem:[%s743 + $0x2c] sm:$0x1]
      %v886 = vld [vmem:[%s743 + $0x30] sm:$0xf]
      %v887 = vld [vmem:[%s743 + $0x34] sm:$0x1]
      %v888 = vld [vmem:[%s743 + $0x38] sm:$0xf]
      %v889 = vld [vmem:[%s743 + $0x3c] sm:$0x1]
      %v891 = vshrl.u32 %v874, 16
      %v893 = vrot.slane %v891, 4
      %v894 = vshll.u32 %v874, 16
      %v896 = vrot.slane %v894, 5
      %v897 = vor.u32 %v893, %v896
      %v898 = vrot.slane %v897, 4
      %v900 = vshll.u32 %v875, 16
      %v902 = vrot.slane %v900, 5
      %v903 = vsel %vm241, %v898, %v902
      %v905 = vshrl.u32 %v876, 16
      %v907 = vrot.slane %v905, 4
      %v908 = vshll.u32 %v876, 16
      %v910 = vrot.slane %v908, 5
      %v911 = vor.u32 %v907, %v910
      %v912 = vrot.slane %v911, 4
      %v914 = vshll.u32 %v877, 16
      %v916 = vrot.slane %v914, 5
      %v917 = vsel %vm241, %v912, %v916
      %v919 = vshrl.u32 %v878, 16
      %v921 = vrot.slane %v919, 4
      %v922 = vshll.u32 %v878, 16
      %v924 = vrot.slane %v922, 5
      %v925 = vor.u32 %v921, %v924
      %v926 = vrot.slane %v925, 4
      %v928 = vshll.u32 %v879, 16
      %v930 = vrot.slane %v928, 5
      %v931 = vsel %vm241, %v926, %v930
      %v933 = vshrl.u32 %v880, 16
      %v935 = vrot.slane %v933, 4
      %v936 = vshll.u32 %v880, 16
      %v938 = vrot.slane %v936, 5
      %v939 = vor.u32 %v935, %v938
      %v940 = vrot.slane %v939, 4
      %v942 = vshll.u32 %v881, 16
      %v944 = vrot.slane %v942, 5
      %v945 = vsel %vm241, %v940, %v944
      %v947 = vshrl.u32 %v882, 16
      %v949 = vrot.slane %v947, 4
      %v950 = vshll.u32 %v882, 16
      %v952 = vrot.slane %v950, 5
      %v953 = vor.u32 %v949, %v952
      %v954 = vrot.slane %v953, 4
      %v956 = vshll.u32 %v883, 16
      %v958 = vrot.slane %v956, 5
      %v959 = vsel %vm241, %v954, %v958
      %v961 = vshrl.u32 %v884, 16
      %v963 = vrot.slane %v961, 4
      %v964 = vshll.u32 %v884, 16
      %v966 = vrot.slane %v964, 5
      %v967 = vor.u32 %v963, %v966
      %v968 = vrot.slane %v967, 4
      %v970 = vshll.u32 %v885, 16
      %v972 = vrot.slane %v970, 5
      %v973 = vsel %vm241, %v968, %v972
      %v975 = vshrl.u32 %v886, 16
      %v977 = vrot.slane %v975, 4
      %v978 = vshll.u32 %v886, 16
      %v980 = vrot.slane %v978, 5
      %v981 = vor.u32 %v977, %v980
      %v982 = vrot.slane %v981, 4
      %v984 = vshll.u32 %v887, 16
      %v986 = vrot.slane %v984, 5
      %v987 = vsel %vm241, %v982, %v986
      %v989 = vshrl.u32 %v888, 16
      %v991 = vrot.slane %v989, 4
      %v992 = vshll.u32 %v888, 16
      %v994 = vrot.slane %v992, 5
      %v995 = vor.u32 %v991, %v994
      %v996 = vrot.slane %v995, 4
      %v998 = vshll.u32 %v889, 16
      %v1000 = vrot.slane %v998, 5
      %v1001 = vsel %vm241, %v996, %v1000
      %s1002 = scalar_lea.vmem %s1, 64
      %v1003 = vld [vmem:[%s1002] sm:$0xf]
      %v1004 = vld [vmem:[%s1002 + $0x4] sm:$0xf]
      %v1005 = vld [vmem:[%s1002 + $0x8] sm:$0xf]
      %v1006 = vld [vmem:[%s1002 + $0xc] sm:$0xf]
      %v1007 = vunpack.c.l.b16 %v903
      %v1008 = vunpack.c.l.b16 %v917
      %v1009 = vunpack.c.l.b16 %v931
      %v1010 = vunpack.c.l.b16 %v945
      %v1011 = vunpack.c.l.b16 %v959
      %v1012 = vunpack.c.l.b16 %v973
      %v1013 = vunpack.c.l.b16 %v987
      %v1014 = vunpack.c.l.b16 %v1001
      %v1015 = vpack.c.b16 %v1008, %v1007
      %v1016 = vpack.c.b16 %v1010, %v1009
      %v1017 = vpack.c.b16 %v1012, %v1011
      %v1018 = vpack.c.b16 %v1014, %v1013
      %v1023 = vunpack.c.l.b16 %v1003
      %v1024 = vunpack.c.l.b16 %v1004
      %v1025 = vunpack.c.l.b16 %v1005
      %v1026 = vunpack.c.l.b16 %v1006
      %v1027 = vpack.c.b16 %v1024, %v1023
      %v1028 = vpack.c.b16 %v1026, %v1025
      %v1032 = vsel %vm383, %v1015, 0
      %v1035 = vsel %vm383, %v1016, 0
      %v1038 = vsel %vm383, %v1017, 0
      %v1041 = vsel %vm383, %v1018, 0
      %1043 = vmatprep.subr.bf16.mxu0 0
      %1044 = vmatpush1.bf16.msra.mxu0 0
      %1045 = vmatprep.subr.bf16.mxu0 0
      %1046 = vmatpush1.bf16.msra.mxu0 0
      %1047 = vmatprep.subr.bf16.mxu0 0
      %1048 = vmatpush1.bf16.msra.mxu0 0
      %1049 = vmatprep.subr.bf16.mxu0 0
      %1050 = vmatpush1.bf16.msra.mxu0 0
      %1051 = vmatprep.subr.bf16.mxu0 0
      %1052 = vmatpush1.bf16.msra.mxu0 0
      %1053 = vmatprep.subr.bf16.mxu0 0
      %1054 = vmatpush1.bf16.msra.mxu0 0
      %1055 = vmatprep.subr.bf16.mxu0 0
      %1056 = vmatpush1.bf16.msra.mxu0 %v1028
      %1057 = vmatprep.subr.bf16.mxu0 0
      %1058 = vmatpush1.bf16.msra.mxu0 %v1027
      %1059 = vmatprep.subr.bf16.mxu0 0
      %1060 = vmatpush2.bf16.msra.mxu0 0
      %1061 = vmatprep.subr.bf16.mxu0 0
      %1062 = vmatpush2.bf16.msra.mxu0 0
      %1063 = vmatprep.subr.bf16.mxu0 0
      %1064 = vmatpush2.bf16.msra.mxu0 0
      %1065 = vmatprep.subr.bf16.mxu0 0
      %1066 = vmatpush2.bf16.msra.mxu0 0
      %1067 = vmatprep.subr.bf16.mxu0 0
      %1068 = vmatpush2.bf16.msra.mxu0 0
      %1069 = vmatprep.subr.bf16.mxu0 0
      %1070 = vmatpush2.bf16.msra.mxu0 0
      %1071 = vmatprep.subr.bf16.mxu0 0
      %1072 = vmatpush2.bf16.msra.mxu0 0
      %1073 = vmatprep.subr.bf16.mxu0 0
      %1074 = vmatpush2.bf16.msra.mxu0 0
      %1075 = vmatprep.mubr.bf16.mxu0 0
      %1076 = vmatmul.mubr.bf16.gmra.mxu0 %v1032
      %v1077 = vpop.f32.mrf.mxu0
      %v1078 = vadd.f32 0.0, %v1077
      %v1079 = vpop.f32.mrf.mxu0
      %v1080 = vpop.f32.mrf.mxu0
      %v1081 = vadd.f32 0.0, %v1080
      %v1082 = vpop.f32.mrf.mxu0
      %1083 = vmatprep.mubr.bf16.mxu0 0
      %1084 = vmatmul.mubr.bf16.gmra.mxu0 %v1035
      %v1085 = vpop.f32.mrf.mxu0
      %v1086 = vadd.f32 0.0, %v1085
      %v1087 = vpop.f32.mrf.mxu0
      %v1088 = vpop.f32.mrf.mxu0
      %v1089 = vadd.f32 0.0, %v1088
      %v1090 = vpop.f32.mrf.mxu0
      %1091 = vmatprep.mubr.bf16.mxu0 0
      %1092 = vmatmul.mubr.bf16.gmra.mxu0 %v1038
      %v1093 = vpop.f32.mrf.mxu0
      %v1094 = vadd.f32 0.0, %v1093
      %v1095 = vpop.f32.mrf.mxu0
      %v1096 = vpop.f32.mrf.mxu0
      %v1097 = vadd.f32 0.0, %v1096
      %v1098 = vpop.f32.mrf.mxu0
      %1099 = vmatprep.mubr.bf16.mxu0 0
      %1100 = vmatmul.mubr.bf16.gmra.mxu0 %v1041
      %v1101 = vpop.f32.mrf.mxu0
      %v1102 = vadd.f32 0.0, %v1101
      %v1103 = vpop.f32.mrf.mxu0
      %v1104 = vpop.f32.mrf.mxu0
      %v1105 = vadd.f32 0.0, %v1104
      %v1106 = vpop.f32.mrf.mxu0
      %1107 = vdwg.mxu0
      %v1108 = vadd.f32 %v866, %v1078
      %v1109 = vadd.f32 %v867, %v1081
      %v1110 = vadd.f32 %v868, %v1086
      %v1111 = vadd.f32 %v869, %v1089
      %v1112 = vadd.f32 %v870, %v1094
      %v1113 = vadd.f32 %v871, %v1097
      %v1114 = vadd.f32 %v872, %v1102
      %v1115 = vadd.f32 %v873, %v1105
      %v1116 = vld [vmem:[%s743] sm:$0xe]
      %v1117 = vld [vmem:[%s743 + $0x8] sm:$0xe]
      %v1118 = vld [vmem:[%s743 + $0x10] sm:$0xe]
      %v1119 = vld [vmem:[%s743 + $0x18] sm:$0xe]
      %v1120 = vld [vmem:[%s743 + $0x20] sm:$0xe]
      %v1121 = vld [vmem:[%s743 + $0x28] sm:$0xe]
      %v1122 = vld [vmem:[%s743 + $0x30] sm:$0xe]
      %v1123 = vld [vmem:[%s743 + $0x38] sm:$0xe]
      %v1140 = vrot.slane %v1116, 5
      %v1141 = vrot.slane %v1140, 4
      %v1142 = vrot.slane %v875, 5
      %v1143 = vsel %vm596, %v1141, %v1142
      %v1144 = vrot.slane %v1117, 5
      %v1145 = vrot.slane %v1144, 4
      %v1146 = vrot.slane %v877, 5
      %v1147 = vsel %vm596, %v1145, %v1146
      %v1148 = vrot.slane %v1118, 5
      %v1149 = vrot.slane %v1148, 4
      %v1150 = vrot.slane %v879, 5
      %v1151 = vsel %vm596, %v1149, %v1150
      %v1152 = vrot.slane %v1119, 5
      %v1153 = vrot.slane %v1152, 4
      %v1154 = vrot.slane %v881, 5
      %v1155 = vsel %vm596, %v1153, %v1154
      %v1156 = vrot.slane %v1120, 5
      %v1157 = vrot.slane %v1156, 4
      %v1158 = vrot.slane %v883, 5
      %v1159 = vsel %vm596, %v1157, %v1158
      %v1160 = vrot.slane %v1121, 5
      %v1161 = vrot.slane %v1160, 4
      %v1162 = vrot.slane %v885, 5
      %v1163 = vsel %vm596, %v1161, %v1162
      %v1164 = vrot.slane %v1122, 5
      %v1165 = vrot.slane %v1164, 4
      %v1166 = vrot.slane %v887, 5
      %v1167 = vsel %vm596, %v1165, %v1166
      %v1168 = vrot.slane %v1123, 5
      %v1169 = vrot.slane %v1168, 4
      %v1170 = vrot.slane %v889, 5
      %v1171 = vsel %vm596, %v1169, %v1170
      %s1172 = scalar_lea.vmem %s1, 80
      %v1173 = vld [vmem:[%s1172] sm:$0xf]
      %v1174 = vld [vmem:[%s1172 + $0x4] sm:$0xf]
      %v1175 = vld [vmem:[%s1172 + $0x8] sm:$0xf]
      %v1176 = vld [vmem:[%s1172 + $0xc] sm:$0xf]
      %v1177 = vunpack.c.l.b16 %v1143
      %v1178 = vunpack.c.l.b16 %v1147
      %v1179 = vunpack.c.l.b16 %v1151
      %v1180 = vunpack.c.l.b16 %v1155
      %v1181 = vunpack.c.l.b16 %v1159
      %v1182 = vunpack.c.l.b16 %v1163
      %v1183 = vunpack.c.l.b16 %v1167
      %v1184 = vunpack.c.l.b16 %v1171
      %v1185 = vpack.c.b16 %v1178, %v1177
      %v1186 = vpack.c.b16 %v1180, %v1179
      %v1187 = vpack.c.b16 %v1182, %v1181
      %v1188 = vpack.c.b16 %v1184, %v1183
      %v1193 = vunpack.c.l.b16 %v1173
      %v1194 = vunpack.c.l.b16 %v1174
      %v1195 = vunpack.c.l.b16 %v1175
      %v1196 = vunpack.c.l.b16 %v1176
      %v1197 = vpack.c.b16 %v1194, %v1193
      %v1198 = vpack.c.b16 %v1196, %v1195
      %v1202 = vsel %vm383, %v1185, 0
      %v1205 = vsel %vm383, %v1186, 0
      %v1208 = vsel %vm383, %v1187, 0
      %v1211 = vsel %vm383, %v1188, 0
      %1213 = vmatprep.subr.bf16.mxu0 0
      %1214 = vmatpush1.bf16.msra.mxu0 0
      %1215 = vmatprep.subr.bf16.mxu0 0
      %1216 = vmatpush1.bf16.msra.mxu0 0
      %1217 = vmatprep.subr.bf16.mxu0 0
      %1218 = vmatpush1.bf16.msra.mxu0 0
      %1219 = vmatprep.subr.bf16.mxu0 0
      %1220 = vmatpush1.bf16.msra.mxu0 0
      %1221 = vmatprep.subr.bf16.mxu0 0
      %1222 = vmatpush1.bf16.msra.mxu0 0
      %1223 = vmatprep.subr.bf16.mxu0 0
      %1224 = vmatpush1.bf16.msra.mxu0 0
      %1225 = vmatprep.subr.bf16.mxu0 0
      %1226 = vmatpush1.bf16.msra.mxu0 %v1198
      %1227 = vmatprep.subr.bf16.mxu0 0
      %1228 = vmatpush1.bf16.msra.mxu0 %v1197
      %1229 = vmatprep.subr.bf16.mxu0 0
      %1230 = vmatpush2.bf16.msra.mxu0 0
      %1231 = vmatprep.subr.bf16.mxu0 0
      %1232 = vmatpush2.bf16.msra.mxu0 0
      %1233 = vmatprep.subr.bf16.mxu0 0
      %1234 = vmatpush2.bf16.msra.mxu0 0
      %1235 = vmatprep.subr.bf16.mxu0 0
      %1236 = vmatpush2.bf16.msra.mxu0 0
      %1237 = vmatprep.subr.bf16.mxu0 0
      %1238 = vmatpush2.bf16.msra.mxu0 0
      %1239 = vmatprep.subr.bf16.mxu0 0
      %1240 = vmatpush2.bf16.msra.mxu0 0
      %1241 = vmatprep.subr.bf16.mxu0 0
      %1242 = vmatpush2.bf16.msra.mxu0 0
      %1243 = vmatprep.subr.bf16.mxu0 0
      %1244 = vmatpush2.bf16.msra.mxu0 0
      %1245 = vmatprep.mubr.bf16.mxu0 0
      %1246 = vmatmul.mubr.bf16.gmra.mxu0 %v1202
      %v1247 = vpop.f32.mrf.mxu0
      %v1248 = vadd.f32 0.0, %v1247
      %v1249 = vpop.f32.mrf.mxu0
      %v1250 = vpop.f32.mrf.mxu0
      %v1251 = vadd.f32 0.0, %v1250
      %v1252 = vpop.f32.mrf.mxu0
      %1253 = vmatprep.mubr.bf16.mxu0 0
      %1254 = vmatmul.mubr.bf16.gmra.mxu0 %v1205
      %v1255 = vpop.f32.mrf.mxu0
      %v1256 = vadd.f32 0.0, %v1255
      %v1257 = vpop.f32.mrf.mxu0
      %v1258 = vpop.f32.mrf.mxu0
      %v1259 = vadd.f32 0.0, %v1258
      %v1260 = vpop.f32.mrf.mxu0
      %1261 = vmatprep.mubr.bf16.mxu0 0
      %1262 = vmatmul.mubr.bf16.gmra.mxu0 %v1208
      %v1263 = vpop.f32.mrf.mxu0
      %v1264 = vadd.f32 0.0, %v1263
      %v1265 = vpop.f32.mrf.mxu0
      %v1266 = vpop.f32.mrf.mxu0
      %v1267 = vadd.f32 0.0, %v1266
      %v1268 = vpop.f32.mrf.mxu0
      %1269 = vmatprep.mubr.bf16.mxu0 0
      %1270 = vmatmul.mubr.bf16.gmra.mxu0 %v1211
      %v1271 = vpop.f32.mrf.mxu0
      %v1272 = vadd.f32 0.0, %v1271
      %v1273 = vpop.f32.mrf.mxu0
      %v1274 = vpop.f32.mrf.mxu0
      %v1275 = vadd.f32 0.0, %v1274
      %v1276 = vpop.f32.mrf.mxu0
      %1277 = vdwg.mxu0
      %v1278 = vadd.f32 %v1108, %v1248
      %v1279 = vadd.f32 %v1109, %v1251
      %v1280 = vadd.f32 %v1110, %v1256
      %v1281 = vadd.f32 %v1111, %v1259
      %v1282 = vadd.f32 %v1112, %v1264
      %v1283 = vadd.f32 %v1113, %v1267
      %v1284 = vadd.f32 %v1114, %v1272
      %v1285 = vadd.f32 %v1115, %v1275
      %s1286 = scalar_lea.vmem %s207, 16
      %v1287 = vld [vmem:[%s1286] sm:$0xf]
      %v1288 = vld [vmem:[%s1286 + $0x8] sm:$0xf]
      %v1289 = vld [vmem:[%s1286 + $0x10] sm:$0xf]
      %v1290 = vld [vmem:[%s1286 + $0x18] sm:$0xf]
      %v1291 = vld [vmem:[%s1286 + $0x20] sm:$0xf]
      %v1292 = vld [vmem:[%s1286 + $0x28] sm:$0xf]
      %v1293 = vld [vmem:[%s1286 + $0x30] sm:$0xf]
      %v1294 = vld [vmem:[%s1286 + $0x38] sm:$0xf]
      %s1295 = scalar_lea.vmem %s1, 96
      %v1296 = vld [vmem:[%s1295] sm:$0xf]
      %v1297 = vld [vmem:[%s1295 + $0x4] sm:$0xf]
      %v1298 = vld [vmem:[%s1295 + $0x8] sm:$0xf]
      %v1299 = vld [vmem:[%s1295 + $0xc] sm:$0xf]
      %v1308 = vunpack.c.l.b16 %v1287
      %v1309 = vunpack.c.l.b16 %v1288
      %v1310 = vunpack.c.l.b16 %v1289
      %v1311 = vunpack.c.l.b16 %v1290
      %v1312 = vunpack.c.l.b16 %v1291
      %v1313 = vunpack.c.l.b16 %v1292
      %v1314 = vunpack.c.l.b16 %v1293
      %v1315 = vunpack.c.l.b16 %v1294
      %v1316 = vpack.c.b16 %v1309, %v1308
      %v1317 = vpack.c.b16 %v1311, %v1310
      %v1318 = vpack.c.b16 %v1313, %v1312
      %v1319 = vpack.c.b16 %v1315, %v1314
      %v1324 = vunpack.c.l.b16 %v1296
      %v1325 = vunpack.c.l.b16 %v1297
      %v1326 = vunpack.c.l.b16 %v1298
      %v1327 = vunpack.c.l.b16 %v1299
      %v1328 = vpack.c.b16 %v1325, %v1324
      %v1329 = vpack.c.b16 %v1327, %v1326
      %v1333 = vsel %vm383, %v1316, 0
      %v1336 = vsel %vm383, %v1317, 0
      %v1339 = vsel %vm383, %v1318, 0
      %v1342 = vsel %vm383, %v1319, 0
      %1344 = vmatprep.subr.bf16.mxu0 0
      %1345 = vmatpush1.bf16.msra.mxu0 0
      %1346 = vmatprep.subr.bf16.mxu0 0
      %1347 = vmatpush1.bf16.msra.mxu0 0
      %1348 = vmatprep.subr.bf16.mxu0 0
      %1349 = vmatpush1.bf16.msra.mxu0 0
      %1350 = vmatprep.subr.bf16.mxu0 0
      %1351 = vmatpush1.bf16.msra.mxu0 0
      %1352 = vmatprep.subr.bf16.mxu0 0
      %1353 = vmatpush1.bf16.msra.mxu0 0
      %1354 = vmatprep.subr.bf16.mxu0 0
      %1355 = vmatpush1.bf16.msra.mxu0 0
      %1356 = vmatprep.subr.bf16.mxu0 0
      %1357 = vmatpush1.bf16.msra.mxu0 %v1329
      %1358 = vmatprep.subr.bf16.mxu0 0
      %1359 = vmatpush1.bf16.msra.mxu0 %v1328
      %1360 = vmatprep.subr.bf16.mxu0 0
      %1361 = vmatpush2.bf16.msra.mxu0 0
      %1362 = vmatprep.subr.bf16.mxu0 0
      %1363 = vmatpush2.bf16.msra.mxu0 0
      %1364 = vmatprep.subr.bf16.mxu0 0
      %1365 = vmatpush2.bf16.msra.mxu0 0
      %1366 = vmatprep.subr.bf16.mxu0 0
      %1367 = vmatpush2.bf16.msra.mxu0 0
      %1368 = vmatprep.subr.bf16.mxu0 0
      %1369 = vmatpush2.bf16.msra.mxu0 0
      %1370 = vmatprep.subr.bf16.mxu0 0
      %1371 = vmatpush2.bf16.msra.mxu0 0
      %1372 = vmatprep.subr.bf16.mxu0 0
      %1373 = vmatpush2.bf16.msra.mxu0 0
      %1374 = vmatprep.subr.bf16.mxu0 0
      %1375 = vmatpush2.bf16.msra.mxu0 0
      %1376 = vmatprep.mubr.bf16.mxu0 0
      %1377 = vmatmul.mubr.bf16.gmra.mxu0 %v1333
      %v1378 = vpop.f32.mrf.mxu0
      %v1379 = vadd.f32 0.0, %v1378
      %v1380 = vpop.f32.mrf.mxu0
      %v1381 = vpop.f32.mrf.mxu0
      %v1382 = vadd.f32 0.0, %v1381
      %v1383 = vpop.f32.mrf.mxu0
      %1384 = vmatprep.mubr.bf16.mxu0 0
      %1385 = vmatmul.mubr.bf16.gmra.mxu0 %v1336
      %v1386 = vpop.f32.mrf.mxu0
      %v1387 = vadd.f32 0.0, %v1386
      %v1388 = vpop.f32.mrf.mxu0
      %v1389 = vpop.f32.mrf.mxu0
      %v1390 = vadd.f32 0.0, %v1389
      %v1391 = vpop.f32.mrf.mxu0
      %1392 = vmatprep.mubr.bf16.mxu0 0
      %1393 = vmatmul.mubr.bf16.gmra.mxu0 %v1339
      %v1394 = vpop.f32.mrf.mxu0
      %v1395 = vadd.f32 0.0, %v1394
      %v1396 = vpop.f32.mrf.mxu0
      %v1397 = vpop.f32.mrf.mxu0
      %v1398 = vadd.f32 0.0, %v1397
      %v1399 = vpop.f32.mrf.mxu0
      %1400 = vmatprep.mubr.bf16.mxu0 0
      %1401 = vmatmul.mubr.bf16.gmra.mxu0 %v1342
      %v1402 = vpop.f32.mrf.mxu0
      %v1403 = vadd.f32 0.0, %v1402
      %v1404 = vpop.f32.mrf.mxu0
      %v1405 = vpop.f32.mrf.mxu0
      %v1406 = vadd.f32 0.0, %v1405
      %v1407 = vpop.f32.mrf.mxu0
      %1408 = vdwg.mxu0
      %v1409 = vadd.f32 %v1278, %v1379
      %v1410 = vadd.f32 %v1279, %v1382
      %v1411 = vadd.f32 %v1280, %v1387
      %v1412 = vadd.f32 %v1281, %v1390
      %v1413 = vadd.f32 %v1282, %v1395
      %v1414 = vadd.f32 %v1283, %v1398
      %v1415 = vadd.f32 %v1284, %v1403
      %v1416 = vadd.f32 %v1285, %v1406
      %v1417 = vld [vmem:[%s1286] sm:$0xf]
      %v1418 = vld [vmem:[%s1286 + $0x4] sm:$0x1]
      %v1419 = vld [vmem:[%s1286 + $0x8] sm:$0xf]
      %v1420 = vld [vmem:[%s1286 + $0xc] sm:$0x1]
      %v1421 = vld [vmem:[%s1286 + $0x10] sm:$0xf]
      %v1422 = vld [vmem:[%s1286 + $0x14] sm:$0x1]
      %v1423 = vld [vmem:[%s1286 + $0x18] sm:$0xf]
      %v1424 = vld [vmem:[%s1286 + $0x1c] sm:$0x1]
      %v1425 = vld [vmem:[%s1286 + $0x20] sm:$0xf]
      %v1426 = vld [vmem:[%s1286 + $0x24] sm:$0x1]
      %v1427 = vld [vmem:[%s1286 + $0x28] sm:$0xf]
      %v1428 = vld [vmem:[%s1286 + $0x2c] sm:$0x1]
      %v1429 = vld [vmem:[%s1286 + $0x30] sm:$0xf]
      %v1430 = vld [vmem:[%s1286 + $0x34] sm:$0x1]
      %v1431 = vld [vmem:[%s1286 + $0x38] sm:$0xf]
      %v1432 = vld [vmem:[%s1286 + $0x3c] sm:$0x1]
      %v1434 = vshrl.u32 %v1417, 16
      %v1436 = vrot.slane %v1434, 4
      %v1437 = vshll.u32 %v1417, 16
      %v1439 = vrot.slane %v1437, 5
      %v1440 = vor.u32 %v1436, %v1439
      %v1441 = vrot.slane %v1440, 4
      %v1443 = vshll.u32 %v1418, 16
      %v1445 = vrot.slane %v1443, 5
      %v1446 = vsel %vm241, %v1441, %v1445
      %v1448 = vshrl.u32 %v1419, 16
      %v1450 = vrot.slane %v1448, 4
      %v1451 = vshll.u32 %v1419, 16
      %v1453 = vrot.slane %v1451, 5
      %v1454 = vor.u32 %v1450, %v1453
      %v1455 = vrot.slane %v1454, 4
      %v1457 = vshll.u32 %v1420, 16
      %v1459 = vrot.slane %v1457, 5
      %v1460 = vsel %vm241, %v1455, %v1459
      %v1462 = vshrl.u32 %v1421, 16
      %v1464 = vrot.slane %v1462, 4
      %v1465 = vshll.u32 %v1421, 16
      %v1467 = vrot.slane %v1465, 5
      %v1468 = vor.u32 %v1464, %v1467
      %v1469 = vrot.slane %v1468, 4
      %v1471 = vshll.u32 %v1422, 16
      %v1473 = vrot.slane %v1471, 5
      %v1474 = vsel %vm241, %v1469, %v1473
      %v1476 = vshrl.u32 %v1423, 16
      %v1478 = vrot.slane %v1476, 4
      %v1479 = vshll.u32 %v1423, 16
      %v1481 = vrot.slane %v1479, 5
      %v1482 = vor.u32 %v1478, %v1481
      %v1483 = vrot.slane %v1482, 4
      %v1485 = vshll.u32 %v1424, 16
      %v1487 = vrot.slane %v1485, 5
      %v1488 = vsel %vm241, %v1483, %v1487
      %v1490 = vshrl.u32 %v1425, 16
      %v1492 = vrot.slane %v1490, 4
      %v1493 = vshll.u32 %v1425, 16
      %v1495 = vrot.slane %v1493, 5
      %v1496 = vor.u32 %v1492, %v1495
      %v1497 = vrot.slane %v1496, 4
      %v1499 = vshll.u32 %v1426, 16
      %v1501 = vrot.slane %v1499, 5
      %v1502 = vsel %vm241, %v1497, %v1501
      %v1504 = vshrl.u32 %v1427, 16
      %v1506 = vrot.slane %v1504, 4
      %v1507 = vshll.u32 %v1427, 16
      %v1509 = vrot.slane %v1507, 5
      %v1510 = vor.u32 %v1506, %v1509
      %v1511 = vrot.slane %v1510, 4
      %v1513 = vshll.u32 %v1428, 16
      %v1515 = vrot.slane %v1513, 5
      %v1516 = vsel %vm241, %v1511, %v1515
      %v1518 = vshrl.u32 %v1429, 16
      %v1520 = vrot.slane %v1518, 4
      %v1521 = vshll.u32 %v1429, 16
      %v1523 = vrot.slane %v1521, 5
      %v1524 = vor.u32 %v1520, %v1523
      %v1525 = vrot.slane %v1524, 4
      %v1527 = vshll.u32 %v1430, 16
      %v1529 = vrot.slane %v1527, 5
      %v1530 = vsel %vm241, %v1525, %v1529
      %v1532 = vshrl.u32 %v1431, 16
      %v1534 = vrot.slane %v1532, 4
      %v1535 = vshll.u32 %v1431, 16
      %v1537 = vrot.slane %v1535, 5
      %v1538 = vor.u32 %v1534, %v1537
      %v1539 = vrot.slane %v1538, 4
      %v1541 = vshll.u32 %v1432, 16
      %v1543 = vrot.slane %v1541, 5
      %v1544 = vsel %vm241, %v1539, %v1543
      %s1545 = scalar_lea.vmem %s1, 112
      %v1546 = vld [vmem:[%s1545] sm:$0xf]
      %v1547 = vld [vmem:[%s1545 + $0x4] sm:$0xf]
      %v1548 = vld [vmem:[%s1545 + $0x8] sm:$0xf]
      %v1549 = vld [vmem:[%s1545 + $0xc] sm:$0xf]
      %v1550 = vunpack.c.l.b16 %v1446
      %v1551 = vunpack.c.l.b16 %v1460
      %v1552 = vunpack.c.l.b16 %v1474
      %v1553 = vunpack.c.l.b16 %v1488
      %v1554 = vunpack.c.l.b16 %v1502
      %v1555 = vunpack.c.l.b16 %v1516
      %v1556 = vunpack.c.l.b16 %v1530
      %v1557 = vunpack.c.l.b16 %v1544
      %v1558 = vpack.c.b16 %v1551, %v1550
      %v1559 = vpack.c.b16 %v1553, %v1552
      %v1560 = vpack.c.b16 %v1555, %v1554
      %v1561 = vpack.c.b16 %v1557, %v1556
      %v1566 = vunpack.c.l.b16 %v1546
      %v1567 = vunpack.c.l.b16 %v1547
      %v1568 = vunpack.c.l.b16 %v1548
      %v1569 = vunpack.c.l.b16 %v1549
      %v1570 = vpack.c.b16 %v1567, %v1566
      %v1571 = vpack.c.b16 %v1569, %v1568
      %v1575 = vsel %vm383, %v1558, 0
      %v1578 = vsel %vm383, %v1559, 0
      %v1581 = vsel %vm383, %v1560, 0
      %v1584 = vsel %vm383, %v1561, 0
      %1586 = vmatprep.subr.bf16.mxu0 0
      %1587 = vmatpush1.bf16.msra.mxu0 0
      %1588 = vmatprep.subr.bf16.mxu0 0
      %1589 = vmatpush1.bf16.msra.mxu0 0
      %1590 = vmatprep.subr.bf16.mxu0 0
      %1591 = vmatpush1.bf16.msra.mxu0 0
      %1592 = vmatprep.subr.bf16.mxu0 0
      %1593 = vmatpush1.bf16.msra.mxu0 0
      %1594 = vmatprep.subr.bf16.mxu0 0
      %1595 = vmatpush1.bf16.msra.mxu0 0
      %1596 = vmatprep.subr.bf16.mxu0 0
      %1597 = vmatpush1.bf16.msra.mxu0 0
      %1598 = vmatprep.subr.bf16.mxu0 0
      %1599 = vmatpush1.bf16.msra.mxu0 %v1571
      %1600 = vmatprep.subr.bf16.mxu0 0
      %1601 = vmatpush1.bf16.msra.mxu0 %v1570
      %1602 = vmatprep.subr.bf16.mxu0 0
      %1603 = vmatpush2.bf16.msra.mxu0 0
      %1604 = vmatprep.subr.bf16.mxu0 0
      %1605 = vmatpush2.bf16.msra.mxu0 0
      %1606 = vmatprep.subr.bf16.mxu0 0
      %1607 = vmatpush2.bf16.msra.mxu0 0
      %1608 = vmatprep.subr.bf16.mxu0 0
      %1609 = vmatpush2.bf16.msra.mxu0 0
      %1610 = vmatprep.subr.bf16.mxu0 0
      %1611 = vmatpush2.bf16.msra.mxu0 0
      %1612 = vmatprep.subr.bf16.mxu0 0
      %1613 = vmatpush2.bf16.msra.mxu0 0
      %1614 = vmatprep.subr.bf16.mxu0 0
      %1615 = vmatpush2.bf16.msra.mxu0 0
      %1616 = vmatprep.subr.bf16.mxu0 0
      %1617 = vmatpush2.bf16.msra.mxu0 0
      %1618 = vmatprep.mubr.bf16.mxu0 0
      %1619 = vmatmul.mubr.bf16.gmra.mxu0 %v1575
      %v1620 = vpop.f32.mrf.mxu0
      %v1621 = vadd.f32 0.0, %v1620
      %v1622 = vpop.f32.mrf.mxu0
      %v1623 = vpop.f32.mrf.mxu0
      %v1624 = vadd.f32 0.0, %v1623
      %v1625 = vpop.f32.mrf.mxu0
      %1626 = vmatprep.mubr.bf16.mxu0 0
      %1627 = vmatmul.mubr.bf16.gmra.mxu0 %v1578
      %v1628 = vpop.f32.mrf.mxu0
      %v1629 = vadd.f32 0.0, %v1628
      %v1630 = vpop.f32.mrf.mxu0
      %v1631 = vpop.f32.mrf.mxu0
      %v1632 = vadd.f32 0.0, %v1631
      %v1633 = vpop.f32.mrf.mxu0
      %1634 = vmatprep.mubr.bf16.mxu0 0
      %1635 = vmatmul.mubr.bf16.gmra.mxu0 %v1581
      %v1636 = vpop.f32.mrf.mxu0
      %v1637 = vadd.f32 0.0, %v1636
      %v1638 = vpop.f32.mrf.mxu0
      %v1639 = vpop.f32.mrf.mxu0
      %v1640 = vadd.f32 0.0, %v1639
      %v1641 = vpop.f32.mrf.mxu0
      %1642 = vmatprep.mubr.bf16.mxu0 0
      %1643 = vmatmul.mubr.bf16.gmra.mxu0 %v1584
      %v1644 = vpop.f32.mrf.mxu0
      %v1645 = vadd.f32 0.0, %v1644
      %v1646 = vpop.f32.mrf.mxu0
      %v1647 = vpop.f32.mrf.mxu0
      %v1648 = vadd.f32 0.0, %v1647
      %v1649 = vpop.f32.mrf.mxu0
      %1650 = vdwg.mxu0
      %v1651 = vadd.f32 %v1409, %v1621
      %v1652 = vadd.f32 %v1410, %v1624
      %v1653 = vadd.f32 %v1411, %v1629
      %v1654 = vadd.f32 %v1412, %v1632
      %v1655 = vadd.f32 %v1413, %v1637
      %v1656 = vadd.f32 %v1414, %v1640
      %v1657 = vadd.f32 %v1415, %v1645
      %v1658 = vadd.f32 %v1416, %v1648
      %v1659 = vld [vmem:[%s1286] sm:$0xe]
      %v1660 = vld [vmem:[%s1286 + $0x8] sm:$0xe]
      %v1661 = vld [vmem:[%s1286 + $0x10] sm:$0xe]
      %v1662 = vld [vmem:[%s1286 + $0x18] sm:$0xe]
      %v1663 = vld [vmem:[%s1286 + $0x20] sm:$0xe]
      %v1664 = vld [vmem:[%s1286 + $0x28] sm:$0xe]
      %v1665 = vld [vmem:[%s1286 + $0x30] sm:$0xe]
      %v1666 = vld [vmem:[%s1286 + $0x38] sm:$0xe]
      %v1683 = vrot.slane %v1659, 5
      %v1684 = vrot.slane %v1683, 4
      %v1685 = vrot.slane %v1418, 5
      %v1686 = vsel %vm596, %v1684, %v1685
      %v1687 = vrot.slane %v1660, 5
      %v1688 = vrot.slane %v1687, 4
      %v1689 = vrot.slane %v1420, 5
      %v1690 = vsel %vm596, %v1688, %v1689
      %v1691 = vrot.slane %v1661, 5
      %v1692 = vrot.slane %v1691, 4
      %v1693 = vrot.slane %v1422, 5
      %v1694 = vsel %vm596, %v1692, %v1693
      %v1695 = vrot.slane %v1662, 5
      %v1696 = vrot.slane %v1695, 4
      %v1697 = vrot.slane %v1424, 5
      %v1698 = vsel %vm596, %v1696, %v1697
      %v1699 = vrot.slane %v1663, 5
      %v1700 = vrot.slane %v1699, 4
      %v1701 = vrot.slane %v1426, 5
      %v1702 = vsel %vm596, %v1700, %v1701
      %v1703 = vrot.slane %v1664, 5
      %v1704 = vrot.slane %v1703, 4
      %v1705 = vrot.slane %v1428, 5
      %v1706 = vsel %vm596, %v1704, %v1705
      %v1707 = vrot.slane %v1665, 5
      %v1708 = vrot.slane %v1707, 4
      %v1709 = vrot.slane %v1430, 5
      %v1710 = vsel %vm596, %v1708, %v1709
      %v1711 = vrot.slane %v1666, 5
      %v1712 = vrot.slane %v1711, 4
      %v1713 = vrot.slane %v1432, 5
      %v1714 = vsel %vm596, %v1712, %v1713
      %s1715 = scalar_lea.vmem %s1, 128
      %v1716 = vld [vmem:[%s1715] sm:$0xf]
      %v1717 = vld [vmem:[%s1715 + $0x4] sm:$0xf]
      %v1718 = vld [vmem:[%s1715 + $0x8] sm:$0xf]
      %v1719 = vld [vmem:[%s1715 + $0xc] sm:$0xf]
      %v1720 = vunpack.c.l.b16 %v1686
      %v1721 = vunpack.c.l.b16 %v1690
      %v1722 = vunpack.c.l.b16 %v1694
      %v1723 = vunpack.c.l.b16 %v1698
      %v1724 = vunpack.c.l.b16 %v1702
      %v1725 = vunpack.c.l.b16 %v1706
      %v1726 = vunpack.c.l.b16 %v1710
      %v1727 = vunpack.c.l.b16 %v1714
      %v1728 = vpack.c.b16 %v1721, %v1720
      %v1729 = vpack.c.b16 %v1723, %v1722
      %v1730 = vpack.c.b16 %v1725, %v1724
      %v1731 = vpack.c.b16 %v1727, %v1726
      %v1736 = vunpack.c.l.b16 %v1716
      %v1737 = vunpack.c.l.b16 %v1717
      %v1738 = vunpack.c.l.b16 %v1718
      %v1739 = vunpack.c.l.b16 %v1719
      %v1740 = vpack.c.b16 %v1737, %v1736
      %v1741 = vpack.c.b16 %v1739, %v1738
      %v1745 = vsel %vm383, %v1728, 0
      %v1748 = vsel %vm383, %v1729, 0
      %v1751 = vsel %vm383, %v1730, 0
      %v1754 = vsel %vm383, %v1731, 0
      %1756 = vmatprep.subr.bf16.mxu0 0
      %1757 = vmatpush1.bf16.msra.mxu0 0
      %1758 = vmatprep.subr.bf16.mxu0 0
      %1759 = vmatpush1.bf16.msra.mxu0 0
      %1760 = vmatprep.subr.bf16.mxu0 0
      %1761 = vmatpush1.bf16.msra.mxu0 0
      %1762 = vmatprep.subr.bf16.mxu0 0
      %1763 = vmatpush1.bf16.msra.mxu0 0
      %1764 = vmatprep.subr.bf16.mxu0 0
      %1765 = vmatpush1.bf16.msra.mxu0 0
      %1766 = vmatprep.subr.bf16.mxu0 0
      %1767 = vmatpush1.bf16.msra.mxu0 0
      %1768 = vmatprep.subr.bf16.mxu0 0
      %1769 = vmatpush1.bf16.msra.mxu0 %v1741
      %1770 = vmatprep.subr.bf16.mxu0 0
      %1771 = vmatpush1.bf16.msra.mxu0 %v1740
      %1772 = vmatprep.subr.bf16.mxu0 0
      %1773 = vmatpush2.bf16.msra.mxu0 0
      %1774 = vmatprep.subr.bf16.mxu0 0
      %1775 = vmatpush2.bf16.msra.mxu0 0
      %1776 = vmatprep.subr.bf16.mxu0 0
      %1777 = vmatpush2.bf16.msra.mxu0 0
      %1778 = vmatprep.subr.bf16.mxu0 0
      %1779 = vmatpush2.bf16.msra.mxu0 0
      %1780 = vmatprep.subr.bf16.mxu0 0
      %1781 = vmatpush2.bf16.msra.mxu0 0
      %1782 = vmatprep.subr.bf16.mxu0 0
      %1783 = vmatpush2.bf16.msra.mxu0 0
      %1784 = vmatprep.subr.bf16.mxu0 0
      %1785 = vmatpush2.bf16.msra.mxu0 0
      %1786 = vmatprep.subr.bf16.mxu0 0
      %1787 = vmatpush2.bf16.msra.mxu0 0
      %1788 = vmatprep.mubr.bf16.mxu0 0
      %1789 = vmatmul.mubr.bf16.gmra.mxu0 %v1745
      %v1790 = vpop.f32.mrf.mxu0
      %v1791 = vadd.f32 0.0, %v1790
      %v1792 = vpop.f32.mrf.mxu0
      %v1793 = vpop.f32.mrf.mxu0
      %v1794 = vadd.f32 0.0, %v1793
      %v1795 = vpop.f32.mrf.mxu0
      %1796 = vmatprep.mubr.bf16.mxu0 0
      %1797 = vmatmul.mubr.bf16.gmra.mxu0 %v1748
      %v1798 = vpop.f32.mrf.mxu0
      %v1799 = vadd.f32 0.0, %v1798
      %v1800 = vpop.f32.mrf.mxu0
      %v1801 = vpop.f32.mrf.mxu0
      %v1802 = vadd.f32 0.0, %v1801
      %v1803 = vpop.f32.mrf.mxu0
      %1804 = vmatprep.mubr.bf16.mxu0 0
      %1805 = vmatmul.mubr.bf16.gmra.mxu0 %v1751
      %v1806 = vpop.f32.mrf.mxu0
      %v1807 = vadd.f32 0.0, %v1806
      %v1808 = vpop.f32.mrf.mxu0
      %v1809 = vpop.f32.mrf.mxu0
      %v1810 = vadd.f32 0.0, %v1809
      %v1811 = vpop.f32.mrf.mxu0
      %1812 = vmatprep.mubr.bf16.mxu0 0
      %1813 = vmatmul.mubr.bf16.gmra.mxu0 %v1754
      %v1814 = vpop.f32.mrf.mxu0
      %v1815 = vadd.f32 0.0, %v1814
      %v1816 = vpop.f32.mrf.mxu0
      %v1817 = vpop.f32.mrf.mxu0
      %v1818 = vadd.f32 0.0, %v1817
      %v1819 = vpop.f32.mrf.mxu0
      %1820 = vdwg.mxu0
      %v1821 = vadd.f32 %v1651, %v1791
      %v1822 = vadd.f32 %v1652, %v1794
      %v1823 = vadd.f32 %v1653, %v1799
      %v1824 = vadd.f32 %v1654, %v1802
      %v1825 = vadd.f32 %v1655, %v1807
      %v1826 = vadd.f32 %v1656, %v1810
      %v1827 = vadd.f32 %v1657, %v1815
      %v1828 = vadd.f32 %v1658, %v1818
      %v1829 = vld [vmem:[%s2] sm:$0x1]
      %v1831 = vlaneseq
      %v1832 = vshrl.u32 %v1831, 7
      %v1833 = vsub.s32 0, %v1832
      %v1834 = vrot.slane %v1829, %v1833
      %v1836 = vadd.f32 %v1821, %v1834
      %v1837 = vadd.f32 %v1822, %v1834
      %v1838 = vadd.f32 %v1823, %v1834
      %v1839 = vadd.f32 %v1824, %v1834
      %v1840 = vadd.f32 %v1825, %v1834
      %v1841 = vadd.f32 %v1826, %v1834
      %v1842 = vadd.f32 %v1827, %v1834
      %v1843 = vadd.f32 %v1828, %v1834
      %v1844 = vld [vmem:[%s212] sm:$0xf]
      %v1845 = vld [vmem:[%s212 + $0x4] sm:$0xf]
      %v1846 = vld [vmem:[%s212 + $0x8] sm:$0xf]
      %v1847 = vld [vmem:[%s212 + $0xc] sm:$0xf]
      %v1848 = vld [vmem:[%s212 + $0x10] sm:$0xf]
      %v1849 = vld [vmem:[%s212 + $0x14] sm:$0xf]
      %v1850 = vld [vmem:[%s212 + $0x18] sm:$0xf]
      %v1851 = vld [vmem:[%s212 + $0x1c] sm:$0xf]
      %v1852 = vunpack.c.l.bf16 %v1844
      %v1853 = vunpack.c.l.bf16 %v1845
      %v1854 = vunpack.c.l.bf16 %v1846
      %v1855 = vunpack.c.l.bf16 %v1847
      %v1856 = vunpack.c.l.bf16 %v1848
      %v1857 = vunpack.c.l.bf16 %v1849
      %v1858 = vunpack.c.l.bf16 %v1850
      %v1859 = vunpack.c.l.bf16 %v1851
      %v1860 = vadd.f32 %v1836, %v1852
      %v1861 = vadd.f32 %v1837, %v1853
      %v1862 = vadd.f32 %v1838, %v1854
      %v1863 = vadd.f32 %v1839, %v1855
      %v1864 = vadd.f32 %v1840, %v1856
      %v1865 = vadd.f32 %v1841, %v1857
      %v1866 = vadd.f32 %v1842, %v1858
      %v1867 = vadd.f32 %v1843, %v1859
      %v1868 = vpack.c.bf16 %v1860, %v1860
      %v1869 = vpack.c.bf16 %v1861, %v1861
      %v1870 = vpack.c.bf16 %v1862, %v1862
      %v1871 = vpack.c.bf16 %v1863, %v1863
      %v1872 = vpack.c.bf16 %v1864, %v1864
      %v1873 = vpack.c.bf16 %v1865, %v1865
      %v1874 = vpack.c.bf16 %v1866, %v1866
      %v1875 = vpack.c.bf16 %v1867, %v1867
      %vm1876 = vcmask 257024
      %1877 = vst.msk [vmem:[%s217] sm:$0xf] %vm1876, %v1868
      %1878 = vst.msk [vmem:[%s217 + $0x4] sm:$0xf] %vm1876, %v1869
      %1879 = vst.msk [vmem:[%s217 + $0x8] sm:$0xf] %vm1876, %v1870
      %1880 = vst.msk [vmem:[%s217 + $0xc] sm:$0xf] %vm1876, %v1871
      %1881 = vst.msk [vmem:[%s217 + $0x10] sm:$0xf] %vm1876, %v1872
      %1882 = vst.msk [vmem:[%s217 + $0x14] sm:$0xf] %vm1876, %v1873
      %1883 = vst.msk [vmem:[%s217 + $0x18] sm:$0xf] %vm1876, %v1874
      %1884 = vst.msk [vmem:[%s217 + $0x1c] sm:$0xf] %vm1876, %v1875
      %p1885 = scmp.lt.s32.totalorder %s15, 1
      %s1886 = scalar_select %p1885, %s15, 1
      %s1887 = smul.addr %s1886, 8
      %s1888 = smul.addr %s1887, 4
      %s1889 = scalar_lea.vmem %s4, %s1888
      // Predicated region
      $region37: #{_lambda_.8} parent=35 // pred_check
        %p1890 = pneg %p127
      $region38: #{_lambda_.8} parent=35 // pred_check_branch
        %1892 = sbr.rel (%p1890) target = $region40
      $region39: #{_lambda_.8} parent=35 // pred_region
        _
      $region40: #{_lambda_.8} parent=35 // pred_fallthru
        _
    $region36: #{_lambda_.8} parent=5 // pred_fallthru
      _
    %p1893 = scmp.le.s32.totalorder 2, %s10
    // Predicated region
    $region41: #{_lambda_.8} parent=5 // pred_check
      %p1894 = pneg %p1893
    $region42: #{_lambda_.8} parent=5 // pred_check_branch
      %1896 = sbr.rel (%p1894) target = $region44
    $region43: #{_lambda_.8} parent=5 // pred_region
      %s1897 = ssub.s32 %s10, 2
      // Predicated region
      $region45: #{_lambda_.8} parent=43 // pred_check
        %p1898 = pneg %p133
      $region46: #{_lambda_.8} parent=43 // pred_check_branch
        %1900 = sbr.rel (%p1898) target = $region48
      $region47: #{_lambda_.8} parent=43 // pred_region
        %p1901 = scmp.lt.s32.totalorder %s16, 1
        %s1902 = scalar_select %p1901, %s16, 1
        %s1903 = smul.addr %s1902, 8
        %s1904 = smul.addr %s1903, 4
        %s1905 = scalar_lea.vmem %s4, %s1904
      $region48: #{_lambda_.8} parent=43 // pred_fallthru
        _
    $region44: #{_lambda_.8} parent=5 // pred_fallthru
      _
  $region6: #{_lambda_.8} parent=0 // loop_footer
    %s14 = sadd.s32 1, %s10
  $region7: #{_lambda_.8} parent=0 // loop_footer_branch
    %9 = sbr.rel target = $region3
  $region8: #{_lambda_.8} parent=0 // loop_exit
    _

// kernel: _lambda_.9
$region0: #{_lambda_.9}
  #allocation0 [shape = 'u32[]', space=smem, size = 0x4, offset = 0x4, fixed_abs, tag = 'smem constant byte address 0x4 - core index']
  #allocation1 [shape = 'u32[144,128]{1,0:T(1,128)}', space=vmem, size = 0x12000, scoped, tag = 'internal scratch']
  %s0 = inlined_call_operand.vmem [shape: bf16[2,10,10,32], index: 0, kind: input, shape index: {}]
  %s1 = inlined_call_operand.vmem [shape: bf16[9,32,12], index: 1, kind: input, shape index: {}]
  %s2 = inlined_call_operand.vmem [shape: f32[1,12], index: 2, kind: input, shape index: {}]
  %s3 = inlined_call_operand.vmem [shape: f32[2,8,8,12], index: 3, kind: output, shape index: {}]
  %s4 = sld [smem:[#allocation0]]
  $region45: #{_lambda_.9} parent=0
    _
  %s6 = ssub.s32 1, %s4
  %s7 = scalar_select 0, %s6, %s4
  loop: start=0, step=1, limit=4
  $region2: #{_lambda_.9} parent=0 // loop_pre_header
    _
  $region3: #{_lambda_.9} parent=0 // loop_header
    %s9 = sphi 0, %s13
    %p10 = scmp.ge.s32.totalorder %s9, 4
    %s19 = sphi 0, %s21
    %s22 = sphi 0, %s19
    %s23 = sphi 0, %s22
    %s39 = sphi 0, %s23
    %s43 = sphi 0, %s43
    %s45 = sphi 0, %s43
    %s46 = sphi 0, %s45
    %s60 = sphi 0, %s46
    %s64 = sphi 0, %s64
    %s66 = sphi 0, %s64
    %s67 = sphi 0, %s66
    %s81 = sphi 0, %s67
    %s87 = sphi 0, %s89
    %s90 = sphi 0, %s87
    %s91 = sphi 0, %s90
    %s107 = sphi 0, %s91
  $region4: #{_lambda_.9} parent=0 // loop_header_branch
    %12 = sbr.rel (%p10) target = $region8
  $region5: #{_lambda_.9} parent=0 // loop_body
    %s14 = ssub.s32 %s9, 1
    %s15 = ssub.s32 %s9, 2
    %s16 = sadd.s32 %s9, 1
    %s17 = ssub.s32 %s9, %s16
    %p18 = scmp.eq.s32.totalorder %s17, 0
    %s20 = sadd.s32 %s19, 1
    %s21 = scalar_select %p18, %s19, %s20
    %p24 = pneg %p18
    %p25 = scmp.eq.s32.totalorder %s9, 1
    %p26 = por %p24, %p25
    %p27 = scmp.ne.s32.totalorder %s19, %s22
    %p28 = scmp.eq.s32.totalorder %s9, 0
    %p29 = por %p27, %p28
    %p30 = scmp.ne.s32.totalorder %s19, %s22
    %p31 = scmp.eq.s32.totalorder %s14, 1
    %p32 = por %p30, %p31
    %p33 = scmp.ne.s32.totalorder %s22, %s23
    %p34 = scmp.eq.s32.totalorder %s14, 0
    %p35 = por %p33, %p34
    %p36 = scmp.ne.s32.totalorder %s22, %s23
    %p37 = scmp.eq.s32.totalorder %s15, 1
    %p38 = por %p36, %p37
    %p40 = scmp.ne.s32.totalorder %s23, %s39
    %p41 = scmp.eq.s32.totalorder %s15, 0
    %p42 = por %p40, %p41
    %s44 = sadd.s32 %s43, 1
    %p47 = scmp.eq.s32.totalorder %s9, 1
    %p48 = scmp.ne.s32.totalorder %s43, %s45
    %p49 = scmp.eq.s32.totalorder %s9, 0
    %p50 = por %p48, %p49
    %p51 = scmp.ne.s32.totalorder %s43, %s45
    %p52 = scmp.eq.s32.totalorder %s14, 1
    %p53 = por %p51, %p52
    %p54 = scmp.ne.s32.totalorder %s45, %s46
    %p55 = scmp.eq.s32.totalorder %s14, 0
    %p56 = por %p54, %p55
    %p57 = scmp.ne.s32.totalorder %s45, %s46
    %p58 = scmp.eq.s32.totalorder %s15, 1
    %p59 = por %p57, %p58
    %p61 = scmp.ne.s32.totalorder %s46, %s60
    %p62 = scmp.eq.s32.totalorder %s15, 0
    %p63 = por %p61, %p62
    %s65 = sadd.s32 %s64, 1
    %p68 = scmp.eq.s32.totalorder %s9, 1
    %p69 = scmp.ne.s32.totalorder %s64, %s66
    %p70 = scmp.eq.s32.totalorder %s9, 0
    %p71 = por %p69, %p70
    %p72 = scmp.ne.s32.totalorder %s64, %s66
    %p73 = scmp.eq.s32.totalorder %s14, 1
    %p74 = por %p72, %p73
    %p75 = scmp.ne.s32.totalorder %s66, %s67
    %p76 = scmp.eq.s32.totalorder %s14, 0
    %p77 = por %p75, %p76
    %p78 = scmp.ne.s32.totalorder %s66, %s67
    %p79 = scmp.eq.s32.totalorder %s15, 1
    %p80 = por %p78, %p79
    %p82 = scmp.ne.s32.totalorder %s67, %s81
    %p83 = scmp.eq.s32.totalorder %s15, 0
    %p84 = por %p82, %p83
    %s85 = ssub.s32 %s9, %s16
    %p86 = scmp.eq.s32.totalorder %s85, 0
    %s88 = sadd.s32 %s87, 1
    %s89 = scalar_select %p86, %s87, %s88
    %p92 = pneg %p86
    %p93 = scmp.eq.s32.totalorder %s9, 1
    %p94 = por %p92, %p93
    %p95 = scmp.ne.s32.totalorder %s87, %s90
    %p96 = scmp.eq.s32.totalorder %s9, 0
    %p97 = por %p95, %p96
    %p98 = scmp.ne.s32.totalorder %s87, %s90
    %p99 = scmp.eq.s32.totalorder %s14, 1
    %p100 = por %p98, %p99
    %p101 = scmp.ne.s32.totalorder %s90, %s91
    %p102 = scmp.eq.s32.totalorder %s14, 0
    %p103 = por %p101, %p102
    %p104 = scmp.ne.s32.totalorder %s90, %s91
    %p105 = scmp.eq.s32.totalorder %s15, 1
    %p106 = por %p104, %p105
    %p108 = scmp.ne.s32.totalorder %s91, %s107
    %p109 = scmp.eq.s32.totalorder %s15, 0
    %p110 = por %p108, %p109
    %p111 = scmp.le.s32.totalorder 1, %s9
    %p112 = scmp.lt.s32.totalorder %s9, 3
    %p113 = pnand %p111, %p112
    %p114 = pneg %p113
    // Predicated region
    $region9: #{_lambda_.9} parent=5 // pred_check
      _
    $region10: #{_lambda_.9} parent=5 // pred_check_branch
      %116 = sbr.rel (%p113) target = $region12
    $region11: #{_lambda_.9} parent=5 // pred_region
      %s117 = ssub.s32 %s9, 1
      // Predicated region
      $region13: #{_lambda_.9} parent=11 // pred_check
        %p118 = pneg %p56
      $region14: #{_lambda_.9} parent=11 // pred_check_branch
        %120 = sbr.rel (%p118) target = $region16
      $region15: #{_lambda_.9} parent=11 // pred_region
        _
      $region16: #{_lambda_.9} parent=11 // pred_fallthru
        _
      // Predicated region
      $region17: #{_lambda_.9} parent=11 // pred_check
        %p121 = pneg %p77
      $region18: #{_lambda_.9} parent=11 // pred_check_branch
        %123 = sbr.rel (%p121) target = $region20
      $region19: #{_lambda_.9} parent=11 // pred_region
        _
      $region20: #{_lambda_.9} parent=11 // pred_fallthru
        _
    $region12: #{_lambda_.9} parent=5 // pred_fallthru
      _
    %p124 = scmp.lt.s32.totalorder %s9, 2
    // Predicated region
    $region21: #{_lambda_.9} parent=5 // pred_check
      %p125 = pneg %p124
    $region22: #{_lambda_.9} parent=5 // pred_check_branch
      %127 = sbr.rel (%p125) target = $region24
    $region23: #{_lambda_.9} parent=5 // pred_region
      // Predicated region
      $region25: #{_lambda_.9} parent=23 // pred_check
        %p128 = pneg %p29
      $region26: #{_lambda_.9} parent=23 // pred_check_branch
        %130 = sbr.rel (%p128) target = $region28
      $region27: #{_lambda_.9} parent=23 // pred_region
        %p131 = scmp.lt.s32.totalorder %s9, 1
        %s132 = scalar_select %p131, %s9, 1
        %s133 = smul.addr %s132, 20
        %s134 = smul.addr %s133, 4
        %s135 = scalar_lea.vmem %s0, %s134
      $region28: #{_lambda_.9} parent=23 // pred_fallthru
        _
    $region24: #{_lambda_.9} parent=5 // pred_fallthru
      _
    %p136 = scmp.le.s32.totalorder 1, %s9
    %p137 = scmp.lt.s32.totalorder %s9, 3
    %p138 = pnand %p136, %p137
    %p139 = pneg %p138
    // Predicated region
    $region29: #{_lambda_.9} parent=5 // pred_check
      _
    $region30: #{_lambda_.9} parent=5 // pred_check_branch
      %141 = sbr.rel (%p138) target = $region32
    $region31: #{_lambda_.9} parent=5 // pred_region
      %s142 = ssub.s32 %s9, 1
      %p143 = scmp.lt.s32.totalorder %s14, 1
      %s144 = scalar_select %p143, %s14, 1
      %s145 = smul.addr %s144, 20
      %s146 = smul.addr %s145, 4
      %s147 = scalar_lea.vmem %s0, %s146
      %p148 = pneg %p35
      %p149 = pneg %p32
      %p150 = pneg %p56
      %p151 = pneg %p53
      %p152 = pneg %p77
      %p153 = pneg %p74
      %p154 = pneg %p103
      %p155 = pneg %p100
      %p156 = scmp.lt.s32.totalorder %s14, 1
      %s157 = scalar_select %p156, %s14, 1
      %s158 = smul.addr %s157, 8
      %s159 = smul.addr %s158, 8
      %s160 = scalar_lea.vmem %s3, %s159
      %p161 = scmp.lt.s32.totalorder %s14, 1
      %s162 = scalar_select %p161, %s14, 1
      %s163 = smul.addr %s162, 20
      %s164 = smul.addr %s163, 4
      %s165 = scalar_lea.vmem %s0, %s164
      %p166 = scmp.lt.s32.totalorder %s14, 1
      %s167 = scalar_select %p166, %s14, 1
      %s168 = smul.addr %s167, 8
      %s169 = smul.addr %s168, 8
      %s170 = scalar_lea.vmem %s3, %s169
      %v172 = vld [vmem:[%s165] sm:$0xf]
      %v173 = vld [vmem:[%s165 + $0x8] sm:$0xf]
      %v174 = vld [vmem:[%s165 + $0x10] sm:$0xf]
      %v175 = vld [vmem:[%s165 + $0x18] sm:$0xf]
      %v176 = vld [vmem:[%s165 + $0x20] sm:$0xf]
      %v177 = vld [vmem:[%s165 + $0x28] sm:$0xf]
      %v178 = vld [vmem:[%s165 + $0x30] sm:$0xf]
      %v179 = vld [vmem:[%s165 + $0x38] sm:$0xf]
      %v180 = vld [vmem:[%s1] sm:$0xf]
      %v181 = vld [vmem:[%s1 + $0x4] sm:$0xf]
      %v182 = vld [vmem:[%s1 + $0x8] sm:$0xf]
      %v183 = vld [vmem:[%s1 + $0xc] sm:$0xf]
      %v184 = vld [vmem:[%s165 + $0x4] sm:$0x1]
      %v185 = vld [vmem:[%s165 + $0xc] sm:$0x1]
      %v186 = vld [vmem:[%s165 + $0x14] sm:$0x1]
      %v187 = vld [vmem:[%s165 + $0x1c] sm:$0x1]
      %v188 = vld [vmem:[%s165 + $0x24] sm:$0x1]
      %v189 = vld [vmem:[%s165 + $0x2c] sm:$0x1]
      %v190 = vld [vmem:[%s165 + $0x34] sm:$0x1]
      %v191 = vld [vmem:[%s165 + $0x3c] sm:$0x1]
      %vm192 = vsmask.f32 3328
      %vm193 = vsmask.f32 7440
      %vm194 = vmor %vm192, %vm193
      %v196 = vshrl.u32 %v172, 16
      %v198 = vrot.slane %v196, 4
      %v199 = vshll.u32 %v172, 16
      %v201 = vrot.slane %v199, 5
      %v202 = vor.u32 %v198, %v201
      %v203 = vrot.slane %v202, 4
      %v205 = vshll.u32 %v184, 16
      %v207 = vrot.slane %v205, 5
      %v208 = vsel %vm194, %v203, %v207
      %v210 = vshrl.u32 %v173, 16
      %v212 = vrot.slane %v210, 4
      %v213 = vshll.u32 %v173, 16
      %v215 = vrot.slane %v213, 5
      %v216 = vor.u32 %v212, %v215
      %v217 = vrot.slane %v216, 4
      %v219 = vshll.u32 %v185, 16
      %v221 = vrot.slane %v219, 5
      %v222 = vsel %vm194, %v217, %v221
      %v224 = vshrl.u32 %v174, 16
      %v226 = vrot.slane %v224, 4
      %v227 = vshll.u32 %v174, 16
      %v229 = vrot.slane %v227, 5
      %v230 = vor.u32 %v226, %v229
      %v231 = vrot.slane %v230, 4
      %v233 = vshll.u32 %v186, 16
      %v235 = vrot.slane %v233, 5
      %v236 = vsel %vm194, %v231, %v235
      %v238 = vshrl.u32 %v175, 16
      %v240 = vrot.slane %v238, 4
      %v241 = vshll.u32 %v175, 16
      %v243 = vrot.slane %v241, 5
      %v244 = vor.u32 %v240, %v243
      %v245 = vrot.slane %v244, 4
      %v247 = vshll.u32 %v187, 16
      %v249 = vrot.slane %v247, 5
      %v250 = vsel %vm194, %v245, %v249
      %v252 = vshrl.u32 %v176, 16
      %v254 = vrot.slane %v252, 4
      %v255 = vshll.u32 %v176, 16
      %v257 = vrot.slane %v255, 5
      %v258 = vor.u32 %v254, %v257
      %v259 = vrot.slane %v258, 4
      %v261 = vshll.u32 %v188, 16
      %v263 = vrot.slane %v261, 5
      %v264 = vsel %vm194, %v259, %v263
      %v266 = vshrl.u32 %v177, 16
      %v268 = vrot.slane %v266, 4
      %v269 = vshll.u32 %v177, 16
      %v271 = vrot.slane %v269, 5
      %v272 = vor.u32 %v268, %v271
      %v273 = vrot.slane %v272, 4
      %v275 = vshll.u32 %v189, 16
      %v277 = vrot.slane %v275, 5
      %v278 = vsel %vm194, %v273, %v277
      %v280 = vshrl.u32 %v178, 16
      %v282 = vrot.slane %v280, 4
      %v283 = vshll.u32 %v178, 16
      %v285 = vrot.slane %v283, 5
      %v286 = vor.u32 %v282, %v285
      %v287 = vrot.slane %v286, 4
      %v289 = vshll.u32 %v190, 16
      %v291 = vrot.slane %v289, 5
      %v292 = vsel %vm194, %v287, %v291
      %v294 = vshrl.u32 %v179, 16
      %v296 = vrot.slane %v294, 4
      %v297 = vshll.u32 %v179, 16
      %v299 = vrot.slane %v297, 5
      %v300 = vor.u32 %v296, %v299
      %v301 = vrot.slane %v300, 4
      %v303 = vshll.u32 %v191, 16
      %v305 = vrot.slane %v303, 5
      %v306 = vsel %vm194, %v301, %v305
      %s307 = scalar_lea.vmem %s1, 16
      %v308 = vld [vmem:[%s307] sm:$0xf]
      %v309 = vld [vmem:[%s307 + $0x4] sm:$0xf]
      %v310 = vld [vmem:[%s307 + $0x8] sm:$0xf]
      %v311 = vld [vmem:[%s307 + $0xc] sm:$0xf]
      %v312 = vunpack.c.l.b16 %v208
      %v313 = vunpack.c.l.b16 %v222
      %v314 = vunpack.c.l.b16 %v236
      %v315 = vunpack.c.l.b16 %v250
      %v316 = vunpack.c.l.b16 %v264
      %v317 = vunpack.c.l.b16 %v278
      %v318 = vunpack.c.l.b16 %v292
      %v319 = vunpack.c.l.b16 %v306
      %v320 = vpack.c.b16 %v313, %v312
      %v321 = vpack.c.b16 %v315, %v314
      %v322 = vpack.c.b16 %v317, %v316
      %v323 = vpack.c.b16 %v319, %v318
      %v328 = vunpack.c.l.b16 %v308
      %v329 = vunpack.c.l.b16 %v309
      %v330 = vunpack.c.l.b16 %v310
      %v331 = vunpack.c.l.b16 %v311
      %v332 = vpack.c.b16 %v329, %v328
      %v333 = vpack.c.b16 %v331, %v330
      %vm336 = vcmask 261120
      %v338 = vsel %vm336, %v320, 0
      %v341 = vsel %vm336, %v321, 0
      %v344 = vsel %vm336, %v322, 0
      %v347 = vsel %vm336, %v323, 0
      %349 = vmatprep.subr.bf16.mxu0 0
      %350 = vmatpush1.bf16.msra.mxu0 0
      %351 = vmatprep.subr.bf16.mxu0 0
      %352 = vmatpush1.bf16.msra.mxu0 0
      %353 = vmatprep.subr.bf16.mxu0 0
      %354 = vmatpush1.bf16.msra.mxu0 0
      %355 = vmatprep.subr.bf16.mxu0 0
      %356 = vmatpush1.bf16.msra.mxu0 0
      %357 = vmatprep.subr.bf16.mxu0 0
      %358 = vmatpush1.bf16.msra.mxu0 0
      %359 = vmatprep.subr.bf16.mxu0 0
      %360 = vmatpush1.bf16.msra.mxu0 0
      %361 = vmatprep.subr.bf16.mxu0 0
      %362 = vmatpush1.bf16.msra.mxu0 %v333
      %363 = vmatprep.subr.bf16.mxu0 0
      %364 = vmatpush1.bf16.msra.mxu0 %v332
      %365 = vmatprep.subr.bf16.mxu0 0
      %366 = vmatpush2.bf16.msra.mxu0 0
      %367 = vmatprep.subr.bf16.mxu0 0
      %368 = vmatpush2.bf16.msra.mxu0 0
      %369 = vmatprep.subr.bf16.mxu0 0
      %370 = vmatpush2.bf16.msra.mxu0 0
      %371 = vmatprep.subr.bf16.mxu0 0
      %372 = vmatpush2.bf16.msra.mxu0 0
      %373 = vmatprep.subr.bf16.mxu0 0
      %374 = vmatpush2.bf16.msra.mxu0 0
      %375 = vmatprep.subr.bf16.mxu0 0
      %376 = vmatpush2.bf16.msra.mxu0 0
      %377 = vmatprep.subr.bf16.mxu0 0
      %378 = vmatpush2.bf16.msra.mxu0 0
      %379 = vmatprep.subr.bf16.mxu0 0
      %380 = vmatpush2.bf16.msra.mxu0 0
      %381 = vmatprep.mubr.bf16.mxu0 0
      %382 = vmatmul.mubr.bf16.gmra.mxu0 %v338
      %v383 = vpop.f32.mrf.mxu0
      %v384 = vadd.f32 0.0, %v383
      %v385 = vpop.f32.mrf.mxu0
      %v386 = vpop.f32.mrf.mxu0
      %v387 = vadd.f32 0.0, %v386
      %v388 = vpop.f32.mrf.mxu0
      %389 = vmatprep.mubr.bf16.mxu0 0
      %390 = vmatmul.mubr.bf16.gmra.mxu0 %v341
      %v391 = vpop.f32.mrf.mxu0
      %v392 = vadd.f32 0.0, %v391
      %v393 = vpop.f32.mrf.mxu0
      %v394 = vpop.f32.mrf.mxu0
      %v395 = vadd.f32 0.0, %v394
      %v396 = vpop.f32.mrf.mxu0
      %397 = vmatprep.mubr.bf16.mxu0 0
      %398 = vmatmul.mubr.bf16.gmra.mxu0 %v344
      %v399 = vpop.f32.mrf.mxu0
      %v400 = vadd.f32 0.0, %v399
      %v401 = vpop.f32.mrf.mxu0
      %v402 = vpop.f32.mrf.mxu0
      %v403 = vadd.f32 0.0, %v402
      %v404 = vpop.f32.mrf.mxu0
      %405 = vmatprep.mubr.bf16.mxu0 0
      %406 = vmatmul.mubr.bf16.gmra.mxu0 %v347
      %v407 = vpop.f32.mrf.mxu0
      %v408 = vadd.f32 0.0, %v407
      %v409 = vpop.f32.mrf.mxu0
      %v410 = vpop.f32.mrf.mxu0
      %v411 = vadd.f32 0.0, %v410
      %v412 = vpop.f32.mrf.mxu0
      %413 = vdwg.mxu0
      %v422 = vunpack.c.l.b16 %v172
      %v423 = vunpack.c.l.b16 %v173
      %v424 = vunpack.c.l.b16 %v174
      %v425 = vunpack.c.l.b16 %v175
      %v426 = vunpack.c.l.b16 %v176
      %v427 = vunpack.c.l.b16 %v177
      %v428 = vunpack.c.l.b16 %v178
      %v429 = vunpack.c.l.b16 %v179
      %v430 = vpack.c.b16 %v423, %v422
      %v431 = vpack.c.b16 %v425, %v424
      %v432 = vpack.c.b16 %v427, %v426
      %v433 = vpack.c.b16 %v429, %v428
      %v438 = vunpack.c.l.b16 %v180
      %v439 = vunpack.c.l.b16 %v181
      %v440 = vunpack.c.l.b16 %v182
      %v441 = vunpack.c.l.b16 %v183
      %v442 = vpack.c.b16 %v439, %v438
      %v443 = vpack.c.b16 %v441, %v440
      %v447 = vsel %vm336, %v430, 0
      %v450 = vsel %vm336, %v431, 0
      %v453 = vsel %vm336, %v432, 0
      %v456 = vsel %vm336, %v433, 0
      %458 = vmatprep.subr.bf16.mxu0 0
      %459 = vmatpush1.bf16.msra.mxu0 0
      %460 = vmatprep.subr.bf16.mxu0 0
      %461 = vmatpush1.bf16.msra.mxu0 0
      %462 = vmatprep.subr.bf16.mxu0 0
      %463 = vmatpush1.bf16.msra.mxu0 0
      %464 = vmatprep.subr.bf16.mxu0 0
      %465 = vmatpush1.bf16.msra.mxu0 0
      %466 = vmatprep.subr.bf16.mxu0 0
      %467 = vmatpush1.bf16.msra.mxu0 0
      %468 = vmatprep.subr.bf16.mxu0 0
      %469 = vmatpush1.bf16.msra.mxu0 0
      %470 = vmatprep.subr.bf16.mxu0 0
      %471 = vmatpush1.bf16.msra.mxu0 %v443
      %472 = vmatprep.subr.bf16.mxu0 0
      %473 = vmatpush1.bf16.msra.mxu0 %v442
      %474 = vmatprep.subr.bf16.mxu0 0
      %475 = vmatpush2.bf16.msra.mxu0 0
      %476 = vmatprep.subr.bf16.mxu0 0
      %477 = vmatpush2.bf16.msra.mxu0 0
      %478 = vmatprep.subr.bf16.mxu0 0
      %479 = vmatpush2.bf16.msra.mxu0 0
      %480 = vmatprep.subr.bf16.mxu0 0
      %481 = vmatpush2.bf16.msra.mxu0 0
      %482 = vmatprep.subr.bf16.mxu0 0
      %483 = vmatpush2.bf16.msra.mxu0 0
      %484 = vmatprep.subr.bf16.mxu0 0
      %485 = vmatpush2.bf16.msra.mxu0 0
      %486 = vmatprep.subr.bf16.mxu0 0
      %487 = vmatpush2.bf16.msra.mxu0 0
      %488 = vmatprep.subr.bf16.mxu0 0
      %489 = vmatpush2.bf16.msra.mxu0 0
      %490 = vmatprep.mubr.bf16.mxu0 0
      %491 = vmatmul.mubr.bf16.gmra.mxu0 %v447
      %v492 = vpop.f32.mrf.mxu0
      %v493 = vadd.f32 %v384, %v492
      %v494 = vpop.f32.mrf.mxu0
      %v495 = vpop.f32.mrf.mxu0
      %v496 = vadd.f32 %v387, %v495
      %v497 = vpop.f32.mrf.mxu0
      %498 = vmatprep.mubr.bf16.mxu0 0
      %499 = vmatmul.mubr.bf16.gmra.mxu0 %v450
      %v500 = vpop.f32.mrf.mxu0
      %v501 = vadd.f32 %v392, %v500
      %v502 = vpop.f32.mrf.mxu0
      %v503 = vpop.f32.mrf.mxu0
      %v504 = vadd.f32 %v395, %v503
      %v505 = vpop.f32.mrf.mxu0
      %506 = vmatprep.mubr.bf16.mxu0 0
      %507 = vmatmul.mubr.bf16.gmra.mxu0 %v453
      %v508 = vpop.f32.mrf.mxu0
      %v509 = vadd.f32 %v400, %v508
      %v510 = vpop.f32.mrf.mxu0
      %v511 = vpop.f32.mrf.mxu0
      %v512 = vadd.f32 %v403, %v511
      %v513 = vpop.f32.mrf.mxu0
      %514 = vmatprep.mubr.bf16.mxu0 0
      %515 = vmatmul.mubr.bf16.gmra.mxu0 %v456
      %v516 = vpop.f32.mrf.mxu0
      %v517 = vadd.f32 %v408, %v516
      %v518 = vpop.f32.mrf.mxu0
      %v519 = vpop.f32.mrf.mxu0
      %v520 = vadd.f32 %v411, %v519
      %v521 = vpop.f32.mrf.mxu0
      %522 = vdwg.mxu0
      %v523 = vld [vmem:[%s165] sm:$0xe]
      %v524 = vld [vmem:[%s165 + $0x8] sm:$0xe]
      %v525 = vld [vmem:[%s165 + $0x10] sm:$0xe]
      %v526 = vld [vmem:[%s165 + $0x18] sm:$0xe]
      %v527 = vld [vmem:[%s165 + $0x20] sm:$0xe]
      %v528 = vld [vmem:[%s165 + $0x28] sm:$0xe]
      %v529 = vld [vmem:[%s165 + $0x30] sm:$0xe]
      %v530 = vld [vmem:[%s165 + $0x38] sm:$0xe]
      %vm547 = vcmask 1042432
      %vm548 = vcmask 1046532
      %vm549 = vmor %vm547, %vm548
      %v550 = vrot.slane %v523, 5
      %v551 = vrot.slane %v550, 4
      %v552 = vrot.slane %v184, 5
      %v553 = vsel %vm549, %v551, %v552
      %v554 = vrot.slane %v524, 5
      %v555 = vrot.slane %v554, 4
      %v556 = vrot.slane %v185, 5
      %v557 = vsel %vm549, %v555, %v556
      %v558 = vrot.slane %v525, 5
      %v559 = vrot.slane %v558, 4
      %v560 = vrot.slane %v186, 5
      %v561 = vsel %vm549, %v559, %v560
      %v562 = vrot.slane %v526, 5
      %v563 = vrot.slane %v562, 4
      %v564 = vrot.slane %v187, 5
      %v565 = vsel %vm549, %v563, %v564
      %v566 = vrot.slane %v527, 5
      %v567 = vrot.slane %v566, 4
      %v568 = vrot.slane %v188, 5
      %v569 = vsel %vm549, %v567, %v568
      %v570 = vrot.slane %v528, 5
      %v571 = vrot.slane %v570, 4
      %v572 = vrot.slane %v189, 5
      %v573 = vsel %vm549, %v571, %v572
      %v574 = vrot.slane %v529, 5
      %v575 = vrot.slane %v574, 4
      %v576 = vrot.slane %v190, 5
      %v577 = vsel %vm549, %v575, %v576
      %v578 = vrot.slane %v530, 5
      %v579 = vrot.slane %v578, 4
      %v580 = vrot.slane %v191, 5
      %v581 = vsel %vm549, %v579, %v580
      %s582 = scalar_lea.vmem %s1, 32
      %v583 = vld [vmem:[%s582] sm:$0xf]
      %v584 = vld [vmem:[%s582 + $0x4] sm:$0xf]
      %v585 = vld [vmem:[%s582 + $0x8] sm:$0xf]
      %v586 = vld [vmem:[%s582 + $0xc] sm:$0xf]
      %v587 = vunpack.c.l.b16 %v553
      %v588 = vunpack.c.l.b16 %v557
      %v589 = vunpack.c.l.b16 %v561
      %v590 = vunpack.c.l.b16 %v565
      %v591 = vunpack.c.l.b16 %v569
      %v592 = vunpack.c.l.b16 %v573
      %v593 = vunpack.c.l.b16 %v577
      %v594 = vunpack.c.l.b16 %v581
      %v595 = vpack.c.b16 %v588, %v587
      %v596 = vpack.c.b16 %v590, %v589
      %v597 = vpack.c.b16 %v592, %v591
      %v598 = vpack.c.b16 %v594, %v593
      %v603 = vunpack.c.l.b16 %v583
      %v604 = vunpack.c.l.b16 %v584
      %v605 = vunpack.c.l.b16 %v585
      %v606 = vunpack.c.l.b16 %v586
      %v607 = vpack.c.b16 %v604, %v603
      %v608 = vpack.c.b16 %v606, %v605
      %v612 = vsel %vm336, %v595, 0
      %v615 = vsel %vm336, %v596, 0
      %v618 = vsel %vm336, %v597, 0
      %v621 = vsel %vm336, %v598, 0
      %623 = vmatprep.subr.bf16.mxu0 0
      %624 = vmatpush1.bf16.msra.mxu0 0
      %625 = vmatprep.subr.bf16.mxu0 0
      %626 = vmatpush1.bf16.msra.mxu0 0
      %627 = vmatprep.subr.bf16.mxu0 0
      %628 = vmatpush1.bf16.msra.mxu0 0
      %629 = vmatprep.subr.bf16.mxu0 0
      %630 = vmatpush1.bf16.msra.mxu0 0
      %631 = vmatprep.subr.bf16.mxu0 0
      %632 = vmatpush1.bf16.msra.mxu0 0
      %633 = vmatprep.subr.bf16.mxu0 0
      %634 = vmatpush1.bf16.msra.mxu0 0
      %635 = vmatprep.subr.bf16.mxu0 0
      %636 = vmatpush1.bf16.msra.mxu0 %v608
      %637 = vmatprep.subr.bf16.mxu0 0
      %638 = vmatpush1.bf16.msra.mxu0 %v607
      %639 = vmatprep.subr.bf16.mxu0 0
      %640 = vmatpush2.bf16.msra.mxu0 0
      %641 = vmatprep.subr.bf16.mxu0 0
      %642 = vmatpush2.bf16.msra.mxu0 0
      %643 = vmatprep.subr.bf16.mxu0 0
      %644 = vmatpush2.bf16.msra.mxu0 0
      %645 = vmatprep.subr.bf16.mxu0 0
      %646 = vmatpush2.bf16.msra.mxu0 0
      %647 = vmatprep.subr.bf16.mxu0 0
      %648 = vmatpush2.bf16.msra.mxu0 0
      %649 = vmatprep.subr.bf16.mxu0 0
      %650 = vmatpush2.bf16.msra.mxu0 0
      %651 = vmatprep.subr.bf16.mxu0 0
      %652 = vmatpush2.bf16.msra.mxu0 0
      %653 = vmatprep.subr.bf16.mxu0 0
      %654 = vmatpush2.bf16.msra.mxu0 0
      %655 = vmatprep.mubr.bf16.mxu0 0
      %656 = vmatmul.mubr.bf16.gmra.mxu0 %v612
      %v657 = vpop.f32.mrf.mxu0
      %v658 = vadd.f32 0.0, %v657
      %v659 = vpop.f32.mrf.mxu0
      %v660 = vpop.f32.mrf.mxu0
      %v661 = vadd.f32 0.0, %v660
      %v662 = vpop.f32.mrf.mxu0
      %663 = vmatprep.mubr.bf16.mxu0 0
      %664 = vmatmul.mubr.bf16.gmra.mxu0 %v615
      %v665 = vpop.f32.mrf.mxu0
      %v666 = vadd.f32 0.0, %v665
      %v667 = vpop.f32.mrf.mxu0
      %v668 = vpop.f32.mrf.mxu0
      %v669 = vadd.f32 0.0, %v668
      %v670 = vpop.f32.mrf.mxu0
      %671 = vmatprep.mubr.bf16.mxu0 0
      %672 = vmatmul.mubr.bf16.gmra.mxu0 %v618
      %v673 = vpop.f32.mrf.mxu0
      %v674 = vadd.f32 0.0, %v673
      %v675 = vpop.f32.mrf.mxu0
      %v676 = vpop.f32.mrf.mxu0
      %v677 = vadd.f32 0.0, %v676
      %v678 = vpop.f32.mrf.mxu0
      %679 = vmatprep.mubr.bf16.mxu0 0
      %680 = vmatmul.mubr.bf16.gmra.mxu0 %v621
      %v681 = vpop.f32.mrf.mxu0
      %v682 = vadd.f32 0.0, %v681
      %v683 = vpop.f32.mrf.mxu0
      %v684 = vpop.f32.mrf.mxu0
      %v685 = vadd.f32 0.0, %v684
      %v686 = vpop.f32.mrf.mxu0
      %687 = vdwg.mxu0
      %v688 = vadd.f32 %v493, %v658
      %v689 = vadd.f32 %v496, %v661
      %v690 = vadd.f32 %v501, %v666
      %v691 = vadd.f32 %v504, %v669
      %v692 = vadd.f32 %v509, %v674
      %v693 = vadd.f32 %v512, %v677
      %v694 = vadd.f32 %v517, %v682
      %v695 = vadd.f32 %v520, %v685
      %s696 = scalar_lea.vmem %s165, 8
      %v697 = vld [vmem:[%s696] sm:$0xf]
      %v698 = vld [vmem:[%s696 + $0x8] sm:$0xf]
      %v699 = vld [vmem:[%s696 + $0x10] sm:$0xf]
      %v700 = vld [vmem:[%s696 + $0x18] sm:$0xf]
      %v701 = vld [vmem:[%s696 + $0x20] sm:$0xf]
      %v702 = vld [vmem:[%s696 + $0x28] sm:$0xf]
      %v703 = vld [vmem:[%s696 + $0x30] sm:$0xf]
      %v704 = vld [vmem:[%s696 + $0x38] sm:$0xf]
      %s705 = scalar_lea.vmem %s1, 48
      %v706 = vld [vmem:[%s705] sm:$0xf]
      %v707 = vld [vmem:[%s705 + $0x4] sm:$0xf]
      %v708 = vld [vmem:[%s705 + $0x8] sm:$0xf]
      %v709 = vld [vmem:[%s705 + $0xc] sm:$0xf]
      %v718 = vunpack.c.l.b16 %v697
      %v719 = vunpack.c.l.b16 %v698
      %v720 = vunpack.c.l.b16 %v699
      %v721 = vunpack.c.l.b16 %v700
      %v722 = vunpack.c.l.b16 %v701
      %v723 = vunpack.c.l.b16 %v702
      %v724 = vunpack.c.l.b16 %v703
      %v725 = vunpack.c.l.b16 %v704
      %v726 = vpack.c.b16 %v719, %v718
      %v727 = vpack.c.b16 %v721, %v720
      %v728 = vpack.c.b16 %v723, %v722
      %v729 = vpack.c.b16 %v725, %v724
      %v734 = vunpack.c.l.b16 %v706
      %v735 = vunpack.c.l.b16 %v707
      %v736 = vunpack.c.l.b16 %v708
      %v737 = vunpack.c.l.b16 %v709
      %v738 = vpack.c.b16 %v735, %v734
      %v739 = vpack.c.b16 %v737, %v736
      %v743 = vsel %vm336, %v726, 0
      %v746 = vsel %vm336, %v727, 0
      %v749 = vsel %vm336, %v728, 0
      %v752 = vsel %vm336, %v729, 0
      %754 = vmatprep.subr.bf16.mxu0 0
      %755 = vmatpush1.bf16.msra.mxu0 0
      %756 = vmatprep.subr.bf16.mxu0 0
      %757 = vmatpush1.bf16.msra.mxu0 0
      %758 = vmatprep.subr.bf16.mxu0 0
      %759 = vmatpush1.bf16.msra.mxu0 0
      %760 = vmatprep.subr.bf16.mxu0 0
      %761 = vmatpush1.bf16.msra.mxu0 0
      %762 = vmatprep.subr.bf16.mxu0 0
      %763 = vmatpush1.bf16.msra.mxu0 0
      %764 = vmatprep.subr.bf16.mxu0 0
      %765 = vmatpush1.bf16.msra.mxu0 0
      %766 = vmatprep.subr.bf16.mxu0 0
      %767 = vmatpush1.bf16.msra.mxu0 %v739
      %768 = vmatprep.subr.bf16.mxu0 0
      %769 = vmatpush1.bf16.msra.mxu0 %v738
      %770 = vmatprep.subr.bf16.mxu0 0
      %771 = vmatpush2.bf16.msra.mxu0 0
      %772 = vmatprep.subr.bf16.mxu0 0
      %773 = vmatpush2.bf16.msra.mxu0 0
      %774 = vmatprep.subr.bf16.mxu0 0
      %775 = vmatpush2.bf16.msra.mxu0 0
      %776 = vmatprep.subr.bf16.mxu0 0
      %777 = vmatpush2.bf16.msra.mxu0 0
      %778 = vmatprep.subr.bf16.mxu0 0
      %779 = vmatpush2.bf16.msra.mxu0 0
      %780 = vmatprep.subr.bf16.mxu0 0
      %781 = vmatpush2.bf16.msra.mxu0 0
      %782 = vmatprep.subr.bf16.mxu0 0
      %783 = vmatpush2.bf16.msra.mxu0 0
      %784 = vmatprep.subr.bf16.mxu0 0
      %785 = vmatpush2.bf16.msra.mxu0 0
      %786 = vmatprep.mubr.bf16.mxu0 0
      %787 = vmatmul.mubr.bf16.gmra.mxu0 %v743
      %v788 = vpop.f32.mrf.mxu0
      %v789 = vadd.f32 0.0, %v788
      %v790 = vpop.f32.mrf.mxu0
      %v791 = vpop.f32.mrf.mxu0
      %v792 = vadd.f32 0.0, %v791
      %v793 = vpop.f32.mrf.mxu0
      %794 = vmatprep.mubr.bf16.mxu0 0
      %795 = vmatmul.mubr.bf16.gmra.mxu0 %v746
      %v796 = vpop.f32.mrf.mxu0
      %v797 = vadd.f32 0.0, %v796
      %v798 = vpop.f32.mrf.mxu0
      %v799 = vpop.f32.mrf.mxu0
      %v800 = vadd.f32 0.0, %v799
      %v801 = vpop.f32.mrf.mxu0
      %802 = vmatprep.mubr.bf16.mxu0 0
      %803 = vmatmul.mubr.bf16.gmra.mxu0 %v749
      %v804 = vpop.f32.mrf.mxu0
      %v805 = vadd.f32 0.0, %v804
      %v806 = vpop.f32.mrf.mxu0
      %v807 = vpop.f32.mrf.mxu0
      %v808 = vadd.f32 0.0, %v807
      %v809 = vpop.f32.mrf.mxu0
      %810 = vmatprep.mubr.bf16.mxu0 0
      %811 = vmatmul.mubr.bf16.gmra.mxu0 %v752
      %v812 = vpop.f32.mrf.mxu0
      %v813 = vadd.f32 0.0, %v812
      %v814 = vpop.f32.mrf.mxu0
      %v815 = vpop.f32.mrf.mxu0
      %v816 = vadd.f32 0.0, %v815
      %v817 = vpop.f32.mrf.mxu0
      %818 = vdwg.mxu0
      %v819 = vadd.f32 %v688, %v789
      %v820 = vadd.f32 %v689, %v792
      %v821 = vadd.f32 %v690, %v797
      %v822 = vadd.f32 %v691, %v800
      %v823 = vadd.f32 %v692, %v805
      %v824 = vadd.f32 %v693, %v808
      %v825 = vadd.f32 %v694, %v813
      %v826 = vadd.f32 %v695, %v816
      %v827 = vld [vmem:[%s696] sm:$0xf]
      %v828 = vld [vmem:[%s696 + $0x4] sm:$0x1]
      %v829 = vld [vmem:[%s696 + $0x8] sm:$0xf]
      %v830 = vld [vmem:[%s696 + $0xc] sm:$0x1]
      %v831 = vld [vmem:[%s696 + $0x10] sm:$0xf]
      %v832 = vld [vmem:[%s696 + $0x14] sm:$0x1]
      %v833 = vld [vmem:[%s696 + $0x18] sm:$0xf]
      %v834 = vld [vmem:[%s696 + $0x1c] sm:$0x1]
      %v835 = vld [vmem:[%s696 + $0x20] sm:$0xf]
      %v836 = vld [vmem:[%s696 + $0x24] sm:$0x1]
      %v837 = vld [vmem:[%s696 + $0x28] sm:$0xf]
      %v838 = vld [vmem:[%s696 + $0x2c] sm:$0x1]
      %v839 = vld [vmem:[%s696 + $0x30] sm:$0xf]
      %v840 = vld [vmem:[%s696 + $0x34] sm:$0x1]
      %v841 = vld [vmem:[%s696 + $0x38] sm:$0xf]
      %v842 = vld [vmem:[%s696 + $0x3c] sm:$0x1]
      %v844 = vshrl.u32 %v827, 16
      %v846 = vrot.slane %v844, 4
      %v847 = vshll.u32 %v827, 16
      %v849 = vrot.slane %v847, 5
      %v850 = vor.u32 %v846, %v849
      %v851 = vrot.slane %v850, 4
      %v853 = vshll.u32 %v828, 16
      %v855 = vrot.slane %v853, 5
      %v856 = vsel %vm194, %v851, %v855
      %v858 = vshrl.u32 %v829, 16
      %v860 = vrot.slane %v858, 4
      %v861 = vshll.u32 %v829, 16
      %v863 = vrot.slane %v861, 5
      %v864 = vor.u32 %v860, %v863
      %v865 = vrot.slane %v864, 4
      %v867 = vshll.u32 %v830, 16
      %v869 = vrot.slane %v867, 5
      %v870 = vsel %vm194, %v865, %v869
      %v872 = vshrl.u32 %v831, 16
      %v874 = vrot.slane %v872, 4
      %v875 = vshll.u32 %v831, 16
      %v877 = vrot.slane %v875, 5
      %v878 = vor.u32 %v874, %v877
      %v879 = vrot.slane %v878, 4
      %v881 = vshll.u32 %v832, 16
      %v883 = vrot.slane %v881, 5
      %v884 = vsel %vm194, %v879, %v883
      %v886 = vshrl.u32 %v833, 16
      %v888 = vrot.slane %v886, 4
      %v889 = vshll.u32 %v833, 16
      %v891 = vrot.slane %v889, 5
      %v892 = vor.u32 %v888, %v891
      %v893 = vrot.slane %v892, 4
      %v895 = vshll.u32 %v834, 16
      %v897 = vrot.slane %v895, 5
      %v898 = vsel %vm194, %v893, %v897
      %v900 = vshrl.u32 %v835, 16
      %v902 = vrot.slane %v900, 4
      %v903 = vshll.u32 %v835, 16
      %v905 = vrot.slane %v903, 5
      %v906 = vor.u32 %v902, %v905
      %v907 = vrot.slane %v906, 4
      %v909 = vshll.u32 %v836, 16
      %v911 = vrot.slane %v909, 5
      %v912 = vsel %vm194, %v907, %v911
      %v914 = vshrl.u32 %v837, 16
      %v916 = vrot.slane %v914, 4
      %v917 = vshll.u32 %v837, 16
      %v919 = vrot.slane %v917, 5
      %v920 = vor.u32 %v916, %v919
      %v921 = vrot.slane %v920, 4
      %v923 = vshll.u32 %v838, 16
      %v925 = vrot.slane %v923, 5
      %v926 = vsel %vm194, %v921, %v925
      %v928 = vshrl.u32 %v839, 16
      %v930 = vrot.slane %v928, 4
      %v931 = vshll.u32 %v839, 16
      %v933 = vrot.slane %v931, 5
      %v934 = vor.u32 %v930, %v933
      %v935 = vrot.slane %v934, 4
      %v937 = vshll.u32 %v840, 16
      %v939 = vrot.slane %v937, 5
      %v940 = vsel %vm194, %v935, %v939
      %v942 = vshrl.u32 %v841, 16
      %v944 = vrot.slane %v942, 4
      %v945 = vshll.u32 %v841, 16
      %v947 = vrot.slane %v945, 5
      %v948 = vor.u32 %v944, %v947
      %v949 = vrot.slane %v948, 4
      %v951 = vshll.u32 %v842, 16
      %v953 = vrot.slane %v951, 5
      %v954 = vsel %vm194, %v949, %v953
      %s955 = scalar_lea.vmem %s1, 64
      %v956 = vld [vmem:[%s955] sm:$0xf]
      %v957 = vld [vmem:[%s955 + $0x4] sm:$0xf]
      %v958 = vld [vmem:[%s955 + $0x8] sm:$0xf]
      %v959 = vld [vmem:[%s955 + $0xc] sm:$0xf]
      %v960 = vunpack.c.l.b16 %v856
      %v961 = vunpack.c.l.b16 %v870
      %v962 = vunpack.c.l.b16 %v884
      %v963 = vunpack.c.l.b16 %v898
      %v964 = vunpack.c.l.b16 %v912
      %v965 = vunpack.c.l.b16 %v926
      %v966 = vunpack.c.l.b16 %v940
      %v967 = vunpack.c.l.b16 %v954
      %v968 = vpack.c.b16 %v961, %v960
      %v969 = vpack.c.b16 %v963, %v962
      %v970 = vpack.c.b16 %v965, %v964
      %v971 = vpack.c.b16 %v967, %v966
      %v976 = vunpack.c.l.b16 %v956
      %v977 = vunpack.c.l.b16 %v957
      %v978 = vunpack.c.l.b16 %v958
      %v979 = vunpack.c.l.b16 %v959
      %v980 = vpack.c.b16 %v977, %v976
      %v981 = vpack.c.b16 %v979, %v978
      %v985 = vsel %vm336, %v968, 0
      %v988 = vsel %vm336, %v969, 0
      %v991 = vsel %vm336, %v970, 0
      %v994 = vsel %vm336, %v971, 0
      %996 = vmatprep.subr.bf16.mxu0 0
      %997 = vmatpush1.bf16.msra.mxu0 0
      %998 = vmatprep.subr.bf16.mxu0 0
      %999 = vmatpush1.bf16.msra.mxu0 0
      %1000 = vmatprep.subr.bf16.mxu0 0
      %1001 = vmatpush1.bf16.msra.mxu0 0
      %1002 = vmatprep.subr.bf16.mxu0 0
      %1003 = vmatpush1.bf16.msra.mxu0 0
      %1004 = vmatprep.subr.bf16.mxu0 0
      %1005 = vmatpush1.bf16.msra.mxu0 0
      %1006 = vmatprep.subr.bf16.mxu0 0
      %1007 = vmatpush1.bf16.msra.mxu0 0
      %1008 = vmatprep.subr.bf16.mxu0 0
      %1009 = vmatpush1.bf16.msra.mxu0 %v981
      %1010 = vmatprep.subr.bf16.mxu0 0
      %1011 = vmatpush1.bf16.msra.mxu0 %v980
      %1012 = vmatprep.subr.bf16.mxu0 0
      %1013 = vmatpush2.bf16.msra.mxu0 0
      %1014 = vmatprep.subr.bf16.mxu0 0
      %1015 = vmatpush2.bf16.msra.mxu0 0
      %1016 = vmatprep.subr.bf16.mxu0 0
      %1017 = vmatpush2.bf16.msra.mxu0 0
      %1018 = vmatprep.subr.bf16.mxu0 0
      %1019 = vmatpush2.bf16.msra.mxu0 0
      %1020 = vmatprep.subr.bf16.mxu0 0
      %1021 = vmatpush2.bf16.msra.mxu0 0
      %1022 = vmatprep.subr.bf16.mxu0 0
      %1023 = vmatpush2.bf16.msra.mxu0 0
      %1024 = vmatprep.subr.bf16.mxu0 0
      %1025 = vmatpush2.bf16.msra.mxu0 0
      %1026 = vmatprep.subr.bf16.mxu0 0
      %1027 = vmatpush2.bf16.msra.mxu0 0
      %1028 = vmatprep.mubr.bf16.mxu0 0
      %1029 = vmatmul.mubr.bf16.gmra.mxu0 %v985
      %v1030 = vpop.f32.mrf.mxu0
      %v1031 = vadd.f32 0.0, %v1030
      %v1032 = vpop.f32.mrf.mxu0
      %v1033 = vpop.f32.mrf.mxu0
      %v1034 = vadd.f32 0.0, %v1033
      %v1035 = vpop.f32.mrf.mxu0
      %1036 = vmatprep.mubr.bf16.mxu0 0
      %1037 = vmatmul.mubr.bf16.gmra.mxu0 %v988
      %v1038 = vpop.f32.mrf.mxu0
      %v1039 = vadd.f32 0.0, %v1038
      %v1040 = vpop.f32.mrf.mxu0
      %v1041 = vpop.f32.mrf.mxu0
      %v1042 = vadd.f32 0.0, %v1041
      %v1043 = vpop.f32.mrf.mxu0
      %1044 = vmatprep.mubr.bf16.mxu0 0
      %1045 = vmatmul.mubr.bf16.gmra.mxu0 %v991
      %v1046 = vpop.f32.mrf.mxu0
      %v1047 = vadd.f32 0.0, %v1046
      %v1048 = vpop.f32.mrf.mxu0
      %v1049 = vpop.f32.mrf.mxu0
      %v1050 = vadd.f32 0.0, %v1049
      %v1051 = vpop.f32.mrf.mxu0
      %1052 = vmatprep.mubr.bf16.mxu0 0
      %1053 = vmatmul.mubr.bf16.gmra.mxu0 %v994
      %v1054 = vpop.f32.mrf.mxu0
      %v1055 = vadd.f32 0.0, %v1054
      %v1056 = vpop.f32.mrf.mxu0
      %v1057 = vpop.f32.mrf.mxu0
      %v1058 = vadd.f32 0.0, %v1057
      %v1059 = vpop.f32.mrf.mxu0
      %1060 = vdwg.mxu0
      %v1061 = vadd.f32 %v819, %v1031
      %v1062 = vadd.f32 %v820, %v1034
      %v1063 = vadd.f32 %v821, %v1039
      %v1064 = vadd.f32 %v822, %v1042
      %v1065 = vadd.f32 %v823, %v1047
      %v1066 = vadd.f32 %v824, %v1050
      %v1067 = vadd.f32 %v825, %v1055
      %v1068 = vadd.f32 %v826, %v1058
      %v1069 = vld [vmem:[%s696] sm:$0xe]
      %v1070 = vld [vmem:[%s696 + $0x8] sm:$0xe]
      %v1071 = vld [vmem:[%s696 + $0x10] sm:$0xe]
      %v1072 = vld [vmem:[%s696 + $0x18] sm:$0xe]
      %v1073 = vld [vmem:[%s696 + $0x20] sm:$0xe]
      %v1074 = vld [vmem:[%s696 + $0x28] sm:$0xe]
      %v1075 = vld [vmem:[%s696 + $0x30] sm:$0xe]
      %v1076 = vld [vmem:[%s696 + $0x38] sm:$0xe]
      %v1093 = vrot.slane %v1069, 5
      %v1094 = vrot.slane %v1093, 4
      %v1095 = vrot.slane %v828, 5
      %v1096 = vsel %vm549, %v1094, %v1095
      %v1097 = vrot.slane %v1070, 5
      %v1098 = vrot.slane %v1097, 4
      %v1099 = vrot.slane %v830, 5
      %v1100 = vsel %vm549, %v1098, %v1099
      %v1101 = vrot.slane %v1071, 5
      %v1102 = vrot.slane %v1101, 4
      %v1103 = vrot.slane %v832, 5
      %v1104 = vsel %vm549, %v1102, %v1103
      %v1105 = vrot.slane %v1072, 5
      %v1106 = vrot.slane %v1105, 4
      %v1107 = vrot.slane %v834, 5
      %v1108 = vsel %vm549, %v1106, %v1107
      %v1109 = vrot.slane %v1073, 5
      %v1110 = vrot.slane %v1109, 4
      %v1111 = vrot.slane %v836, 5
      %v1112 = vsel %vm549, %v1110, %v1111
      %v1113 = vrot.slane %v1074, 5
      %v1114 = vrot.slane %v1113, 4
      %v1115 = vrot.slane %v838, 5
      %v1116 = vsel %vm549, %v1114, %v1115
      %v1117 = vrot.slane %v1075, 5
      %v1118 = vrot.slane %v1117, 4
      %v1119 = vrot.slane %v840, 5
      %v1120 = vsel %vm549, %v1118, %v1119
      %v1121 = vrot.slane %v1076, 5
      %v1122 = vrot.slane %v1121, 4
      %v1123 = vrot.slane %v842, 5
      %v1124 = vsel %vm549, %v1122, %v1123
      %s1125 = scalar_lea.vmem %s1, 80
      %v1126 = vld [vmem:[%s1125] sm:$0xf]
      %v1127 = vld [vmem:[%s1125 + $0x4] sm:$0xf]
      %v1128 = vld [vmem:[%s1125 + $0x8] sm:$0xf]
      %v1129 = vld [vmem:[%s1125 + $0xc] sm:$0xf]
      %v1130 = vunpack.c.l.b16 %v1096
      %v1131 = vunpack.c.l.b16 %v1100
      %v1132 = vunpack.c.l.b16 %v1104
      %v1133 = vunpack.c.l.b16 %v1108
      %v1134 = vunpack.c.l.b16 %v1112
      %v1135 = vunpack.c.l.b16 %v1116
      %v1136 = vunpack.c.l.b16 %v1120
      %v1137 = vunpack.c.l.b16 %v1124
      %v1138 = vpack.c.b16 %v1131, %v1130
      %v1139 = vpack.c.b16 %v1133, %v1132
      %v1140 = vpack.c.b16 %v1135, %v1134
      %v1141 = vpack.c.b16 %v1137, %v1136
      %v1146 = vunpack.c.l.b16 %v1126
      %v1147 = vunpack.c.l.b16 %v1127
      %v1148 = vunpack.c.l.b16 %v1128
      %v1149 = vunpack.c.l.b16 %v1129
      %v1150 = vpack.c.b16 %v1147, %v1146
      %v1151 = vpack.c.b16 %v1149, %v1148
      %v1155 = vsel %vm336, %v1138, 0
      %v1158 = vsel %vm336, %v1139, 0
      %v1161 = vsel %vm336, %v1140, 0
      %v1164 = vsel %vm336, %v1141, 0
      %1166 = vmatprep.subr.bf16.mxu0 0
      %1167 = vmatpush1.bf16.msra.mxu0 0
      %1168 = vmatprep.subr.bf16.mxu0 0
      %1169 = vmatpush1.bf16.msra.mxu0 0
      %1170 = vmatprep.subr.bf16.mxu0 0
      %1171 = vmatpush1.bf16.msra.mxu0 0
      %1172 = vmatprep.subr.bf16.mxu0 0
      %1173 = vmatpush1.bf16.msra.mxu0 0
      %1174 = vmatprep.subr.bf16.mxu0 0
      %1175 = vmatpush1.bf16.msra.mxu0 0
      %1176 = vmatprep.subr.bf16.mxu0 0
      %1177 = vmatpush1.bf16.msra.mxu0 0
      %1178 = vmatprep.subr.bf16.mxu0 0
      %1179 = vmatpush1.bf16.msra.mxu0 %v1151
      %1180 = vmatprep.subr.bf16.mxu0 0
      %1181 = vmatpush1.bf16.msra.mxu0 %v1150
      %1182 = vmatprep.subr.bf16.mxu0 0
      %1183 = vmatpush2.bf16.msra.mxu0 0
      %1184 = vmatprep.subr.bf16.mxu0 0
      %1185 = vmatpush2.bf16.msra.mxu0 0
      %1186 = vmatprep.subr.bf16.mxu0 0
      %1187 = vmatpush2.bf16.msra.mxu0 0
      %1188 = vmatprep.subr.bf16.mxu0 0
      %1189 = vmatpush2.bf16.msra.mxu0 0
      %1190 = vmatprep.subr.bf16.mxu0 0
      %1191 = vmatpush2.bf16.msra.mxu0 0
      %1192 = vmatprep.subr.bf16.mxu0 0
      %1193 = vmatpush2.bf16.msra.mxu0 0
      %1194 = vmatprep.subr.bf16.mxu0 0
      %1195 = vmatpush2.bf16.msra.mxu0 0
      %1196 = vmatprep.subr.bf16.mxu0 0
      %1197 = vmatpush2.bf16.msra.mxu0 0
      %1198 = vmatprep.mubr.bf16.mxu0 0
      %1199 = vmatmul.mubr.bf16.gmra.mxu0 %v1155
      %v1200 = vpop.f32.mrf.mxu0
      %v1201 = vadd.f32 0.0, %v1200
      %v1202 = vpop.f32.mrf.mxu0
      %v1203 = vpop.f32.mrf.mxu0
      %v1204 = vadd.f32 0.0, %v1203
      %v1205 = vpop.f32.mrf.mxu0
      %1206 = vmatprep.mubr.bf16.mxu0 0
      %1207 = vmatmul.mubr.bf16.gmra.mxu0 %v1158
      %v1208 = vpop.f32.mrf.mxu0
      %v1209 = vadd.f32 0.0, %v1208
      %v1210 = vpop.f32.mrf.mxu0
      %v1211 = vpop.f32.mrf.mxu0
      %v1212 = vadd.f32 0.0, %v1211
      %v1213 = vpop.f32.mrf.mxu0
      %1214 = vmatprep.mubr.bf16.mxu0 0
      %1215 = vmatmul.mubr.bf16.gmra.mxu0 %v1161
      %v1216 = vpop.f32.mrf.mxu0
      %v1217 = vadd.f32 0.0, %v1216
      %v1218 = vpop.f32.mrf.mxu0
      %v1219 = vpop.f32.mrf.mxu0
      %v1220 = vadd.f32 0.0, %v1219
      %v1221 = vpop.f32.mrf.mxu0
      %1222 = vmatprep.mubr.bf16.mxu0 0
      %1223 = vmatmul.mubr.bf16.gmra.mxu0 %v1164
      %v1224 = vpop.f32.mrf.mxu0
      %v1225 = vadd.f32 0.0, %v1224
      %v1226 = vpop.f32.mrf.mxu0
      %v1227 = vpop.f32.mrf.mxu0
      %v1228 = vadd.f32 0.0, %v1227
      %v1229 = vpop.f32.mrf.mxu0
      %1230 = vdwg.mxu0
      %v1231 = vadd.f32 %v1061, %v1201
      %v1232 = vadd.f32 %v1062, %v1204
      %v1233 = vadd.f32 %v1063, %v1209
      %v1234 = vadd.f32 %v1064, %v1212
      %v1235 = vadd.f32 %v1065, %v1217
      %v1236 = vadd.f32 %v1066, %v1220
      %v1237 = vadd.f32 %v1067, %v1225
      %v1238 = vadd.f32 %v1068, %v1228
      %s1239 = scalar_lea.vmem %s165, 16
      %v1240 = vld [vmem:[%s1239] sm:$0xf]
      %v1241 = vld [vmem:[%s1239 + $0x8] sm:$0xf]
      %v1242 = vld [vmem:[%s1239 + $0x10] sm:$0xf]
      %v1243 = vld [vmem:[%s1239 + $0x18] sm:$0xf]
      %v1244 = vld [vmem:[%s1239 + $0x20] sm:$0xf]
      %v1245 = vld [vmem:[%s1239 + $0x28] sm:$0xf]
      %v1246 = vld [vmem:[%s1239 + $0x30] sm:$0xf]
      %v1247 = vld [vmem:[%s1239 + $0x38] sm:$0xf]
      %s1248 = scalar_lea.vmem %s1, 96
      %v1249 = vld [vmem:[%s1248] sm:$0xf]
      %v1250 = vld [vmem:[%s1248 + $0x4] sm:$0xf]
      %v1251 = vld [vmem:[%s1248 + $0x8] sm:$0xf]
      %v1252 = vld [vmem:[%s1248 + $0xc] sm:$0xf]
      %v1261 = vunpack.c.l.b16 %v1240
      %v1262 = vunpack.c.l.b16 %v1241
      %v1263 = vunpack.c.l.b16 %v1242
      %v1264 = vunpack.c.l.b16 %v1243
      %v1265 = vunpack.c.l.b16 %v1244
      %v1266 = vunpack.c.l.b16 %v1245
      %v1267 = vunpack.c.l.b16 %v1246
      %v1268 = vunpack.c.l.b16 %v1247
      %v1269 = vpack.c.b16 %v1262, %v1261
      %v1270 = vpack.c.b16 %v1264, %v1263
      %v1271 = vpack.c.b16 %v1266, %v1265
      %v1272 = vpack.c.b16 %v1268, %v1267
      %v1277 = vunpack.c.l.b16 %v1249
      %v1278 = vunpack.c.l.b16 %v1250
      %v1279 = vunpack.c.l.b16 %v1251
      %v1280 = vunpack.c.l.b16 %v1252
      %v1281 = vpack.c.b16 %v1278, %v1277
      %v1282 = vpack.c.b16 %v1280, %v1279
      %v1286 = vsel %vm336, %v1269, 0
      %v1289 = vsel %vm336, %v1270, 0
      %v1292 = vsel %vm336, %v1271, 0
      %v1295 = vsel %vm336, %v1272, 0
      %1297 = vmatprep.subr.bf16.mxu0 0
      %1298 = vmatpush1.bf16.msra.mxu0 0
      %1299 = vmatprep.subr.bf16.mxu0 0
      %1300 = vmatpush1.bf16.msra.mxu0 0
      %1301 = vmatprep.subr.bf16.mxu0 0
      %1302 = vmatpush1.bf16.msra.mxu0 0
      %1303 = vmatprep.subr.bf16.mxu0 0
      %1304 = vmatpush1.bf16.msra.mxu0 0
      %1305 = vmatprep.subr.bf16.mxu0 0
      %1306 = vmatpush1.bf16.msra.mxu0 0
      %1307 = vmatprep.subr.bf16.mxu0 0
      %1308 = vmatpush1.bf16.msra.mxu0 0
      %1309 = vmatprep.subr.bf16.mxu0 0
      %1310 = vmatpush1.bf16.msra.mxu0 %v1282
      %1311 = vmatprep.subr.bf16.mxu0 0
      %1312 = vmatpush1.bf16.msra.mxu0 %v1281
      %1313 = vmatprep.subr.bf16.mxu0 0
      %1314 = vmatpush2.bf16.msra.mxu0 0
      %1315 = vmatprep.subr.bf16.mxu0 0
      %1316 = vmatpush2.bf16.msra.mxu0 0
      %1317 = vmatprep.subr.bf16.mxu0 0
      %1318 = vmatpush2.bf16.msra.mxu0 0
      %1319 = vmatprep.subr.bf16.mxu0 0
      %1320 = vmatpush2.bf16.msra.mxu0 0
      %1321 = vmatprep.subr.bf16.mxu0 0
      %1322 = vmatpush2.bf16.msra.mxu0 0
      %1323 = vmatprep.subr.bf16.mxu0 0
      %1324 = vmatpush2.bf16.msra.mxu0 0
      %1325 = vmatprep.subr.bf16.mxu0 0
      %1326 = vmatpush2.bf16.msra.mxu0 0
      %1327 = vmatprep.subr.bf16.mxu0 0
      %1328 = vmatpush2.bf16.msra.mxu0 0
      %1329 = vmatprep.mubr.bf16.mxu0 0
      %1330 = vmatmul.mubr.bf16.gmra.mxu0 %v1286
      %v1331 = vpop.f32.mrf.mxu0
      %v1332 = vadd.f32 0.0, %v1331
      %v1333 = vpop.f32.mrf.mxu0
      %v1334 = vpop.f32.mrf.mxu0
      %v1335 = vadd.f32 0.0, %v1334
      %v1336 = vpop.f32.mrf.mxu0
      %1337 = vmatprep.mubr.bf16.mxu0 0
      %1338 = vmatmul.mubr.bf16.gmra.mxu0 %v1289
      %v1339 = vpop.f32.mrf.mxu0
      %v1340 = vadd.f32 0.0, %v1339
      %v1341 = vpop.f32.mrf.mxu0
      %v1342 = vpop.f32.mrf.mxu0
      %v1343 = vadd.f32 0.0, %v1342
      %v1344 = vpop.f32.mrf.mxu0
      %1345 = vmatprep.mubr.bf16.mxu0 0
      %1346 = vmatmul.mubr.bf16.gmra.mxu0 %v1292
      %v1347 = vpop.f32.mrf.mxu0
      %v1348 = vadd.f32 0.0, %v1347
      %v1349 = vpop.f32.mrf.mxu0
      %v1350 = vpop.f32.mrf.mxu0
      %v1351 = vadd.f32 0.0, %v1350
      %v1352 = vpop.f32.mrf.mxu0
      %1353 = vmatprep.mubr.bf16.mxu0 0
      %1354 = vmatmul.mubr.bf16.gmra.mxu0 %v1295
      %v1355 = vpop.f32.mrf.mxu0
      %v1356 = vadd.f32 0.0, %v1355
      %v1357 = vpop.f32.mrf.mxu0
      %v1358 = vpop.f32.mrf.mxu0
      %v1359 = vadd.f32 0.0, %v1358
      %v1360 = vpop.f32.mrf.mxu0
      %1361 = vdwg.mxu0
      %v1362 = vadd.f32 %v1231, %v1332
      %v1363 = vadd.f32 %v1232, %v1335
      %v1364 = vadd.f32 %v1233, %v1340
      %v1365 = vadd.f32 %v1234, %v1343
      %v1366 = vadd.f32 %v1235, %v1348
      %v1367 = vadd.f32 %v1236, %v1351
      %v1368 = vadd.f32 %v1237, %v1356
      %v1369 = vadd.f32 %v1238, %v1359
      %v1370 = vld [vmem:[%s1239] sm:$0xf]
      %v1371 = vld [vmem:[%s1239 + $0x4] sm:$0x1]
      %v1372 = vld [vmem:[%s1239 + $0x8] sm:$0xf]
      %v1373 = vld [vmem:[%s1239 + $0xc] sm:$0x1]
      %v1374 = vld [vmem:[%s1239 + $0x10] sm:$0xf]
      %v1375 = vld [vmem:[%s1239 + $0x14] sm:$0x1]
      %v1376 = vld [vmem:[%s1239 + $0x18] sm:$0xf]
      %v1377 = vld [vmem:[%s1239 + $0x1c] sm:$0x1]
      %v1378 = vld [vmem:[%s1239 + $0x20] sm:$0xf]
      %v1379 = vld [vmem:[%s1239 + $0x24] sm:$0x1]
      %v1380 = vld [vmem:[%s1239 + $0x28] sm:$0xf]
      %v1381 = vld [vmem:[%s1239 + $0x2c] sm:$0x1]
      %v1382 = vld [vmem:[%s1239 + $0x30] sm:$0xf]
      %v1383 = vld [vmem:[%s1239 + $0x34] sm:$0x1]
      %v1384 = vld [vmem:[%s1239 + $0x38] sm:$0xf]
      %v1385 = vld [vmem:[%s1239 + $0x3c] sm:$0x1]
      %v1387 = vshrl.u32 %v1370, 16
      %v1389 = vrot.slane %v1387, 4
      %v1390 = vshll.u32 %v1370, 16
      %v1392 = vrot.slane %v1390, 5
      %v1393 = vor.u32 %v1389, %v1392
      %v1394 = vrot.slane %v1393, 4
      %v1396 = vshll.u32 %v1371, 16
      %v1398 = vrot.slane %v1396, 5
      %v1399 = vsel %vm194, %v1394, %v1398
      %v1401 = vshrl.u32 %v1372, 16
      %v1403 = vrot.slane %v1401, 4
      %v1404 = vshll.u32 %v1372, 16
      %v1406 = vrot.slane %v1404, 5
      %v1407 = vor.u32 %v1403, %v1406
      %v1408 = vrot.slane %v1407, 4
      %v1410 = vshll.u32 %v1373, 16
      %v1412 = vrot.slane %v1410, 5
      %v1413 = vsel %vm194, %v1408, %v1412
      %v1415 = vshrl.u32 %v1374, 16
      %v1417 = vrot.slane %v1415, 4
      %v1418 = vshll.u32 %v1374, 16
      %v1420 = vrot.slane %v1418, 5
      %v1421 = vor.u32 %v1417, %v1420
      %v1422 = vrot.slane %v1421, 4
      %v1424 = vshll.u32 %v1375, 16
      %v1426 = vrot.slane %v1424, 5
      %v1427 = vsel %vm194, %v1422, %v1426
      %v1429 = vshrl.u32 %v1376, 16
      %v1431 = vrot.slane %v1429, 4
      %v1432 = vshll.u32 %v1376, 16
      %v1434 = vrot.slane %v1432, 5
      %v1435 = vor.u32 %v1431, %v1434
      %v1436 = vrot.slane %v1435, 4
      %v1438 = vshll.u32 %v1377, 16
      %v1440 = vrot.slane %v1438, 5
      %v1441 = vsel %vm194, %v1436, %v1440
      %v1443 = vshrl.u32 %v1378, 16
      %v1445 = vrot.slane %v1443, 4
      %v1446 = vshll.u32 %v1378, 16
      %v1448 = vrot.slane %v1446, 5
      %v1449 = vor.u32 %v1445, %v1448
      %v1450 = vrot.slane %v1449, 4
      %v1452 = vshll.u32 %v1379, 16
      %v1454 = vrot.slane %v1452, 5
      %v1455 = vsel %vm194, %v1450, %v1454
      %v1457 = vshrl.u32 %v1380, 16
      %v1459 = vrot.slane %v1457, 4
      %v1460 = vshll.u32 %v1380, 16
      %v1462 = vrot.slane %v1460, 5
      %v1463 = vor.u32 %v1459, %v1462
      %v1464 = vrot.slane %v1463, 4
      %v1466 = vshll.u32 %v1381, 16
      %v1468 = vrot.slane %v1466, 5
      %v1469 = vsel %vm194, %v1464, %v1468
      %v1471 = vshrl.u32 %v1382, 16
      %v1473 = vrot.slane %v1471, 4
      %v1474 = vshll.u32 %v1382, 16
      %v1476 = vrot.slane %v1474, 5
      %v1477 = vor.u32 %v1473, %v1476
      %v1478 = vrot.slane %v1477, 4
      %v1480 = vshll.u32 %v1383, 16
      %v1482 = vrot.slane %v1480, 5
      %v1483 = vsel %vm194, %v1478, %v1482
      %v1485 = vshrl.u32 %v1384, 16
      %v1487 = vrot.slane %v1485, 4
      %v1488 = vshll.u32 %v1384, 16
      %v1490 = vrot.slane %v1488, 5
      %v1491 = vor.u32 %v1487, %v1490
      %v1492 = vrot.slane %v1491, 4
      %v1494 = vshll.u32 %v1385, 16
      %v1496 = vrot.slane %v1494, 5
      %v1497 = vsel %vm194, %v1492, %v1496
      %s1498 = scalar_lea.vmem %s1, 112
      %v1499 = vld [vmem:[%s1498] sm:$0xf]
      %v1500 = vld [vmem:[%s1498 + $0x4] sm:$0xf]
      %v1501 = vld [vmem:[%s1498 + $0x8] sm:$0xf]
      %v1502 = vld [vmem:[%s1498 + $0xc] sm:$0xf]
      %v1503 = vunpack.c.l.b16 %v1399
      %v1504 = vunpack.c.l.b16 %v1413
      %v1505 = vunpack.c.l.b16 %v1427
      %v1506 = vunpack.c.l.b16 %v1441
      %v1507 = vunpack.c.l.b16 %v1455
      %v1508 = vunpack.c.l.b16 %v1469
      %v1509 = vunpack.c.l.b16 %v1483
      %v1510 = vunpack.c.l.b16 %v1497
      %v1511 = vpack.c.b16 %v1504, %v1503
      %v1512 = vpack.c.b16 %v1506, %v1505
      %v1513 = vpack.c.b16 %v1508, %v1507
      %v1514 = vpack.c.b16 %v1510, %v1509
      %v1519 = vunpack.c.l.b16 %v1499
      %v1520 = vunpack.c.l.b16 %v1500
      %v1521 = vunpack.c.l.b16 %v1501
      %v1522 = vunpack.c.l.b16 %v1502
      %v1523 = vpack.c.b16 %v1520, %v1519
      %v1524 = vpack.c.b16 %v1522, %v1521
      %v1528 = vsel %vm336, %v1511, 0
      %v1531 = vsel %vm336, %v1512, 0
      %v1534 = vsel %vm336, %v1513, 0
      %v1537 = vsel %vm336, %v1514, 0
      %1539 = vmatprep.subr.bf16.mxu0 0
      %1540 = vmatpush1.bf16.msra.mxu0 0
      %1541 = vmatprep.subr.bf16.mxu0 0
      %1542 = vmatpush1.bf16.msra.mxu0 0
      %1543 = vmatprep.subr.bf16.mxu0 0
      %1544 = vmatpush1.bf16.msra.mxu0 0
      %1545 = vmatprep.subr.bf16.mxu0 0
      %1546 = vmatpush1.bf16.msra.mxu0 0
      %1547 = vmatprep.subr.bf16.mxu0 0
      %1548 = vmatpush1.bf16.msra.mxu0 0
      %1549 = vmatprep.subr.bf16.mxu0 0
      %1550 = vmatpush1.bf16.msra.mxu0 0
      %1551 = vmatprep.subr.bf16.mxu0 0
      %1552 = vmatpush1.bf16.msra.mxu0 %v1524
      %1553 = vmatprep.subr.bf16.mxu0 0
      %1554 = vmatpush1.bf16.msra.mxu0 %v1523
      %1555 = vmatprep.subr.bf16.mxu0 0
      %1556 = vmatpush2.bf16.msra.mxu0 0
      %1557 = vmatprep.subr.bf16.mxu0 0
      %1558 = vmatpush2.bf16.msra.mxu0 0
      %1559 = vmatprep.subr.bf16.mxu0 0
      %1560 = vmatpush2.bf16.msra.mxu0 0
      %1561 = vmatprep.subr.bf16.mxu0 0
      %1562 = vmatpush2.bf16.msra.mxu0 0
      %1563 = vmatprep.subr.bf16.mxu0 0
      %1564 = vmatpush2.bf16.msra.mxu0 0
      %1565 = vmatprep.subr.bf16.mxu0 0
      %1566 = vmatpush2.bf16.msra.mxu0 0
      %1567 = vmatprep.subr.bf16.mxu0 0
      %1568 = vmatpush2.bf16.msra.mxu0 0
      %1569 = vmatprep.subr.bf16.mxu0 0
      %1570 = vmatpush2.bf16.msra.mxu0 0
      %1571 = vmatprep.mubr.bf16.mxu0 0
      %1572 = vmatmul.mubr.bf16.gmra.mxu0 %v1528
      %v1573 = vpop.f32.mrf.mxu0
      %v1574 = vadd.f32 0.0, %v1573
      %v1575 = vpop.f32.mrf.mxu0
      %v1576 = vpop.f32.mrf.mxu0
      %v1577 = vadd.f32 0.0, %v1576
      %v1578 = vpop.f32.mrf.mxu0
      %1579 = vmatprep.mubr.bf16.mxu0 0
      %1580 = vmatmul.mubr.bf16.gmra.mxu0 %v1531
      %v1581 = vpop.f32.mrf.mxu0
      %v1582 = vadd.f32 0.0, %v1581
      %v1583 = vpop.f32.mrf.mxu0
      %v1584 = vpop.f32.mrf.mxu0
      %v1585 = vadd.f32 0.0, %v1584
      %v1586 = vpop.f32.mrf.mxu0
      %1587 = vmatprep.mubr.bf16.mxu0 0
      %1588 = vmatmul.mubr.bf16.gmra.mxu0 %v1534
      %v1589 = vpop.f32.mrf.mxu0
      %v1590 = vadd.f32 0.0, %v1589
      %v1591 = vpop.f32.mrf.mxu0
      %v1592 = vpop.f32.mrf.mxu0
      %v1593 = vadd.f32 0.0, %v1592
      %v1594 = vpop.f32.mrf.mxu0
      %1595 = vmatprep.mubr.bf16.mxu0 0
      %1596 = vmatmul.mubr.bf16.gmra.mxu0 %v1537
      %v1597 = vpop.f32.mrf.mxu0
      %v1598 = vadd.f32 0.0, %v1597
      %v1599 = vpop.f32.mrf.mxu0
      %v1600 = vpop.f32.mrf.mxu0
      %v1601 = vadd.f32 0.0, %v1600
      %v1602 = vpop.f32.mrf.mxu0
      %1603 = vdwg.mxu0
      %v1604 = vadd.f32 %v1362, %v1574
      %v1605 = vadd.f32 %v1363, %v1577
      %v1606 = vadd.f32 %v1364, %v1582
      %v1607 = vadd.f32 %v1365, %v1585
      %v1608 = vadd.f32 %v1366, %v1590
      %v1609 = vadd.f32 %v1367, %v1593
      %v1610 = vadd.f32 %v1368, %v1598
      %v1611 = vadd.f32 %v1369, %v1601
      %v1612 = vld [vmem:[%s1239] sm:$0xe]
      %v1613 = vld [vmem:[%s1239 + $0x8] sm:$0xe]
      %v1614 = vld [vmem:[%s1239 + $0x10] sm:$0xe]
      %v1615 = vld [vmem:[%s1239 + $0x18] sm:$0xe]
      %v1616 = vld [vmem:[%s1239 + $0x20] sm:$0xe]
      %v1617 = vld [vmem:[%s1239 + $0x28] sm:$0xe]
      %v1618 = vld [vmem:[%s1239 + $0x30] sm:$0xe]
      %v1619 = vld [vmem:[%s1239 + $0x38] sm:$0xe]
      %v1636 = vrot.slane %v1612, 5
      %v1637 = vrot.slane %v1636, 4
      %v1638 = vrot.slane %v1371, 5
      %v1639 = vsel %vm549, %v1637, %v1638
      %v1640 = vrot.slane %v1613, 5
      %v1641 = vrot.slane %v1640, 4
      %v1642 = vrot.slane %v1373, 5
      %v1643 = vsel %vm549, %v1641, %v1642
      %v1644 = vrot.slane %v1614, 5
      %v1645 = vrot.slane %v1644, 4
      %v1646 = vrot.slane %v1375, 5
      %v1647 = vsel %vm549, %v1645, %v1646
      %v1648 = vrot.slane %v1615, 5
      %v1649 = vrot.slane %v1648, 4
      %v1650 = vrot.slane %v1377, 5
      %v1651 = vsel %vm549, %v1649, %v1650
      %v1652 = vrot.slane %v1616, 5
      %v1653 = vrot.slane %v1652, 4
      %v1654 = vrot.slane %v1379, 5
      %v1655 = vsel %vm549, %v1653, %v1654
      %v1656 = vrot.slane %v1617, 5
      %v1657 = vrot.slane %v1656, 4
      %v1658 = vrot.slane %v1381, 5
      %v1659 = vsel %vm549, %v1657, %v1658
      %v1660 = vrot.slane %v1618, 5
      %v1661 = vrot.slane %v1660, 4
      %v1662 = vrot.slane %v1383, 5
      %v1663 = vsel %vm549, %v1661, %v1662
      %v1664 = vrot.slane %v1619, 5
      %v1665 = vrot.slane %v1664, 4
      %v1666 = vrot.slane %v1385, 5
      %v1667 = vsel %vm549, %v1665, %v1666
      %s1668 = scalar_lea.vmem %s1, 128
      %v1669 = vld [vmem:[%s1668] sm:$0xf]
      %v1670 = vld [vmem:[%s1668 + $0x4] sm:$0xf]
      %v1671 = vld [vmem:[%s1668 + $0x8] sm:$0xf]
      %v1672 = vld [vmem:[%s1668 + $0xc] sm:$0xf]
      %v1673 = vunpack.c.l.b16 %v1639
      %v1674 = vunpack.c.l.b16 %v1643
      %v1675 = vunpack.c.l.b16 %v1647
      %v1676 = vunpack.c.l.b16 %v1651
      %v1677 = vunpack.c.l.b16 %v1655
      %v1678 = vunpack.c.l.b16 %v1659
      %v1679 = vunpack.c.l.b16 %v1663
      %v1680 = vunpack.c.l.b16 %v1667
      %v1681 = vpack.c.b16 %v1674, %v1673
      %v1682 = vpack.c.b16 %v1676, %v1675
      %v1683 = vpack.c.b16 %v1678, %v1677
      %v1684 = vpack.c.b16 %v1680, %v1679
      %v1689 = vunpack.c.l.b16 %v1669
      %v1690 = vunpack.c.l.b16 %v1670
      %v1691 = vunpack.c.l.b16 %v1671
      %v1692 = vunpack.c.l.b16 %v1672
      %v1693 = vpack.c.b16 %v1690, %v1689
      %v1694 = vpack.c.b16 %v1692, %v1691
      %v1698 = vsel %vm336, %v1681, 0
      %v1701 = vsel %vm336, %v1682, 0
      %v1704 = vsel %vm336, %v1683, 0
      %v1707 = vsel %vm336, %v1684, 0
      %1709 = vmatprep.subr.bf16.mxu0 0
      %1710 = vmatpush1.bf16.msra.mxu0 0
      %1711 = vmatprep.subr.bf16.mxu0 0
      %1712 = vmatpush1.bf16.msra.mxu0 0
      %1713 = vmatprep.subr.bf16.mxu0 0
      %1714 = vmatpush1.bf16.msra.mxu0 0
      %1715 = vmatprep.subr.bf16.mxu0 0
      %1716 = vmatpush1.bf16.msra.mxu0 0
      %1717 = vmatprep.subr.bf16.mxu0 0
      %1718 = vmatpush1.bf16.msra.mxu0 0
      %1719 = vmatprep.subr.bf16.mxu0 0
      %1720 = vmatpush1.bf16.msra.mxu0 0
      %1721 = vmatprep.subr.bf16.mxu0 0
      %1722 = vmatpush1.bf16.msra.mxu0 %v1694
      %1723 = vmatprep.subr.bf16.mxu0 0
      %1724 = vmatpush1.bf16.msra.mxu0 %v1693
      %1725 = vmatprep.subr.bf16.mxu0 0
      %1726 = vmatpush2.bf16.msra.mxu0 0
      %1727 = vmatprep.subr.bf16.mxu0 0
      %1728 = vmatpush2.bf16.msra.mxu0 0
      %1729 = vmatprep.subr.bf16.mxu0 0
      %1730 = vmatpush2.bf16.msra.mxu0 0
      %1731 = vmatprep.subr.bf16.mxu0 0
      %1732 = vmatpush2.bf16.msra.mxu0 0
      %1733 = vmatprep.subr.bf16.mxu0 0
      %1734 = vmatpush2.bf16.msra.mxu0 0
      %1735 = vmatprep.subr.bf16.mxu0 0
      %1736 = vmatpush2.bf16.msra.mxu0 0
      %1737 = vmatprep.subr.bf16.mxu0 0
      %1738 = vmatpush2.bf16.msra.mxu0 0
      %1739 = vmatprep.subr.bf16.mxu0 0
      %1740 = vmatpush2.bf16.msra.mxu0 0
      %1741 = vmatprep.mubr.bf16.mxu0 0
      %1742 = vmatmul.mubr.bf16.gmra.mxu0 %v1698
      %v1743 = vpop.f32.mrf.mxu0
      %v1744 = vadd.f32 0.0, %v1743
      %v1745 = vpop.f32.mrf.mxu0
      %v1746 = vpop.f32.mrf.mxu0
      %v1747 = vadd.f32 0.0, %v1746
      %v1748 = vpop.f32.mrf.mxu0
      %1749 = vmatprep.mubr.bf16.mxu0 0
      %1750 = vmatmul.mubr.bf16.gmra.mxu0 %v1701
      %v1751 = vpop.f32.mrf.mxu0
      %v1752 = vadd.f32 0.0, %v1751
      %v1753 = vpop.f32.mrf.mxu0
      %v1754 = vpop.f32.mrf.mxu0
      %v1755 = vadd.f32 0.0, %v1754
      %v1756 = vpop.f32.mrf.mxu0
      %1757 = vmatprep.mubr.bf16.mxu0 0
      %1758 = vmatmul.mubr.bf16.gmra.mxu0 %v1704
      %v1759 = vpop.f32.mrf.mxu0
      %v1760 = vadd.f32 0.0, %v1759
      %v1761 = vpop.f32.mrf.mxu0
      %v1762 = vpop.f32.mrf.mxu0
      %v1763 = vadd.f32 0.0, %v1762
      %v1764 = vpop.f32.mrf.mxu0
      %1765 = vmatprep.mubr.bf16.mxu0 0
      %1766 = vmatmul.mubr.bf16.gmra.mxu0 %v1707
      %v1767 = vpop.f32.mrf.mxu0
      %v1768 = vadd.f32 0.0, %v1767
      %v1769 = vpop.f32.mrf.mxu0
      %v1770 = vpop.f32.mrf.mxu0
      %v1771 = vadd.f32 0.0, %v1770
      %v1772 = vpop.f32.mrf.mxu0
      %1773 = vdwg.mxu0
      %v1774 = vadd.f32 %v1604, %v1744
      %v1775 = vadd.f32 %v1605, %v1747
      %v1776 = vadd.f32 %v1606, %v1752
      %v1777 = vadd.f32 %v1607, %v1755
      %v1778 = vadd.f32 %v1608, %v1760
      %v1779 = vadd.f32 %v1609, %v1763
      %v1780 = vadd.f32 %v1610, %v1768
      %v1781 = vadd.f32 %v1611, %v1771
      %v1782 = vld [vmem:[%s2] sm:$0x1]
      %v1784 = vlaneseq
      %v1785 = vshrl.u32 %v1784, 7
      %v1786 = vsub.s32 0, %v1785
      %v1787 = vrot.slane %v1782, %v1786
      %v1789 = vadd.f32 %v1774, %v1787
      %v1790 = vadd.f32 %v1775, %v1787
      %v1791 = vadd.f32 %v1776, %v1787
      %v1792 = vadd.f32 %v1777, %v1787
      %v1793 = vadd.f32 %v1778, %v1787
      %v1794 = vadd.f32 %v1779, %v1787
      %v1795 = vadd.f32 %v1780, %v1787
      %v1796 = vadd.f32 %v1781, %v1787
      %vm1797 = vcmask 97280
      %1798 = vst.msk [vmem:[%s170] sm:$0xff] %vm1797, %v1789
      %1799 = vst.msk [vmem:[%s170 + $0x8] sm:$0xff] %vm1797, %v1790
      %1800 = vst.msk [vmem:[%s170 + $0x10] sm:$0xff] %vm1797, %v1791
      %1801 = vst.msk [vmem:[%s170 + $0x18] sm:$0xff] %vm1797, %v1792
      %1802 = vst.msk [vmem:[%s170 + $0x20] sm:$0xff] %vm1797, %v1793
      %1803 = vst.msk [vmem:[%s170 + $0x28] sm:$0xff] %vm1797, %v1794
      %1804 = vst.msk [vmem:[%s170 + $0x30] sm:$0xff] %vm1797, %v1795
      %1805 = vst.msk [vmem:[%s170 + $0x38] sm:$0xff] %vm1797, %v1796
      %p1806 = scmp.lt.s32.totalorder %s14, 1
      %s1807 = scalar_select %p1806, %s14, 1
      %s1808 = smul.addr %s1807, 8
      %s1809 = smul.addr %s1808, 8
      %s1810 = scalar_lea.vmem %s3, %s1809
      // Predicated region
      $region33: #{_lambda_.9} parent=31 // pred_check
        %p1811 = pneg %p100
      $region34: #{_lambda_.9} parent=31 // pred_check_branch
        %1813 = sbr.rel (%p1811) target = $region36
      $region35: #{_lambda_.9} parent=31 // pred_region
        _
      $region36: #{_lambda_.9} parent=31 // pred_fallthru
        _
    $region32: #{_lambda_.9} parent=5 // pred_fallthru
      _
    %p1814 = scmp.le.s32.totalorder 2, %s9
    // Predicated region
    $region37: #{_lambda_.9} parent=5 // pred_check
      %p1815 = pneg %p1814
    $region38: #{_lambda_.9} parent=5 // pred_check_branch
      %1817 = sbr.rel (%p1815) target = $region40
    $region39: #{_lambda_.9} parent=5 // pred_region
      %s1818 = ssub.s32 %s9, 2
      // Predicated region
      $region41: #{_lambda_.9} parent=39 // pred_check
        %p1819 = pneg %p106
      $region42: #{_lambda_.9} parent=39 // pred_check_branch
        %1821 = sbr.rel (%p1819) target = $region44
      $region43: #{_lambda_.9} parent=39 // pred_region
        %p1822 = scmp.lt.s32.totalorder %s15, 1
        %s1823 = scalar_select %p1822, %s15, 1
        %s1824 = smul.addr %s1823, 8
        %s1825 = smul.addr %s1824, 8
        %s1826 = scalar_lea.vmem %s3, %s1825
      $region44: #{_lambda_.9} parent=39 // pred_fallthru
        _
    $region40: #{_lambda_.9} parent=5 // pred_fallthru
      _
  $region6: #{_lambda_.9} parent=0 // loop_footer
    %s13 = sadd.s32 1, %s9
  $region7: #{_lambda_.9} parent=0 // loop_footer_branch
    %8 = sbr.rel target = $region3
  $region8: #{_lambda_.9} parent=0 // loop_exit
    _

</llo_original>
